<compile_context>
chip_gen: v5e
topology: v5e:2x2
jax: 0.10.0
libtpu: 0.0.40
codegen_flags: <defaults>
</compile_context>

<pallas_src>
import functools

import jax
import jax.numpy as jnp
from jax.experimental import pallas as pl
from jax.experimental.pallas import tpu as pltpu


# ---------------------------------------------------------------------------
# Tiled dense kernel: y = act(x @ w + b), gridded over (M, N) blocks.
# ---------------------------------------------------------------------------
def _dense_kernel(act, x_ref, w_ref, b_ref, o_ref):
    y = jnp.dot(x_ref[...], w_ref[...], preferred_element_type=jnp.float32)
    y = y + b_ref[...]
    if act == "relu":
        y = jnp.maximum(y, 0.0)
    elif act == "sigmoid":
        y = jax.nn.sigmoid(y)
    o_ref[...] = y


def _pick_block(dim, candidates):
    for c in candidates:
        if dim % c == 0:
            return c
    return dim


def dense(x, w, b, act="none"):
    M, K = x.shape
    N = w.shape[1]
    bm = _pick_block(M, (256, 128))          # row tile (full M if small)
    bn = _pick_block(N, (512, 256, 128))     # lane-dense column tile
    grid = (M // bm, N // bn)
    return pl.pallas_call(
        functools.partial(_dense_kernel, act),
        out_shape=jax.ShapeDtypeStruct((M, N), jnp.float32),
        grid=grid,
        in_specs=[
            pl.BlockSpec((bm, K), lambda i, j: (i, 0)),
            pl.BlockSpec((K, bn), lambda i, j: (0, j)),
            pl.BlockSpec((1, bn), lambda i, j: (0, j)),
        ],
        out_specs=pl.BlockSpec((bm, bn), lambda i, j: (i, j)),
        compiler_params=pltpu.CompilerParams(
            dimension_semantics=("parallel", "parallel")),
    )(x, w, b.reshape(1, N))


# ---------------------------------------------------------------------------
# conv2d = im2col (glue) + tiled dense (Pallas).  K padded to 8 sublanes.
# ---------------------------------------------------------------------------
def _im2col(x, k, stride):
    B, C, H, W = x.shape
    OH = (H - k) // stride + 1
    OW = (W - k) // stride + 1
    cols = []
    for di in range(k):
        for dj in range(k):
            cols.append(x[:, :, di:di + stride * OH:stride, dj:dj + stride * OW:stride])
    p = jnp.stack(cols, axis=2)                                  # (B, C, k*k, OH, OW)
    p = p.reshape(B, C * k * k, OH * OW)
    p = jnp.transpose(p, (0, 2, 1)).reshape(B * OH * OW, C * k * k)
    return p, OH, OW


def conv2d(x, w, b, stride=1, act="none"):
    # x: (B, C_in, H, W), w: (C_out, C_in, k, k)  ->  (B, C_out, OH, OW)
    C_out, C_in, k, _ = w.shape
    patches, OH, OW = _im2col(x, k, stride)                      # (B*OH*OW, C_in*k*k)
    w2 = jnp.transpose(w.reshape(C_out, C_in * k * k))           # (C_in*k*k, C_out)
    K = patches.shape[1]
    Kp = -(-K // 8) * 8                                          # pad K to 8 sublanes
    if Kp != K:
        patches = jnp.pad(patches, ((0, 0), (0, Kp - K)))
        w2 = jnp.pad(w2, ((0, Kp - K), (0, 0)))
    out = dense(patches, w2, b, act=act)                         # (B*OH*OW, C_out)
    out = out.reshape(x.shape[0], OH, OW, C_out)
    return jnp.transpose(out, (0, 3, 1, 2))                      # NCHW


# ---------------------------------------------------------------------------
# Dynamic routing kernel (fused primary squash), batch-tiled, lane-dense in ic.
# ---------------------------------------------------------------------------
def _routing_kernel(num_routing, x_ref, w_ref, v_ref, p_ref):
    # x_ref: (bb, pd, ic)          primary capsules (pre-squash), ic on lanes
    # w_ref: (pd, nc, dc, ic)      routing weights, ic on lanes
    # v_ref: (bb, nc*dc)           lane-dense output capsules
    # p_ref: (bb, nc)              capsule lengths (preds)
    bb, pd, ic = x_ref.shape
    _, nc, dc, _ = w_ref.shape
    x = x_ref[...]

    # Fused primary squash: squash(x)_i = sq/(1+sq) * x_i * rsqrt(sq + eps).
    # u_hat is linear per capsule, so this per-capsule scale is applied to
    # u_hat after the projection (mathematically identical).
    sq = jnp.sum(x * x, axis=1)                                   # (bb, ic)
    scale = (sq * pl.reciprocal(1.0 + sq, approx=True)
             * jax.lax.rsqrt(sq + 1e-8))                          # (bb, ic)

    # u_hat[b, j, d, i] = scale[b,i] * sum_k W[k,j,d,i] * x[b,k,i]
    # in_dim (pd) is tiny (4-8): short unrolled lane-dense FMA loop.
    u = x[:, 0, :][:, None, None, :] * w_ref[0][None, ...]
    for k in range(1, pd):
        u = u + x[:, k, :][:, None, None, :] * w_ref[k][None, ...]
    u_hat = u * scale[:, None, None, :]                           # (bb, nc, dc, ic)
    u_g = u_hat.reshape(bb * nc, dc, ic)                          # merge leading dims

    b_log = jnp.zeros((bb, nc, ic), jnp.float32)
    v = jnp.zeros((bb * nc, dc), jnp.float32)
    for it in range(num_routing):
        # softmax over the class axis (nc)
        bmax = jnp.max(b_log, axis=1, keepdims=True)
        e = jnp.exp(b_log - bmax)
        c = e * pl.reciprocal(jnp.sum(e, axis=1, keepdims=True), approx=True)
        c_g = c.reshape(bb * nc, 1, ic)
        # s[g, d] = sum_i u_hat[g, d, i] * c[g, i]  -> MXU (contract in_caps)
        s = jax.lax.dot_general(
            u_g, c_g,
            dimension_numbers=(((2,), (2,)), ((0,), (0,))),
            preferred_element_type=jnp.float32)[..., 0]           # (bb*nc, dc)
        # v = squash(s) along dim_caps
        vsq = jnp.sum(s * s, axis=-1, keepdims=True)
        v = s * (vsq * pl.reciprocal(1.0 + vsq, approx=True)
                 * jax.lax.rsqrt(vsq + 1e-8))
        if it < num_routing - 1:
            # agreement uv[g, i] = sum_d u_hat[g, d, i] * v[g, d]
            # (dim_caps is only 8-16 deep: one VPU pass + sublane reduce)
            uv = jnp.sum(u_g * v[:, :, None], axis=1)             # (bb*nc, ic)
            b_log = b_log + uv.reshape(bb, nc, ic)

    v = v.reshape(bb, nc, dc)
    p_ref[...] = jnp.sqrt(jnp.sum(v * v, axis=-1))                # (bb, nc)
    v_ref[...] = v.reshape(bb, nc * dc)                           # lane-dense slab


def _batch_block(B, target=8):
    if B <= target:
        return B
    for b in (target, 4, 2):
        if B % b == 0:
            return b
    return B


def routing_capsules(x_caps, w_r, num_routing, num_classes, out_dim):
    # x_caps: (B, in_caps, in_dim)   w_r: (in_dim, num_classes, out_dim, in_caps)
    B, ic, pd = x_caps.shape
    x_t = jnp.transpose(x_caps, (0, 2, 1))           # (B, pd, ic): ic on lanes (tiny)
    bb = _batch_block(B)
    ncdc = num_classes * out_dim
    v_flat, preds = pl.pallas_call(
        functools.partial(_routing_kernel, num_routing),
        out_shape=(jax.ShapeDtypeStruct((B, ncdc), jnp.float32),
                   jax.ShapeDtypeStruct((B, num_classes), jnp.float32)),
        grid=(B // bb,),
        in_specs=[
            pl.BlockSpec((bb, pd, ic), lambda i: (i, 0, 0)),
            pl.BlockSpec((pd, num_classes, out_dim, ic), lambda i: (0, 0, 0, 0)),
        ],
        out_specs=(
            pl.BlockSpec((bb, ncdc), lambda i: (i, 0)),
            pl.BlockSpec((bb, num_classes), lambda i: (i, 0)),
        ),
        compiler_params=pltpu.CompilerParams(
            dimension_semantics=("parallel",),
            vmem_limit_bytes=32 * 1024 * 1024),
    )(x_t, w_r)
    return v_flat.reshape(B, num_classes, out_dim), preds


# ---------------------------------------------------------------------------
# Full forward pass
# ---------------------------------------------------------------------------
def capsule_network_forward(x, params, cfg):
    B = x.shape[0]
    # conv1 + ReLU
    out = conv2d(x, params["conv1_w"], params["conv1_b"], stride=1, act="relu")
    # PrimaryCapsules conv (stride 2); squash is fused into the routing kernel.
    out = conv2d(out, params["prim_w"], params["prim_b"], stride=2, act="none")
    pd = cfg["primary_dim"]
    caps_ch = cfg["channels"] // pd
    # PyTorch: out.view(B, caps_ch, H, W, pd).view(B, -1, pd) on contiguous NCHW.
    x_caps = out.reshape(B, caps_ch, out.shape[2], out.shape[3], pd).reshape(B, -1, pd)
    # RoutingCapsules (+ fused primary squash, preds computed in-kernel)
    v, preds = routing_capsules(x_caps, params["W"], cfg["num_routing"],
                                cfg["num_classes"], cfg["out_dim"])
    # mask by the longest capsule (trivial glue)
    idx = jnp.argmax(preds, axis=1)
    y = jnp.eye(cfg["num_classes"], dtype=v.dtype)[idx][:, :, None]
    masked = (v * y).reshape(B, -1)
    # decoder: Linear-ReLU-Linear-ReLU-Linear-Sigmoid
    h = dense(masked, params["dec_w1"], params["dec_b1"], act="relu")
    h = dense(h, params["dec_w2"], params["dec_b2"], act="relu")
    rec = dense(h, params["dec_w3"], params["dec_b3"], act="sigmoid")
    rec = rec.reshape((-1,) + tuple(cfg["img_shape"]))
    return preds, rec


# ---------------------------------------------------------------------------
# params init
# ---------------------------------------------------------------------------
def init_params(key, cfg):
    C_img, H, W = cfg["img_shape"]
    ch, pd, nc, od, k = (cfg["channels"], cfg["primary_dim"], cfg["num_classes"],
                         cfg["out_dim"], cfg["kernel_size"])
    in_caps = int(ch / pd * (H - 2 * (k - 1)) * (W - 2 * (k - 1)) / 4)
    img_px = C_img * H * W
    keys = jax.random.split(key, 10)
    n = lambda kk, shape, s: s * jax.random.normal(kk, shape, jnp.float32)
    # routing weight in PyTorch layout (num_classes, in_caps, out_dim, in_dim),
    # stored once in the kernel layout (in_dim, num_classes, out_dim, in_caps).
    W_pt = n(keys[4], (nc, in_caps, od, pd), 0.01)
    return {
        "conv1_w": n(keys[0], (ch, C_img, k, k), 0.1),
        "conv1_b": n(keys[1], (ch,), 0.1),
        "prim_w": n(keys[2], (ch, ch, k, k), 0.1),
        "prim_b": n(keys[3], (ch,), 0.1),
        "W": jnp.transpose(W_pt, (3, 0, 2, 1)),
        # decoder linears stored as (in, out) for the Pallas dense kernel
        "dec_w1": n(keys[5], (od * nc, 512), 0.05),
        "dec_b1": jnp.zeros((512,), jnp.float32),
        "dec_w2": n(keys[6], (512, 1024), 0.05),
        "dec_b2": jnp.zeros((1024,), jnp.float32),
        "dec_w3": n(keys[7], (1024, img_px), 0.05),
        "dec_b3": jnp.zeros((img_px,), jnp.float32),
    }


if __name__ == "__main__":
    cfg = dict(img_shape=(1, 20, 20), channels=8, primary_dim=4, num_classes=4,
               out_dim=8, num_routing=3, kernel_size=5)
    key = jax.random.PRNGKey(0)
    pkey, xkey = jax.random.split(key)
    params = init_params(pkey, cfg)
    x = jax.random.normal(xkey, (2,) + cfg["img_shape"], jnp.float32)

    fwd = jax.jit(functools.partial(capsule_network_forward, cfg=cfg))
    preds, recon = fwd(x, params)
    jax.block_until_ready((preds, recon))

    assert preds.shape == (2, cfg["num_classes"]), preds.shape
    assert recon.shape == (2,) + cfg["img_shape"], recon.shape
    assert bool(jnp.all(jnp.isfinite(preds))) and bool(jnp.all(jnp.isfinite(recon)))
    print("KERNEL_OK")
</pallas_src>

<mosaic_0001>
module attributes {stable_mosaic.version = 11 : i64} {
  func.func @_dense_kernel(%arg0: i32, %arg1: i32, %arg2: memref<256x32xf32, #tpu.memory_space<vmem>>, %arg3: memref<32x8xf32, #tpu.memory_space<vmem>>, %arg4: memref<1x8xf32, #tpu.memory_space<vmem>>, %arg5: memref<256x8xf32, #tpu.memory_space<vmem>>) attributes {dimension_semantics = [#tpu.dimension_semantics<parallel>, #tpu.dimension_semantics<parallel>], iteration_bounds = array<i64: 2, 1>, scalar_prefetch = 0 : i64, scratch_operands = 0 : i64, tpu.core_type = #tpu.core_type<tc>, window_params = [{transform_indices = @transform_0, window_bounds = array<i64: 256, 32>}, {transform_indices = @transform_1, window_bounds = array<i64: 32, 8>}, {transform_indices = @transform_2, window_bounds = array<i64: 1, 8>}, {transform_indices = @transform_3, window_bounds = array<i64: 256, 8>}]} {
    %c0 = arith.constant 0 : index
    %c0_0 = arith.constant 0 : index
    %0 = vector.load %arg2[%c0, %c0_0] : memref<256x32xf32, #tpu.memory_space<vmem>>, vector<256x32xf32>
    %c0_1 = arith.constant 0 : index
    %c0_2 = arith.constant 0 : index
    %1 = vector.load %arg3[%c0_1, %c0_2] : memref<32x8xf32, #tpu.memory_space<vmem>>, vector<32x8xf32>
    %cst = arith.constant dense<0.000000e+00> : vector<256x8xf32>
    %2 = tpu.matmul %0, %1, %cst {dimension_numbers = #tpu.dot_dimension_numbers<[1], [0], [0], [1], [0, 0, 1, 1], [], []>} : vector<256x32xf32>, vector<32x8xf32>, vector<256x8xf32> -> vector<256x8xf32>
    %c0_3 = arith.constant 0 : index
    %c0_4 = arith.constant 0 : index
    %3 = vector.load %arg4[%c0_3, %c0_4] : memref<1x8xf32, #tpu.memory_space<vmem>>, vector<1x8xf32>
    %4 = vector.broadcast %3 : vector<1x8xf32> to vector<256x8xf32>
    %5 = arith.addf %2, %4 : vector<256x8xf32>
    %cst_5 = arith.constant 0.000000e+00 : f32
    %6 = vector.broadcast %cst_5 : f32 to vector<256x8xf32>
    %7 = arith.maximumf %5, %6 : vector<256x8xf32>
    %c0_6 = arith.constant 0 : index
    %c0_7 = arith.constant 0 : index
    %8 = vector.load %arg5[%c0_6, %c0_7] : memref<256x8xf32, #tpu.memory_space<vmem>>, vector<256x8xf32>
    tpu.vector_store %arg5[%c0_6, %c0_7], %7 {strides = array<i32>} : memref<256x8xf32, #tpu.memory_space<vmem>>, vector<256x8xf32>,
    return
  }
  func.func @transform_0(%arg0: i32, %arg1: i32) -> (i32, i32) {
    %c0_i32 = arith.constant 0 : i32
    %c0_i32_0 = arith.constant 0 : i32
    return %arg0, %c0_i32 : i32, i32
  }
  func.func @transform_1(%arg0: i32, %arg1: i32) -> (i32, i32) {
    %c0_i32 = arith.constant 0 : i32
    %c0_i32_0 = arith.constant 0 : i32
    return %c0_i32, %arg1 : i32, i32
  }
  func.func @transform_2(%arg0: i32, %arg1: i32) -> (i32, i32) {
    %c0_i32 = arith.constant 0 : i32
    %c0_i32_0 = arith.constant 0 : i32
    return %c0_i32, %arg1 : i32, i32
  }
  func.func @transform_3(%arg0: i32, %arg1: i32) -> (i32, i32) {
    %c0_i32 = arith.constant 0 : i32
    return %arg0, %arg1 : i32, i32
  }
}

module attributes {stable_mosaic.version = 11 : i64} {
  func.func @_dense_kernel(%arg0: i32, %arg1: i32, %arg2: memref<72x200xf32, #tpu.memory_space<vmem>>, %arg3: memref<200x8xf32, #tpu.memory_space<vmem>>, %arg4: memref<1x8xf32, #tpu.memory_space<vmem>>, %arg5: memref<72x8xf32, #tpu.memory_space<vmem>>) attributes {dimension_semantics = [#tpu.dimension_semantics<parallel>, #tpu.dimension_semantics<parallel>], iteration_bounds = array<i64: 1, 1>, scalar_prefetch = 0 : i64, scratch_operands = 0 : i64, tpu.core_type = #tpu.core_type<tc>, window_params = [{transform_indices = @transform_0, window_bounds = array<i64: 72, 200>}, {transform_indices = @transform_1, window_bounds = array<i64: 200, 8>}, {transform_indices = @transform_2, window_bounds = array<i64: 1, 8>}, {transform_indices = @transform_3, window_bounds = array<i64: 72, 8>}]} {
    %c0 = arith.constant 0 : index
    %c0_0 = arith.constant 0 : index
    %0 = vector.load %arg2[%c0, %c0_0] : memref<72x200xf32, #tpu.memory_space<vmem>>, vector<72x200xf32>
    %c0_1 = arith.constant 0 : index
    %c0_2 = arith.constant 0 : index
    %1 = vector.load %arg3[%c0_1, %c0_2] : memref<200x8xf32, #tpu.memory_space<vmem>>, vector<200x8xf32>
    %cst = arith.constant dense<0.000000e+00> : vector<72x8xf32>
    %2 = tpu.matmul %0, %1, %cst {dimension_numbers = #tpu.dot_dimension_numbers<[1], [0], [0], [1], [0, 0, 1, 1], [], []>} : vector<72x200xf32>, vector<200x8xf32>, vector<72x8xf32> -> vector<72x8xf32>
    %c0_3 = arith.constant 0 : index
    %c0_4 = arith.constant 0 : index
    %3 = vector.load %arg4[%c0_3, %c0_4] : memref<1x8xf32, #tpu.memory_space<vmem>>, vector<1x8xf32>
    %4 = vector.broadcast %3 : vector<1x8xf32> to vector<72x8xf32>
    %5 = arith.addf %2, %4 : vector<72x8xf32>
    %c0_5 = arith.constant 0 : index
    %c0_6 = arith.constant 0 : index
    %6 = vector.load %arg5[%c0_5, %c0_6] : memref<72x8xf32, #tpu.memory_space<vmem>>, vector<72x8xf32>
    tpu.vector_store %arg5[%c0_5, %c0_6], %5 {strides = array<i32>} : memref<72x8xf32, #tpu.memory_space<vmem>>, vector<72x8xf32>,
    return
  }
  func.func @transform_0(%arg0: i32, %arg1: i32) -> (i32, i32) {
    %c0_i32 = arith.constant 0 : i32
    %c0_i32_0 = arith.constant 0 : i32
    return %arg0, %c0_i32 : i32, i32
  }
  func.func @transform_1(%arg0: i32, %arg1: i32) -> (i32, i32) {
    %c0_i32 = arith.constant 0 : i32
    %c0_i32_0 = arith.constant 0 : i32
    return %c0_i32, %arg1 : i32, i32
  }
  func.func @transform_2(%arg0: i32, %arg1: i32) -> (i32, i32) {
    %c0_i32 = arith.constant 0 : i32
    %c0_i32_0 = arith.constant 0 : i32
    return %c0_i32, %arg1 : i32, i32
  }
  func.func @transform_3(%arg0: i32, %arg1: i32) -> (i32, i32) {
    %c0_i32 = arith.constant 0 : i32
    return %arg0, %arg1 : i32, i32
  }
}

module attributes {stable_mosaic.version = 11 : i64} {
  func.func @_routing_kernel(%arg0: i32, %arg1: memref<2x4x72xf32, #tpu.memory_space<vmem>>, %arg2: memref<4x4x8x72xf32, #tpu.memory_space<vmem>>, %arg3: memref<2x32xf32, #tpu.memory_space<vmem>>, %arg4: memref<2x4xf32, #tpu.memory_space<vmem>>) attributes {dimension_semantics = [#tpu.dimension_semantics<parallel>], iteration_bounds = array<i64: 1>, scalar_prefetch = 0 : i64, scratch_operands = 0 : i64, tpu.core_type = #tpu.core_type<tc>, window_params = [{transform_indices = @transform_0, window_bounds = array<i64: 2, 4, 72>}, {pipeline_mode = #tpu.pipeline_mode<synchronous>, transform_indices = @transform_1, window_bounds = array<i64: 4, 4, 8, 72>}, {transform_indices = @transform_2, window_bounds = array<i64: 2, 32>}, {transform_indices = @transform_3, window_bounds = array<i64: 2, 4>}]} {
    %c0 = arith.constant 0 : index
    %c0_0 = arith.constant 0 : index
    %c0_1 = arith.constant 0 : index
    %0 = vector.load %arg1[%c0, %c0_0, %c0_1] : memref<2x4x72xf32, #tpu.memory_space<vmem>>, vector<2x4x72xf32>
    %1 = arith.mulf %0, %0 : vector<2x4x72xf32>
    %cst = arith.constant dense<0.000000e+00> : vector<2x72xf32>
    %2 = vector.multi_reduction <add>, %1, %cst [1] : vector<2x4x72xf32> to vector<2x72xf32>
    %cst_2 = arith.constant 1.000000e+00 : f32
    %3 = vector.broadcast %cst_2 : f32 to vector<2x72xf32>
    %4 = arith.addf %3, %2 : vector<2x72xf32>
    %5 = tpu.reciprocal %4 {approx = true} : vector<2x72xf32> -> vector<2x72xf32>
    %6 = arith.mulf %2, %5 : vector<2x72xf32>
    %cst_3 = arith.constant 9.99999993E-9 : f32
    %7 = vector.broadcast %cst_3 : f32 to vector<2x72xf32>
    %8 = arith.addf %2, %7 : vector<2x72xf32>
    %9 = math.rsqrt %8 : vector<2x72xf32>
    %10 = arith.mulf %6, %9 : vector<2x72xf32>
    %11 = vector.extract_strided_slice %0 {offsets = [0, 0, 0], sizes = [2, 1, 72], strides = [1, 1, 1]} : vector<2x4x72xf32> to vector<2x1x72xf32>
    %12 = vector.shape_cast %11 : vector<2x1x72xf32> to vector<2x72xf32>
    %13 = vector.shape_cast %12 : vector<2x72xf32> to vector<2x1x1x72xf32>
    %c0_4 = arith.constant 0 : index
    %c0_5 = arith.constant 0 : index
    %c0_6 = arith.constant 0 : index
    %c0_7 = arith.constant 0 : index
    %14 = vector.load %arg2[%c0_4, %c0_5, %c0_6, %c0_7] : memref<4x4x8x72xf32, #tpu.memory_space<vmem>>, vector<1x4x8x72xf32>
    %15 = vector.shape_cast %14 : vector<1x4x8x72xf32> to vector<4x8x72xf32>
    %16 = vector.shape_cast %15 : vector<4x8x72xf32> to vector<1x4x8x72xf32>
    %17 = vector.broadcast %13 : vector<2x1x1x72xf32> to vector<2x4x8x72xf32>
    %18 = vector.broadcast %16 : vector<1x4x8x72xf32> to vector<2x4x8x72xf32>
    %19 = arith.mulf %17, %18 : vector<2x4x8x72xf32>
    %20 = vector.extract_strided_slice %0 {offsets = [0, 1, 0], sizes = [2, 1, 72], strides = [1, 1, 1]} : vector<2x4x72xf32> to vector<2x1x72xf32>
    %21 = vector.shape_cast %20 : vector<2x1x72xf32> to vector<2x72xf32>
    %22 = vector.shape_cast %21 : vector<2x72xf32> to vector<2x1x1x72xf32>
    %c1 = arith.constant 1 : index
    %c0_8 = arith.constant 0 : index
    %c0_9 = arith.constant 0 : index
    %c0_10 = arith.constant 0 : index
    %23 = vector.load %arg2[%c1, %c0_8, %c0_9, %c0_10] : memref<4x4x8x72xf32, #tpu.memory_space<vmem>>, vector<1x4x8x72xf32>
    %24 = vector.shape_cast %23 : vector<1x4x8x72xf32> to vector<4x8x72xf32>
    %25 = vector.shape_cast %24 : vector<4x8x72xf32> to vector<1x4x8x72xf32>
    %26 = vector.broadcast %22 : vector<2x1x1x72xf32> to vector<2x4x8x72xf32>
    %27 = vector.broadcast %25 : vector<1x4x8x72xf32> to vector<2x4x8x72xf32>
    %28 = arith.mulf %26, %27 : vector<2x4x8x72xf32>
    %29 = arith.addf %19, %28 : vector<2x4x8x72xf32>
    %30 = vector.extract_strided_slice %0 {offsets = [0, 2, 0], sizes = [2, 1, 72], strides = [1, 1, 1]} : vector<2x4x72xf32> to vector<2x1x72xf32>
    %31 = vector.shape_cast %30 : vector<2x1x72xf32> to vector<2x72xf32>
    %32 = vector.shape_cast %31 : vector<2x72xf32> to vector<2x1x1x72xf32>
    %c2 = arith.constant 2 : index
    %c0_11 = arith.constant 0 : index
    %c0_12 = arith.constant 0 : index
    %c0_13 = arith.constant 0 : index
    %33 = vector.load %arg2[%c2, %c0_11, %c0_12, %c0_13] : memref<4x4x8x72xf32, #tpu.memory_space<vmem>>, vector<1x4x8x72xf32>
    %34 = vector.shape_cast %33 : vector<1x4x8x72xf32> to vector<4x8x72xf32>
    %35 = vector.shape_cast %34 : vector<4x8x72xf32> to vector<1x4x8x72xf32>
    %36 = vector.broadcast %32 : vector<2x1x1x72xf32> to vector<2x4x8x72xf32>
    %37 = vector.broadcast %35 : vector<1x4x8x72xf32> to vector<2x4x8x72xf32>
    %38 = arith.mulf %36, %37 : vector<2x4x8x72xf32>
    %39 = arith.addf %29, %38 : vector<2x4x8x72xf32>
    %40 = vector.extract_strided_slice %0 {offsets = [0, 3, 0], sizes = [2, 1, 72], strides = [1, 1, 1]} : vector<2x4x72xf32> to vector<2x1x72xf32>
    %41 = vector.shape_cast %40 : vector<2x1x72xf32> to vector<2x72xf32>
    %42 = vector.shape_cast %41 : vector<2x72xf32> to vector<2x1x1x72xf32>
    %c3 = arith.constant 3 : index
    %c0_14 = arith.constant 0 : index
    %c0_15 = arith.constant 0 : index
    %c0_16 = arith.constant 0 : index
    %43 = vector.load %arg2[%c3, %c0_14, %c0_15, %c0_16] : memref<4x4x8x72xf32, #tpu.memory_space<vmem>>, vector<1x4x8x72xf32>
    %44 = vector.shape_cast %43 : vector<1x4x8x72xf32> to vector<4x8x72xf32>
    %45 = vector.shape_cast %44 : vector<4x8x72xf32> to vector<1x4x8x72xf32>
    %46 = vector.broadcast %42 : vector<2x1x1x72xf32> to vector<2x4x8x72xf32>
    %47 = vector.broadcast %45 : vector<1x4x8x72xf32> to vector<2x4x8x72xf32>
    %48 = arith.mulf %46, %47 : vector<2x4x8x72xf32>
    %49 = arith.addf %39, %48 : vector<2x4x8x72xf32>
    %50 = vector.shape_cast %10 : vector<2x72xf32> to vector<2x1x1x72xf32>
    %51 = vector.broadcast %50 : vector<2x1x1x72xf32> to vector<2x4x8x72xf32>
    %52 = arith.mulf %49, %51 : vector<2x4x8x72xf32>
    %53 = vector.shape_cast %52 : vector<2x4x8x72xf32> to vector<8x8x72xf32>
    %cst_17 = arith.constant 0.000000e+00 : f32
    %54 = vector.broadcast %cst_17 : f32 to vector<2x4x72xf32>
    %cst_18 = arith.constant dense<0xFF800000> : vector<2x72xf32>
    %55 = vector.multi_reduction <maximumf>, %54, %cst_18 [1] : vector<2x4x72xf32> to vector<2x72xf32>
    %56 = vector.shape_cast %55 : vector<2x72xf32> to vector<2x1x72xf32>
    %57 = vector.broadcast %56 : vector<2x1x72xf32> to vector<2x4x72xf32>
    %58 = arith.subf %54, %57 : vector<2x4x72xf32>
    %59 = math.exp %58 : vector<2x4x72xf32>
    %cst_19 = arith.constant dense<0.000000e+00> : vector<2x72xf32>
    %60 = vector.multi_reduction <add>, %59, %cst_19 [1] : vector<2x4x72xf32> to vector<2x72xf32>
    %61 = vector.shape_cast %60 : vector<2x72xf32> to vector<2x1x72xf32>
    %62 = tpu.reciprocal %61 {approx = true} : vector<2x1x72xf32> -> vector<2x1x72xf32>
    %63 = vector.broadcast %62 : vector<2x1x72xf32> to vector<2x4x72xf32>
    %64 = arith.mulf %59, %63 : vector<2x4x72xf32>
    %65 = vector.shape_cast %64 : vector<2x4x72xf32> to vector<8x1x72xf32>
    %cst_20 = arith.constant dense<0.000000e+00> : vector<8x8x1xf32>
    %66 = tpu.matmul %53, %65, %cst_20 {dimension_numbers = #tpu.dot_dimension_numbers<[2], [2], [1], [1], [0, 0, 0, 1, 1, 1], [0], [0]>} : vector<8x8x72xf32>, vector<8x1x72xf32>, vector<8x8x1xf32> -> vector<8x8x1xf32>
    %67 = vector.shape_cast %66 : vector<8x8x1xf32> to vector<8x8xf32>
    %68 = arith.mulf %67, %67 : vector<8x8xf32>
    %cst_21 = arith.constant dense<0.000000e+00> : vector<8xf32>
    %69 = vector.multi_reduction <add>, %68, %cst_21 [1] : vector<8x8xf32> to vector<8xf32>
    %70 = vector.shape_cast %69 : vector<8xf32> to vector<8x1xf32>
    %cst_22 = arith.constant 1.000000e+00 : f32
    %71 = vector.broadcast %cst_22 : f32 to vector<8x1xf32>
    %72 = arith.addf %71, %70 : vector<8x1xf32>
    %73 = tpu.reciprocal %72 {approx = true} : vector<8x1xf32> -> vector<8x1xf32>
    %74 = arith.mulf %70, %73 : vector<8x1xf32>
    %cst_23 = arith.constant 9.99999993E-9 : f32
    %75 = vector.broadcast %cst_23 : f32 to vector<8x1xf32>
    %76 = arith.addf %70, %75 : vector<8x1xf32>
    %77 = math.rsqrt %76 : vector<8x1xf32>
    %78 = arith.mulf %74, %77 : vector<8x1xf32>
    %79 = vector.broadcast %78 : vector<8x1xf32> to vector<8x8xf32>
    %80 = arith.mulf %67, %79 : vector<8x8xf32>
    %81 = vector.shape_cast %80 : vector<8x8xf32> to vector<8x8x1xf32>
    %82 = vector.broadcast %81 : vector<8x8x1xf32> to vector<8x8x72xf32>
    %83 = arith.mulf %53, %82 : vector<8x8x72xf32>
    %cst_24 = arith.constant dense<0.000000e+00> : vector<8x72xf32>
    %84 = vector.multi_reduction <add>, %83, %cst_24 [1] : vector<8x8x72xf32> to vector<8x72xf32>
    %85 = vector.shape_cast %84 : vector<8x72xf32> to vector<2x4x72xf32>
    %86 = arith.addf %54, %85 : vector<2x4x72xf32>
    %cst_25 = arith.constant dense<0xFF800000> : vector<2x72xf32>
    %87 = vector.multi_reduction <maximumf>, %86, %cst_25 [1] : vector<2x4x72xf32> to vector<2x72xf32>
    %88 = vector.shape_cast %87 : vector<2x72xf32> to vector<2x1x72xf32>
    %89 = vector.broadcast %88 : vector<2x1x72xf32> to vector<2x4x72xf32>
    %90 = arith.subf %86, %89 : vector<2x4x72xf32>
    %91 = math.exp %90 : vector<2x4x72xf32>
    %cst_26 = arith.constant dense<0.000000e+00> : vector<2x72xf32>
    %92 = vector.multi_reduction <add>, %91, %cst_26 [1] : vector<2x4x72xf32> to vector<2x72xf32>
    %93 = vector.shape_cast %92 : vector<2x72xf32> to vector<2x1x72xf32>
    %94 = tpu.reciprocal %93 {approx = true} : vector<2x1x72xf32> -> vector<2x1x72xf32>
    %95 = vector.broadcast %94 : vector<2x1x72xf32> to vector<2x4x72xf32>
    %96 = arith.mulf %91, %95 : vector<2x4x72xf32>
    %97 = vector.shape_cast %96 : vector<2x4x72xf32> to vector<8x1x72xf32>
    %cst_27 = arith.constant dense<0.000000e+00> : vector<8x8x1xf32>
    %98 = tpu.matmul %53, %97, %cst_27 {dimension_numbers = #tpu.dot_dimension_numbers<[2], [2], [1], [1], [0, 0, 0, 1, 1, 1], [0], [0]>} : vector<8x8x72xf32>, vector<8x1x72xf32>, vector<8x8x1xf32> -> vector<8x8x1xf32>
    %99 = vector.shape_cast %98 : vector<8x8x1xf32> to vector<8x8xf32>
    %100 = arith.mulf %99, %99 : vector<8x8xf32>
    %cst_28 = arith.constant dense<0.000000e+00> : vector<8xf32>
    %101 = vector.multi_reduction <add>, %100, %cst_28 [1] : vector<8x8xf32> to vector<8xf32>
    %102 = vector.shape_cast %101 : vector<8xf32> to vector<8x1xf32>
    %cst_29 = arith.constant 1.000000e+00 : f32
    %103 = vector.broadcast %cst_29 : f32 to vector<8x1xf32>
    %104 = arith.addf %103, %102 : vector<8x1xf32>
    %105 = tpu.reciprocal %104 {approx = true} : vector<8x1xf32> -> vector<8x1xf32>
    %106 = arith.mulf %102, %105 : vector<8x1xf32>
    %cst_30 = arith.constant 9.99999993E-9 : f32
    %107 = vector.broadcast %cst_30 : f32 to vector<8x1xf32>
    %108 = arith.addf %102, %107 : vector<8x1xf32>
    %109 = math.rsqrt %108 : vector<8x1xf32>
    %110 = arith.mulf %106, %109 : vector<8x1xf32>
    %111 = vector.broadcast %110 : vector<8x1xf32> to vector<8x8xf32>
    %112 = arith.mulf %99, %111 : vector<8x8xf32>
    %113 = vector.shape_cast %112 : vector<8x8xf32> to vector<8x8x1xf32>
    %114 = vector.broadcast %113 : vector<8x8x1xf32> to vector<8x8x72xf32>
    %115 = arith.mulf %53, %114 : vector<8x8x72xf32>
    %cst_31 = arith.constant dense<0.000000e+00> : vector<8x72xf32>
    %116 = vector.multi_reduction <add>, %115, %cst_31 [1] : vector<8x8x72xf32> to vector<8x72xf32>
    %117 = vector.shape_cast %116 : vector<8x72xf32> to vector<2x4x72xf32>
    %118 = arith.addf %86, %117 : vector<2x4x72xf32>
    %cst_32 = arith.constant dense<0xFF800000> : vector<2x72xf32>
    %119 = vector.multi_reduction <maximumf>, %118, %cst_32 [1] : vector<2x4x72xf32> to vector<2x72xf32>
    %120 = vector.shape_cast %119 : vector<2x72xf32> to vector<2x1x72xf32>
    %121 = vector.broadcast %120 : vector<2x1x72xf32> to vector<2x4x72xf32>
    %122 = arith.subf %118, %121 : vector<2x4x72xf32>
    %123 = math.exp %122 : vector<2x4x72xf32>
    %cst_33 = arith.constant dense<0.000000e+00> : vector<2x72xf32>
    %124 = vector.multi_reduction <add>, %123, %cst_33 [1] : vector<2x4x72xf32> to vector<2x72xf32>
    %125 = vector.shape_cast %124 : vector<2x72xf32> to vector<2x1x72xf32>
    %126 = tpu.reciprocal %125 {approx = true} : vector<2x1x72xf32> -> vector<2x1x72xf32>
    %127 = vector.broadcast %126 : vector<2x1x72xf32> to vector<2x4x72xf32>
    %128 = arith.mulf %123, %127 : vector<2x4x72xf32>
    %129 = vector.shape_cast %128 : vector<2x4x72xf32> to vector<8x1x72xf32>
    %cst_34 = arith.constant dense<0.000000e+00> : vector<8x8x1xf32>
    %130 = tpu.matmul %53, %129, %cst_34 {dimension_numbers = #tpu.dot_dimension_numbers<[2], [2], [1], [1], [0, 0, 0, 1, 1, 1], [0], [0]>} : vector<8x8x72xf32>, vector<8x1x72xf32>, vector<8x8x1xf32> -> vector<8x8x1xf32>
    %131 = vector.shape_cast %130 : vector<8x8x1xf32> to vector<8x8xf32>
    %132 = arith.mulf %131, %131 : vector<8x8xf32>
    %cst_35 = arith.constant dense<0.000000e+00> : vector<8xf32>
    %133 = vector.multi_reduction <add>, %132, %cst_35 [1] : vector<8x8xf32> to vector<8xf32>
    %134 = vector.shape_cast %133 : vector<8xf32> to vector<8x1xf32>
    %cst_36 = arith.constant 1.000000e+00 : f32
    %135 = vector.broadcast %cst_36 : f32 to vector<8x1xf32>
    %136 = arith.addf %135, %134 : vector<8x1xf32>
    %137 = tpu.reciprocal %136 {approx = true} : vector<8x1xf32> -> vector<8x1xf32>
    %138 = arith.mulf %134, %137 : vector<8x1xf32>
    %cst_37 = arith.constant 9.99999993E-9 : f32
    %139 = vector.broadcast %cst_37 : f32 to vector<8x1xf32>
    %140 = arith.addf %134, %139 : vector<8x1xf32>
    %141 = math.rsqrt %140 : vector<8x1xf32>
    %142 = arith.mulf %138, %141 : vector<8x1xf32>
    %143 = vector.broadcast %142 : vector<8x1xf32> to vector<8x8xf32>
    %144 = arith.mulf %131, %143 : vector<8x8xf32>
    %145 = vector.shape_cast %144 : vector<8x8xf32> to vector<2x4x8xf32>
    %146 = arith.mulf %145, %145 : vector<2x4x8xf32>
    %cst_38 = arith.constant dense<0.000000e+00> : vector<2x4xf32>
    %147 = vector.multi_reduction <add>, %146, %cst_38 [2] : vector<2x4x8xf32> to vector<2x4xf32>
    %148 = math.sqrt %147 : vector<2x4xf32>
    %c0_39 = arith.constant 0 : index
    %c0_40 = arith.constant 0 : index
    %149 = vector.load %arg4[%c0_39, %c0_40] : memref<2x4xf32, #tpu.memory_space<vmem>>, vector<2x4xf32>
    tpu.vector_store %arg4[%c0_39, %c0_40], %148 {strides = array<i32>} : memref<2x4xf32, #tpu.memory_space<vmem>>, vector<2x4xf32>,
    %150 = vector.shape_cast %145 : vector<2x4x8xf32> to vector<2x32xf32>
    %c0_41 = arith.constant 0 : index
    %c0_42 = arith.constant 0 : index
    %151 = vector.load %arg3[%c0_41, %c0_42] : memref<2x32xf32, #tpu.memory_space<vmem>>, vector<2x32xf32>
    tpu.vector_store %arg3[%c0_41, %c0_42], %150 {strides = array<i32>} : memref<2x32xf32, #tpu.memory_space<vmem>>, vector<2x32xf32>,
    return
  }
  func.func @transform_0(%arg0: i32) -> (i32, i32, i32) {
    %c0_i32 = arith.constant 0 : i32
    %c0_i32_0 = arith.constant 0 : i32
    %c0_i32_1 = arith.constant 0 : i32
    return %arg0, %c0_i32, %c0_i32_0 : i32, i32, i32
  }
  func.func @transform_1(%arg0: i32) -> (i32, i32, i32, i32) {
    %c0_i32 = arith.constant 0 : i32
    %c0_i32_0 = arith.constant 0 : i32
    %c0_i32_1 = arith.constant 0 : i32
    %c0_i32_2 = arith.constant 0 : i32
    %c0_i32_3 = arith.constant 0 : i32
    return %c0_i32, %c0_i32_0, %c0_i32_1, %c0_i32_2 : i32, i32, i32, i32
  }
  func.func @transform_2(%arg0: i32) -> (i32, i32) {
    %c0_i32 = arith.constant 0 : i32
    %c0_i32_0 = arith.constant 0 : i32
    return %arg0, %c0_i32 : i32, i32
  }
  func.func @transform_3(%arg0: i32) -> (i32, i32) {
    %c0_i32 = arith.constant 0 : i32
    %c0_i32_0 = arith.constant 0 : i32
    return %arg0, %c0_i32 : i32, i32
  }
}

module attributes {stable_mosaic.version = 11 : i64} {
  func.func @_dense_kernel(%arg0: i32, %arg1: i32, %arg2: memref<2x32xf32, #tpu.memory_space<vmem>>, %arg3: memref<32x512xf32, #tpu.memory_space<vmem>>, %arg4: memref<1x512xf32, #tpu.memory_space<vmem>>, %arg5: memref<2x512xf32, #tpu.memory_space<vmem>>) attributes {dimension_semantics = [#tpu.dimension_semantics<parallel>, #tpu.dimension_semantics<parallel>], iteration_bounds = array<i64: 1, 1>, scalar_prefetch = 0 : i64, scratch_operands = 0 : i64, tpu.core_type = #tpu.core_type<tc>, window_params = [{transform_indices = @transform_0, window_bounds = array<i64: 2, 32>}, {transform_indices = @transform_1, window_bounds = array<i64: 32, 512>}, {transform_indices = @transform_2, window_bounds = array<i64: 1, 512>}, {transform_indices = @transform_3, window_bounds = array<i64: 2, 512>}]} {
    %c0 = arith.constant 0 : index
    %c0_0 = arith.constant 0 : index
    %0 = vector.load %arg2[%c0, %c0_0] : memref<2x32xf32, #tpu.memory_space<vmem>>, vector<2x32xf32>
    %c0_1 = arith.constant 0 : index
    %c0_2 = arith.constant 0 : index
    %1 = vector.load %arg3[%c0_1, %c0_2] : memref<32x512xf32, #tpu.memory_space<vmem>>, vector<32x512xf32>
    %cst = arith.constant dense<0.000000e+00> : vector<2x512xf32>
    %2 = tpu.matmul %0, %1, %cst {dimension_numbers = #tpu.dot_dimension_numbers<[1], [0], [0], [1], [0, 0, 1, 1], [], []>} : vector<2x32xf32>, vector<32x512xf32>, vector<2x512xf32> -> vector<2x512xf32>
    %c0_3 = arith.constant 0 : index
    %c0_4 = arith.constant 0 : index
    %3 = vector.load %arg4[%c0_3, %c0_4] : memref<1x512xf32, #tpu.memory_space<vmem>>, vector<1x512xf32>
    %4 = vector.broadcast %3 : vector<1x512xf32> to vector<2x512xf32>
    %5 = arith.addf %2, %4 : vector<2x512xf32>
    %cst_5 = arith.constant 0.000000e+00 : f32
    %6 = vector.broadcast %cst_5 : f32 to vector<2x512xf32>
    %7 = arith.maximumf %5, %6 : vector<2x512xf32>
    %c0_6 = arith.constant 0 : index
    %c0_7 = arith.constant 0 : index
    %8 = vector.load %arg5[%c0_6, %c0_7] : memref<2x512xf32, #tpu.memory_space<vmem>>, vector<2x512xf32>
    tpu.vector_store %arg5[%c0_6, %c0_7], %7 {strides = array<i32>} : memref<2x512xf32, #tpu.memory_space<vmem>>, vector<2x512xf32>,
    return
  }
  func.func @transform_0(%arg0: i32, %arg1: i32) -> (i32, i32) {
    %c0_i32 = arith.constant 0 : i32
    %c0_i32_0 = arith.constant 0 : i32
    return %arg0, %c0_i32 : i32, i32
  }
  func.func @transform_1(%arg0: i32, %arg1: i32) -> (i32, i32) {
    %c0_i32 = arith.constant 0 : i32
    %c0_i32_0 = arith.constant 0 : i32
    return %c0_i32, %arg1 : i32, i32
  }
  func.func @transform_2(%arg0: i32, %arg1: i32) -> (i32, i32) {
    %c0_i32 = arith.constant 0 : i32
    %c0_i32_0 = arith.constant 0 : i32
    return %c0_i32, %arg1 : i32, i32
  }
  func.func @transform_3(%arg0: i32, %arg1: i32) -> (i32, i32) {
    %c0_i32 = arith.constant 0 : i32
    return %arg0, %arg1 : i32, i32
  }
}

module attributes {stable_mosaic.version = 11 : i64} {
  func.func @_dense_kernel(%arg0: i32, %arg1: i32, %arg2: memref<2x512xf32, #tpu.memory_space<vmem>>, %arg3: memref<512x512xf32, #tpu.memory_space<vmem>>, %arg4: memref<1x512xf32, #tpu.memory_space<vmem>>, %arg5: memref<2x512xf32, #tpu.memory_space<vmem>>) attributes {dimension_semantics = [#tpu.dimension_semantics<parallel>, #tpu.dimension_semantics<parallel>], iteration_bounds = array<i64: 1, 2>, scalar_prefetch = 0 : i64, scratch_operands = 0 : i64, tpu.core_type = #tpu.core_type<tc>, window_params = [{transform_indices = @transform_0, window_bounds = array<i64: 2, 512>}, {transform_indices = @transform_1, window_bounds = array<i64: 512, 512>}, {transform_indices = @transform_2, window_bounds = array<i64: 1, 512>}, {transform_indices = @transform_3, window_bounds = array<i64: 2, 512>}]} {
    %c0 = arith.constant 0 : index
    %c0_0 = arith.constant 0 : index
    %0 = vector.load %arg2[%c0, %c0_0] : memref<2x512xf32, #tpu.memory_space<vmem>>, vector<2x512xf32>
    %c0_1 = arith.constant 0 : index
    %c0_2 = arith.constant 0 : index
    %1 = vector.load %arg3[%c0_1, %c0_2] : memref<512x512xf32, #tpu.memory_space<vmem>>, vector<512x512xf32>
    %cst = arith.constant dense<0.000000e+00> : vector<2x512xf32>
    %2 = tpu.matmul %0, %1, %cst {dimension_numbers = #tpu.dot_dimension_numbers<[1], [0], [0], [1], [0, 0, 1, 1], [], []>} : vector<2x512xf32>, vector<512x512xf32>, vector<2x512xf32> -> vector<2x512xf32>
    %c0_3 = arith.constant 0 : index
    %c0_4 = arith.constant 0 : index
    %3 = vector.load %arg4[%c0_3, %c0_4] : memref<1x512xf32, #tpu.memory_space<vmem>>, vector<1x512xf32>
    %4 = vector.broadcast %3 : vector<1x512xf32> to vector<2x512xf32>
    %5 = arith.addf %2, %4 : vector<2x512xf32>
    %cst_5 = arith.constant 0.000000e+00 : f32
    %6 = vector.broadcast %cst_5 : f32 to vector<2x512xf32>
    %7 = arith.maximumf %5, %6 : vector<2x512xf32>
    %c0_6 = arith.constant 0 : index
    %c0_7 = arith.constant 0 : index
    %8 = vector.load %arg5[%c0_6, %c0_7] : memref<2x512xf32, #tpu.memory_space<vmem>>, vector<2x512xf32>
    tpu.vector_store %arg5[%c0_6, %c0_7], %7 {strides = array<i32>} : memref<2x512xf32, #tpu.memory_space<vmem>>, vector<2x512xf32>,
    return
  }
  func.func @transform_0(%arg0: i32, %arg1: i32) -> (i32, i32) {
    %c0_i32 = arith.constant 0 : i32
    %c0_i32_0 = arith.constant 0 : i32
    return %arg0, %c0_i32 : i32, i32
  }
  func.func @transform_1(%arg0: i32, %arg1: i32) -> (i32, i32) {
    %c0_i32 = arith.constant 0 : i32
    %c0_i32_0 = arith.constant 0 : i32
    return %c0_i32, %arg1 : i32, i32
  }
  func.func @transform_2(%arg0: i32, %arg1: i32) -> (i32, i32) {
    %c0_i32 = arith.constant 0 : i32
    %c0_i32_0 = arith.constant 0 : i32
    return %c0_i32, %arg1 : i32, i32
  }
  func.func @transform_3(%arg0: i32, %arg1: i32) -> (i32, i32) {
    %c0_i32 = arith.constant 0 : i32
    return %arg0, %arg1 : i32, i32
  }
}

module attributes {stable_mosaic.version = 11 : i64} {
  func.func @_dense_kernel(%arg0: i32, %arg1: i32, %arg2: memref<2x1024xf32, #tpu.memory_space<vmem>>, %arg3: memref<1024x400xf32, #tpu.memory_space<vmem>>, %arg4: memref<1x400xf32, #tpu.memory_space<vmem>>, %arg5: memref<2x400xf32, #tpu.memory_space<vmem>>) attributes {dimension_semantics = [#tpu.dimension_semantics<parallel>, #tpu.dimension_semantics<parallel>], iteration_bounds = array<i64: 1, 1>, scalar_prefetch = 0 : i64, scratch_operands = 0 : i64, tpu.core_type = #tpu.core_type<tc>, window_params = [{transform_indices = @transform_0, window_bounds = array<i64: 2, 1024>}, {transform_indices = @transform_1, window_bounds = array<i64: 1024, 400>}, {transform_indices = @transform_2, window_bounds = array<i64: 1, 400>}, {transform_indices = @transform_3, window_bounds = array<i64: 2, 400>}]} {
    %c0 = arith.constant 0 : index
    %c0_0 = arith.constant 0 : index
    %0 = vector.load %arg2[%c0, %c0_0] : memref<2x1024xf32, #tpu.memory_space<vmem>>, vector<2x1024xf32>
    %c0_1 = arith.constant 0 : index
    %c0_2 = arith.constant 0 : index
    %1 = vector.load %arg3[%c0_1, %c0_2] : memref<1024x400xf32, #tpu.memory_space<vmem>>, vector<1024x400xf32>
    %cst = arith.constant dense<0.000000e+00> : vector<2x400xf32>
    %2 = tpu.matmul %0, %1, %cst {dimension_numbers = #tpu.dot_dimension_numbers<[1], [0], [0], [1], [0, 0, 1, 1], [], []>} : vector<2x1024xf32>, vector<1024x400xf32>, vector<2x400xf32> -> vector<2x400xf32>
    %c0_3 = arith.constant 0 : index
    %c0_4 = arith.constant 0 : index
    %3 = vector.load %arg4[%c0_3, %c0_4] : memref<1x400xf32, #tpu.memory_space<vmem>>, vector<1x400xf32>
    %4 = vector.broadcast %3 : vector<1x400xf32> to vector<2x400xf32>
    %5 = arith.addf %2, %4 : vector<2x400xf32>
    %6 = arith.negf %5 : vector<2x400xf32>
    %7 = math.exp %6 : vector<2x400xf32>
    %cst_5 = arith.constant 1.000000e+00 : f32
    %8 = vector.broadcast %cst_5 : f32 to vector<2x400xf32>
    %9 = arith.addf %8, %7 : vector<2x400xf32>
    %10 = arith.divf %8, %9 : vector<2x400xf32>
    %c0_6 = arith.constant 0 : index
    %c0_7 = arith.constant 0 : index
    %11 = vector.load %arg5[%c0_6, %c0_7] : memref<2x400xf32, #tpu.memory_space<vmem>>, vector<2x400xf32>
    tpu.vector_store %arg5[%c0_6, %c0_7], %10 {strides = array<i32>} : memref<2x400xf32, #tpu.memory_space<vmem>>, vector<2x400xf32>,
    return
  }
  func.func @transform_0(%arg0: i32, %arg1: i32) -> (i32, i32) {
    %c0_i32 = arith.constant 0 : i32
    %c0_i32_0 = arith.constant 0 : i32
    return %arg0, %c0_i32 : i32, i32
  }
  func.func @transform_1(%arg0: i32, %arg1: i32) -> (i32, i32) {
    %c0_i32 = arith.constant 0 : i32
    %c0_i32_0 = arith.constant 0 : i32
    return %c0_i32, %arg1 : i32, i32
  }
  func.func @transform_2(%arg0: i32, %arg1: i32) -> (i32, i32) {
    %c0_i32 = arith.constant 0 : i32
    %c0_i32_0 = arith.constant 0 : i32
    return %c0_i32, %arg1 : i32, i32
  }
  func.func @transform_3(%arg0: i32, %arg1: i32) -> (i32, i32) {
    %c0_i32 = arith.constant 0 : i32
    return %arg0, %arg1 : i32, i32
  }
}

</mosaic_0001>

<llo_original>
// kernel: capsule_network_forward.6
$region0: #{capsule_network_forward.6}
  #allocation0 [shape = 'u32[]', space=smem, size = 0x4, offset = 0x4, fixed_abs, tag = 'smem constant byte address 0x4 - core index']
  #allocation1 [shape = 'u32[72,128]{1,0:T(1,128)}', space=vmem, size = 0x9000, scoped, tag = 'internal scratch']
  %s0 = inlined_call_operand.vmem [shape: f32[512,32], index: 0, kind: input, shape index: {}]
  %s1 = inlined_call_operand.vmem [shape: f32[32,8], index: 1, kind: input, shape index: {}]
  %s2 = inlined_call_operand.vmem [shape: f32[1,8], index: 2, kind: input, shape index: {}]
  %s3 = inlined_call_operand.vmem [shape: f32[512,8], index: 3, kind: output, shape index: {}]
  %s4 = sld [smem:[#allocation0]]
  $region45: #{capsule_network_forward.6} parent=0
    _
  %s6 = ssub.s32 1, %s4
  %s7 = scalar_select 0, %s6, %s4
  loop: start=0, step=1, limit=4
  $region2: #{capsule_network_forward.6} parent=0 // loop_pre_header
    _
  $region3: #{capsule_network_forward.6} parent=0 // loop_header
    %s9 = sphi 0, %s13
    %p10 = scmp.ge.s32.totalorder %s9, 4
    %s16 = sphi 0, %s28
    %s17 = sphi 0, %s24
    %s18 = sphi 0, %s16
    %s19 = sphi 0, %s17
    %s20 = sphi 0, %s18
    %s21 = sphi 0, %s19
    %s31 = sphi 0, %s33
    %s34 = sphi 0, %s31
    %s35 = sphi 0, %s34
    %s51 = sphi 0, %s35
    %s57 = sphi 0, %s59
    %s60 = sphi 0, %s57
    %s61 = sphi 0, %s60
    %s77 = sphi 0, %s61
    %s83 = sphi 0, %s85
    %s86 = sphi 0, %s83
    %s87 = sphi 0, %s86
    %s103 = sphi 0, %s87
    %s111 = sphi 0, %s113
    %s114 = sphi 0, %s111
    %s115 = sphi 0, %s114
    %s131 = sphi 0, %s115
  $region4: #{capsule_network_forward.6} parent=0 // loop_header_branch
    %12 = sbr.rel (%p10) target = $region8
  $region5: #{capsule_network_forward.6} parent=0 // loop_body
    %s14 = ssub.s32 %s9, 1
    %s15 = ssub.s32 %s9, 2
    %s22 = sadd.s32 1, %s17
    %p23 = scmp.ge.s32.totalorder %s22, 1
    %s24 = scalar_select %p23, 0, %s22
    %s25 = sadd.s32 1, %s16
    %s26 = scalar_select %p23, %s25, %s16
    %p27 = scmp.ge.s32.totalorder %s26, 2
    %s28 = scalar_select %p27, 0, %s26
    %s29 = ssub.s32 %s16, %s28
    %p30 = scmp.eq.s32.totalorder %s29, 0
    %s32 = sadd.s32 %s31, 1
    %s33 = scalar_select %p30, %s31, %s32
    %p36 = pneg %p30
    %p37 = scmp.eq.s32.totalorder %s9, 1
    %p38 = por %p36, %p37
    %p39 = scmp.ne.s32.totalorder %s31, %s34
    %p40 = scmp.eq.s32.totalorder %s9, 0
    %p41 = por %p39, %p40
    %p42 = scmp.ne.s32.totalorder %s31, %s34
    %p43 = scmp.eq.s32.totalorder %s14, 1
    %p44 = por %p42, %p43
    %p45 = scmp.ne.s32.totalorder %s34, %s35
    %p46 = scmp.eq.s32.totalorder %s14, 0
    %p47 = por %p45, %p46
    %p48 = scmp.ne.s32.totalorder %s34, %s35
    %p49 = scmp.eq.s32.totalorder %s15, 1
    %p50 = por %p48, %p49
    %p52 = scmp.ne.s32.totalorder %s35, %s51
    %p53 = scmp.eq.s32.totalorder %s15, 0
    %p54 = por %p52, %p53
    %s55 = ssub.s32 %s17, %s24
    %p56 = scmp.eq.s32.totalorder %s55, 0
    %s58 = sadd.s32 %s57, 1
    %s59 = scalar_select %p56, %s57, %s58
    %p62 = pneg %p56
    %p63 = scmp.eq.s32.totalorder %s9, 1
    %p64 = por %p62, %p63
    %p65 = scmp.ne.s32.totalorder %s57, %s60
    %p66 = scmp.eq.s32.totalorder %s9, 0
    %p67 = por %p65, %p66
    %p68 = scmp.ne.s32.totalorder %s57, %s60
    %p69 = scmp.eq.s32.totalorder %s14, 1
    %p70 = por %p68, %p69
    %p71 = scmp.ne.s32.totalorder %s60, %s61
    %p72 = scmp.eq.s32.totalorder %s14, 0
    %p73 = por %p71, %p72
    %p74 = scmp.ne.s32.totalorder %s60, %s61
    %p75 = scmp.eq.s32.totalorder %s15, 1
    %p76 = por %p74, %p75
    %p78 = scmp.ne.s32.totalorder %s61, %s77
    %p79 = scmp.eq.s32.totalorder %s15, 0
    %p80 = por %p78, %p79
    %s81 = ssub.s32 %s17, %s24
    %p82 = scmp.eq.s32.totalorder %s81, 0
    %s84 = sadd.s32 %s83, 1
    %s85 = scalar_select %p82, %s83, %s84
    %p88 = pneg %p82
    %p89 = scmp.eq.s32.totalorder %s9, 1
    %p90 = por %p88, %p89
    %p91 = scmp.ne.s32.totalorder %s83, %s86
    %p92 = scmp.eq.s32.totalorder %s9, 0
    %p93 = por %p91, %p92
    %p94 = scmp.ne.s32.totalorder %s83, %s86
    %p95 = scmp.eq.s32.totalorder %s14, 1
    %p96 = por %p94, %p95
    %p97 = scmp.ne.s32.totalorder %s86, %s87
    %p98 = scmp.eq.s32.totalorder %s14, 0
    %p99 = por %p97, %p98
    %p100 = scmp.ne.s32.totalorder %s86, %s87
    %p101 = scmp.eq.s32.totalorder %s15, 1
    %p102 = por %p100, %p101
    %p104 = scmp.ne.s32.totalorder %s87, %s103
    %p105 = scmp.eq.s32.totalorder %s15, 0
    %p106 = por %p104, %p105
    %s107 = ssub.s32 %s16, %s28
    %s108 = ssub.s32 %s17, %s24
    %s109 = sor.u32 %s107, %s108
    %p110 = scmp.eq.s32.totalorder %s109, 0
    %s112 = sadd.s32 %s111, 1
    %s113 = scalar_select %p110, %s111, %s112
    %p116 = pneg %p110
    %p117 = scmp.eq.s32.totalorder %s9, 1
    %p118 = por %p116, %p117
    %p119 = scmp.ne.s32.totalorder %s111, %s114
    %p120 = scmp.eq.s32.totalorder %s9, 0
    %p121 = por %p119, %p120
    %p122 = scmp.ne.s32.totalorder %s111, %s114
    %p123 = scmp.eq.s32.totalorder %s14, 1
    %p124 = por %p122, %p123
    %p125 = scmp.ne.s32.totalorder %s114, %s115
    %p126 = scmp.eq.s32.totalorder %s14, 0
    %p127 = por %p125, %p126
    %p128 = scmp.ne.s32.totalorder %s114, %s115
    %p129 = scmp.eq.s32.totalorder %s15, 1
    %p130 = por %p128, %p129
    %p132 = scmp.ne.s32.totalorder %s115, %s131
    %p133 = scmp.eq.s32.totalorder %s15, 0
    %p134 = por %p132, %p133
    %p135 = scmp.le.s32.totalorder 1, %s9
    %p136 = scmp.lt.s32.totalorder %s9, 3
    %p137 = pnand %p135, %p136
    %p138 = pneg %p137
    // Predicated region
    $region9: #{capsule_network_forward.6} parent=5 // pred_check
      _
    $region10: #{capsule_network_forward.6} parent=5 // pred_check_branch
      %140 = sbr.rel (%p137) target = $region12
    $region11: #{capsule_network_forward.6} parent=5 // pred_region
      %s141 = ssub.s32 %s9, 1
      // Predicated region
      $region13: #{capsule_network_forward.6} parent=11 // pred_check
        %p142 = pneg %p73
      $region14: #{capsule_network_forward.6} parent=11 // pred_check_branch
        %144 = sbr.rel (%p142) target = $region16
      $region15: #{capsule_network_forward.6} parent=11 // pred_region
        %p145 = scmp.lt.s32.totalorder %s19, 0
        %s146 = scalar_select %p145, %s19, 0
        %s147 = smul.addr %s146, 8
        %s148 = scalar_lea.vmem %s1, %s147
      $region16: #{capsule_network_forward.6} parent=11 // pred_fallthru
        _
      // Predicated region
      $region17: #{capsule_network_forward.6} parent=11 // pred_check
        %p149 = pneg %p99
      $region18: #{capsule_network_forward.6} parent=11 // pred_check_branch
        %151 = sbr.rel (%p149) target = $region20
      $region19: #{capsule_network_forward.6} parent=11 // pred_region
        %p152 = scmp.lt.s32.totalorder %s19, 0
        %s153 = scalar_select %p152, %s19, 0
        %s154 = scalar_lea.vmem %s2, %s153
      $region20: #{capsule_network_forward.6} parent=11 // pred_fallthru
        _
    $region12: #{capsule_network_forward.6} parent=5 // pred_fallthru
      _
    %p155 = scmp.lt.s32.totalorder %s9, 2
    // Predicated region
    $region21: #{capsule_network_forward.6} parent=5 // pred_check
      %p156 = pneg %p155
    $region22: #{capsule_network_forward.6} parent=5 // pred_check_branch
      %158 = sbr.rel (%p156) target = $region24
    $region23: #{capsule_network_forward.6} parent=5 // pred_region
      // Predicated region
      $region25: #{capsule_network_forward.6} parent=23 // pred_check
        %p159 = pneg %p41
      $region26: #{capsule_network_forward.6} parent=23 // pred_check_branch
        %161 = sbr.rel (%p159) target = $region28
      $region27: #{capsule_network_forward.6} parent=23 // pred_region
        %s162 = smul.u32 32, %s16
        %p163 = scmp.lt.s32.totalorder %s162, 63
        %s164 = scalar_select %p163, %s162, 63
        %s165 = smul.addr %s164, 8
        %s166 = scalar_lea.vmem %s0, %s165
        %s167 = smul.u32 32, %s16
      $region28: #{capsule_network_forward.6} parent=23 // pred_fallthru
        _
    $region24: #{capsule_network_forward.6} parent=5 // pred_fallthru
      _
    %p168 = scmp.le.s32.totalorder 1, %s9
    %p169 = scmp.lt.s32.totalorder %s9, 3
    %p170 = pnand %p168, %p169
    %p171 = pneg %p170
    // Predicated region
    $region29: #{capsule_network_forward.6} parent=5 // pred_check
      _
    $region30: #{capsule_network_forward.6} parent=5 // pred_check_branch
      %173 = sbr.rel (%p170) target = $region32
    $region31: #{capsule_network_forward.6} parent=5 // pred_region
      %s174 = ssub.s32 %s9, 1
      %s175 = smul.u32 32, %s18
      %p176 = scmp.lt.s32.totalorder %s175, 63
      %s177 = scalar_select %p176, %s175, 63
      %s178 = smul.addr %s177, 8
      %s179 = scalar_lea.vmem %s0, %s178
      %p180 = pneg %p47
      %p181 = pneg %p44
      %p182 = scmp.lt.s32.totalorder %s19, 0
      %s183 = scalar_select %p182, %s19, 0
      %s184 = smul.addr %s183, 8
      %s185 = scalar_lea.vmem %s1, %s184
      %p186 = pneg %p73
      %p187 = pneg %p70
      %p188 = scmp.lt.s32.totalorder %s19, 0
      %s189 = scalar_select %p188, %s19, 0
      %s190 = scalar_lea.vmem %s2, %s189
      %p191 = pneg %p99
      %p192 = pneg %p96
      %p193 = pneg %p127
      %p194 = pneg %p124
      %s195 = smul.u32 32, %s18
      %p196 = scmp.lt.s32.totalorder %s195, 63
      %s197 = scalar_select %p196, %s195, 63
      %p198 = scmp.lt.s32.totalorder %s19, 0
      %s199 = scalar_select %p198, %s19, 0
      %s200 = sadd.s32 %s199, %s197
      %s201 = smul.addr %s200, 8
      %s202 = scalar_lea.vmem %s3, %s201
      %s203 = smul.u32 32, %s18
      %p204 = scmp.lt.s32.totalorder %s203, 63
      %s205 = scalar_select %p204, %s203, 63
      %s206 = smul.addr %s205, 8
      %s207 = scalar_lea.vmem %s0, %s206
      %s208 = smul.u32 32, %s18
      %p209 = scmp.lt.s32.totalorder %s19, 0
      %s210 = scalar_select %p209, %s19, 0
      %s211 = smul.addr %s210, 8
      %s212 = scalar_lea.vmem %s1, %s211
      %p213 = scmp.lt.s32.totalorder %s19, 0
      %s214 = scalar_select %p213, %s19, 0
      %s215 = scalar_lea.vmem %s2, %s214
      %s216 = smul.u32 32, %s18
      %p217 = scmp.lt.s32.totalorder %s216, 63
      %s218 = scalar_select %p217, %s216, 63
      %p219 = scmp.lt.s32.totalorder %s19, 0
      %s220 = scalar_select %p219, %s19, 0
      %s221 = sadd.s32 %s220, %s218
      %s222 = smul.addr %s221, 8
      %s223 = scalar_lea.vmem %s3, %s222
      %s224 = smul.u32 32, %s18
      %v225 = vld [vmem:[%s207] sm:$0xff]
      %v226 = vld [vmem:[%s207 + $0x8] sm:$0xff]
      %v227 = vld [vmem:[%s207 + $0x10] sm:$0xff]
      %v228 = vld [vmem:[%s207 + $0x18] sm:$0xff]
      %v229 = vld [vmem:[%s207 + $0x20] sm:$0xff]
      %v230 = vld [vmem:[%s207 + $0x28] sm:$0xff]
      %v231 = vld [vmem:[%s207 + $0x30] sm:$0xff]
      %v232 = vld [vmem:[%s207 + $0x38] sm:$0xff]
      %v233 = vld [vmem:[%s207 + $0x40] sm:$0xff]
      %v234 = vld [vmem:[%s207 + $0x48] sm:$0xff]
      %v235 = vld [vmem:[%s207 + $0x50] sm:$0xff]
      %v236 = vld [vmem:[%s207 + $0x58] sm:$0xff]
      %v237 = vld [vmem:[%s207 + $0x60] sm:$0xff]
      %v238 = vld [vmem:[%s207 + $0x68] sm:$0xff]
      %v239 = vld [vmem:[%s207 + $0x70] sm:$0xff]
      %v240 = vld [vmem:[%s207 + $0x78] sm:$0xff]
      %v241 = vld [vmem:[%s207 + $0x80] sm:$0xff]
      %v242 = vld [vmem:[%s207 + $0x88] sm:$0xff]
      %v243 = vld [vmem:[%s207 + $0x90] sm:$0xff]
      %v244 = vld [vmem:[%s207 + $0x98] sm:$0xff]
      %v245 = vld [vmem:[%s207 + $0xa0] sm:$0xff]
      %v246 = vld [vmem:[%s207 + $0xa8] sm:$0xff]
      %v247 = vld [vmem:[%s207 + $0xb0] sm:$0xff]
      %v248 = vld [vmem:[%s207 + $0xb8] sm:$0xff]
      %v249 = vld [vmem:[%s207 + $0xc0] sm:$0xff]
      %v250 = vld [vmem:[%s207 + $0xc8] sm:$0xff]
      %v251 = vld [vmem:[%s207 + $0xd0] sm:$0xff]
      %v252 = vld [vmem:[%s207 + $0xd8] sm:$0xff]
      %v253 = vld [vmem:[%s207 + $0xe0] sm:$0xff]
      %v254 = vld [vmem:[%s207 + $0xe8] sm:$0xff]
      %v255 = vld [vmem:[%s207 + $0xf0] sm:$0xff]
      %v256 = vld [vmem:[%s207 + $0xf8] sm:$0xff]
      %v257 = vld [vmem:[%s212] sm:$0xff]
      %v258 = vld [vmem:[%s212 + $0x8] sm:$0xff]
      %v259 = vld [vmem:[%s212 + $0x10] sm:$0xff]
      %v260 = vld [vmem:[%s212 + $0x18] sm:$0xff]
      %v261 = vld [vmem:[%s215] sm:$0x1]
      %v263 = vperm.slane %v261, 0
      %vm265 = vcmask 261120
      %v267 = vsel %vm265, %v225, 0
      %v270 = vsel %vm265, %v226, 0
      %v273 = vsel %vm265, %v227, 0
      %v276 = vsel %vm265, %v228, 0
      %v279 = vsel %vm265, %v229, 0
      %v282 = vsel %vm265, %v230, 0
      %v285 = vsel %vm265, %v231, 0
      %v288 = vsel %vm265, %v232, 0
      %v291 = vsel %vm265, %v233, 0
      %v294 = vsel %vm265, %v234, 0
      %v297 = vsel %vm265, %v235, 0
      %v300 = vsel %vm265, %v236, 0
      %v303 = vsel %vm265, %v237, 0
      %v306 = vsel %vm265, %v238, 0
      %v309 = vsel %vm265, %v239, 0
      %v312 = vsel %vm265, %v240, 0
      %v315 = vsel %vm265, %v241, 0
      %v318 = vsel %vm265, %v242, 0
      %v321 = vsel %vm265, %v243, 0
      %v324 = vsel %vm265, %v244, 0
      %v327 = vsel %vm265, %v245, 0
      %v330 = vsel %vm265, %v246, 0
      %v333 = vsel %vm265, %v247, 0
      %v336 = vsel %vm265, %v248, 0
      %v339 = vsel %vm265, %v249, 0
      %v342 = vsel %vm265, %v250, 0
      %v345 = vsel %vm265, %v251, 0
      %v348 = vsel %vm265, %v252, 0
      %v351 = vsel %vm265, %v253, 0
      %v354 = vsel %vm265, %v254, 0
      %v357 = vsel %vm265, %v255, 0
      %v360 = vsel %vm265, %v256, 0
      %362 = vmatpush.msra.mxu0 0.0
      %363 = vmatpush.msra.mxu0 0.0
      %364 = vmatpush.msra.mxu0 0.0
      %365 = vmatpush.msra.mxu0 0.0
      %366 = vmatpush.msra.mxu0 0.0
      %367 = vmatpush.msra.mxu0 0.0
      %368 = vmatpush.msra.mxu0 0.0
      %369 = vmatpush.msra.mxu0 0.0
      %370 = vmatpush.msra.mxu0 0.0
      %371 = vmatpush.msra.mxu0 0.0
      %372 = vmatpush.msra.mxu0 0.0
      %373 = vmatpush.msra.mxu0 0.0
      %374 = vmatpush.msra.mxu0 %v260
      %375 = vmatpush.msra.mxu0 %v259
      %376 = vmatpush.msra.mxu0 %v258
      %377 = vmatpush.msra.mxu0 %v257
      %378 = vmatmul.f32.gmra.mxu0 %v267
      %v379 = vpop.f32.mrf.mxu0
      %v380 = vadd.f32 %v263, %v379
      %381 = vmatmul.f32.gmra.mxu0 %v270
      %v382 = vpop.f32.mrf.mxu0
      %v383 = vadd.f32 %v263, %v382
      %384 = vmatmul.f32.gmra.mxu0 %v273
      %v385 = vpop.f32.mrf.mxu0
      %v386 = vadd.f32 %v263, %v385
      %387 = vmatmul.f32.gmra.mxu0 %v276
      %v388 = vpop.f32.mrf.mxu0
      %v389 = vadd.f32 %v263, %v388
      %390 = vmatmul.f32.gmra.mxu0 %v279
      %v391 = vpop.f32.mrf.mxu0
      %v392 = vadd.f32 %v263, %v391
      %393 = vmatmul.f32.gmra.mxu0 %v282
      %v394 = vpop.f32.mrf.mxu0
      %v395 = vadd.f32 %v263, %v394
      %396 = vmatmul.f32.gmra.mxu0 %v285
      %v397 = vpop.f32.mrf.mxu0
      %v398 = vadd.f32 %v263, %v397
      %399 = vmatmul.f32.gmra.mxu0 %v288
      %v400 = vpop.f32.mrf.mxu0
      %v401 = vadd.f32 %v263, %v400
      %402 = vmatmul.f32.gmra.mxu0 %v291
      %v403 = vpop.f32.mrf.mxu0
      %v404 = vadd.f32 %v263, %v403
      %405 = vmatmul.f32.gmra.mxu0 %v294
      %v406 = vpop.f32.mrf.mxu0
      %v407 = vadd.f32 %v263, %v406
      %408 = vmatmul.f32.gmra.mxu0 %v297
      %v409 = vpop.f32.mrf.mxu0
      %v410 = vadd.f32 %v263, %v409
      %411 = vmatmul.f32.gmra.mxu0 %v300
      %v412 = vpop.f32.mrf.mxu0
      %v413 = vadd.f32 %v263, %v412
      %414 = vmatmul.f32.gmra.mxu0 %v303
      %v415 = vpop.f32.mrf.mxu0
      %v416 = vadd.f32 %v263, %v415
      %417 = vmatmul.f32.gmra.mxu0 %v306
      %v418 = vpop.f32.mrf.mxu0
      %v419 = vadd.f32 %v263, %v418
      %420 = vmatmul.f32.gmra.mxu0 %v309
      %v421 = vpop.f32.mrf.mxu0
      %v422 = vadd.f32 %v263, %v421
      %423 = vmatmul.f32.gmra.mxu0 %v312
      %v424 = vpop.f32.mrf.mxu0
      %v425 = vadd.f32 %v263, %v424
      %426 = vmatmul.f32.gmra.mxu0 %v315
      %v427 = vpop.f32.mrf.mxu0
      %v428 = vadd.f32 %v263, %v427
      %429 = vmatmul.f32.gmra.mxu0 %v318
      %v430 = vpop.f32.mrf.mxu0
      %v431 = vadd.f32 %v263, %v430
      %432 = vmatmul.f32.gmra.mxu0 %v321
      %v433 = vpop.f32.mrf.mxu0
      %v434 = vadd.f32 %v263, %v433
      %435 = vmatmul.f32.gmra.mxu0 %v324
      %v436 = vpop.f32.mrf.mxu0
      %v437 = vadd.f32 %v263, %v436
      %438 = vmatmul.f32.gmra.mxu0 %v327
      %v439 = vpop.f32.mrf.mxu0
      %v440 = vadd.f32 %v263, %v439
      %441 = vmatmul.f32.gmra.mxu0 %v330
      %v442 = vpop.f32.mrf.mxu0
      %v443 = vadd.f32 %v263, %v442
      %444 = vmatmul.f32.gmra.mxu0 %v333
      %v445 = vpop.f32.mrf.mxu0
      %v446 = vadd.f32 %v263, %v445
      %447 = vmatmul.f32.gmra.mxu0 %v336
      %v448 = vpop.f32.mrf.mxu0
      %v449 = vadd.f32 %v263, %v448
      %450 = vmatmul.f32.gmra.mxu0 %v339
      %v451 = vpop.f32.mrf.mxu0
      %v452 = vadd.f32 %v263, %v451
      %453 = vmatmul.f32.gmra.mxu0 %v342
      %v454 = vpop.f32.mrf.mxu0
      %v455 = vadd.f32 %v263, %v454
      %456 = vmatmul.f32.gmra.mxu0 %v345
      %v457 = vpop.f32.mrf.mxu0
      %v458 = vadd.f32 %v263, %v457
      %459 = vmatmul.f32.gmra.mxu0 %v348
      %v460 = vpop.f32.mrf.mxu0
      %v461 = vadd.f32 %v263, %v460
      %462 = vmatmul.f32.gmra.mxu0 %v351
      %v463 = vpop.f32.mrf.mxu0
      %v464 = vadd.f32 %v263, %v463
      %465 = vmatmul.f32.gmra.mxu0 %v354
      %v466 = vpop.f32.mrf.mxu0
      %v467 = vadd.f32 %v263, %v466
      %468 = vmatmul.f32.gmra.mxu0 %v357
      %v469 = vpop.f32.mrf.mxu0
      %v470 = vadd.f32 %v263, %v469
      %471 = vmatmul.f32.gmra.mxu0 %v360
      %v472 = vpop.f32.mrf.mxu0
      %v473 = vadd.f32 %v263, %v472
      %474 = vdwg.mxu0
      %v475 = vmax.f32 %v380, 0.0
      %v476 = vmax.f32 %v383, 0.0
      %v477 = vmax.f32 %v386, 0.0
      %v478 = vmax.f32 %v389, 0.0
      %v479 = vmax.f32 %v392, 0.0
      %v480 = vmax.f32 %v395, 0.0
      %v481 = vmax.f32 %v398, 0.0
      %v482 = vmax.f32 %v401, 0.0
      %v483 = vmax.f32 %v404, 0.0
      %v484 = vmax.f32 %v407, 0.0
      %v485 = vmax.f32 %v410, 0.0
      %v486 = vmax.f32 %v413, 0.0
      %v487 = vmax.f32 %v416, 0.0
      %v488 = vmax.f32 %v419, 0.0
      %v489 = vmax.f32 %v422, 0.0
      %v490 = vmax.f32 %v425, 0.0
      %v491 = vmax.f32 %v428, 0.0
      %v492 = vmax.f32 %v431, 0.0
      %v493 = vmax.f32 %v434, 0.0
      %v494 = vmax.f32 %v437, 0.0
      %v495 = vmax.f32 %v440, 0.0
      %v496 = vmax.f32 %v443, 0.0
      %v497 = vmax.f32 %v446, 0.0
      %v498 = vmax.f32 %v449, 0.0
      %v499 = vmax.f32 %v452, 0.0
      %v500 = vmax.f32 %v455, 0.0
      %v501 = vmax.f32 %v458, 0.0
      %v502 = vmax.f32 %v461, 0.0
      %v503 = vmax.f32 %v464, 0.0
      %v504 = vmax.f32 %v467, 0.0
      %v505 = vmax.f32 %v470, 0.0
      %v506 = vmax.f32 %v473, 0.0
      %vm507 = vcmask 64512
      %508 = vst.msk [vmem:[%s223] sm:$0xff] %vm507, %v475
      %509 = vst.msk [vmem:[%s223 + $0x8] sm:$0xff] %vm507, %v476
      %510 = vst.msk [vmem:[%s223 + $0x10] sm:$0xff] %vm507, %v477
      %511 = vst.msk [vmem:[%s223 + $0x18] sm:$0xff] %vm507, %v478
      %512 = vst.msk [vmem:[%s223 + $0x20] sm:$0xff] %vm507, %v479
      %513 = vst.msk [vmem:[%s223 + $0x28] sm:$0xff] %vm507, %v480
      %514 = vst.msk [vmem:[%s223 + $0x30] sm:$0xff] %vm507, %v481
      %515 = vst.msk [vmem:[%s223 + $0x38] sm:$0xff] %vm507, %v482
      %516 = vst.msk [vmem:[%s223 + $0x40] sm:$0xff] %vm507, %v483
      %517 = vst.msk [vmem:[%s223 + $0x48] sm:$0xff] %vm507, %v484
      %518 = vst.msk [vmem:[%s223 + $0x50] sm:$0xff] %vm507, %v485
      %519 = vst.msk [vmem:[%s223 + $0x58] sm:$0xff] %vm507, %v486
      %520 = vst.msk [vmem:[%s223 + $0x60] sm:$0xff] %vm507, %v487
      %521 = vst.msk [vmem:[%s223 + $0x68] sm:$0xff] %vm507, %v488
      %522 = vst.msk [vmem:[%s223 + $0x70] sm:$0xff] %vm507, %v489
      %523 = vst.msk [vmem:[%s223 + $0x78] sm:$0xff] %vm507, %v490
      %524 = vst.msk [vmem:[%s223 + $0x80] sm:$0xff] %vm507, %v491
      %525 = vst.msk [vmem:[%s223 + $0x88] sm:$0xff] %vm507, %v492
      %526 = vst.msk [vmem:[%s223 + $0x90] sm:$0xff] %vm507, %v493
      %527 = vst.msk [vmem:[%s223 + $0x98] sm:$0xff] %vm507, %v494
      %528 = vst.msk [vmem:[%s223 + $0xa0] sm:$0xff] %vm507, %v495
      %529 = vst.msk [vmem:[%s223 + $0xa8] sm:$0xff] %vm507, %v496
      %530 = vst.msk [vmem:[%s223 + $0xb0] sm:$0xff] %vm507, %v497
      %531 = vst.msk [vmem:[%s223 + $0xb8] sm:$0xff] %vm507, %v498
      %532 = vst.msk [vmem:[%s223 + $0xc0] sm:$0xff] %vm507, %v499
      %533 = vst.msk [vmem:[%s223 + $0xc8] sm:$0xff] %vm507, %v500
      %534 = vst.msk [vmem:[%s223 + $0xd0] sm:$0xff] %vm507, %v501
      %535 = vst.msk [vmem:[%s223 + $0xd8] sm:$0xff] %vm507, %v502
      %536 = vst.msk [vmem:[%s223 + $0xe0] sm:$0xff] %vm507, %v503
      %537 = vst.msk [vmem:[%s223 + $0xe8] sm:$0xff] %vm507, %v504
      %538 = vst.msk [vmem:[%s223 + $0xf0] sm:$0xff] %vm507, %v505
      %539 = vst.msk [vmem:[%s223 + $0xf8] sm:$0xff] %vm507, %v506
      %s540 = smul.u32 32, %s18
      %p541 = scmp.lt.s32.totalorder %s540, 63
      %s542 = scalar_select %p541, %s540, 63
      %p543 = scmp.lt.s32.totalorder %s19, 0
      %s544 = scalar_select %p543, %s19, 0
      %s545 = sadd.s32 %s544, %s542
      %s546 = smul.addr %s545, 8
      %s547 = scalar_lea.vmem %s3, %s546
      // Predicated region
      $region33: #{capsule_network_forward.6} parent=31 // pred_check
        %p548 = pneg %p124
      $region34: #{capsule_network_forward.6} parent=31 // pred_check_branch
        %550 = sbr.rel (%p548) target = $region36
      $region35: #{capsule_network_forward.6} parent=31 // pred_region
        %s551 = smul.u32 32, %s18
      $region36: #{capsule_network_forward.6} parent=31 // pred_fallthru
        _
    $region32: #{capsule_network_forward.6} parent=5 // pred_fallthru
      _
    %p552 = scmp.le.s32.totalorder 2, %s9
    // Predicated region
    $region37: #{capsule_network_forward.6} parent=5 // pred_check
      %p553 = pneg %p552
    $region38: #{capsule_network_forward.6} parent=5 // pred_check_branch
      %555 = sbr.rel (%p553) target = $region40
    $region39: #{capsule_network_forward.6} parent=5 // pred_region
      %s556 = ssub.s32 %s9, 2
      // Predicated region
      $region41: #{capsule_network_forward.6} parent=39 // pred_check
        %p557 = pneg %p130
      $region42: #{capsule_network_forward.6} parent=39 // pred_check_branch
        %559 = sbr.rel (%p557) target = $region44
      $region43: #{capsule_network_forward.6} parent=39 // pred_region
        %s560 = smul.u32 32, %s20
        %p561 = scmp.lt.s32.totalorder %s560, 63
        %s562 = scalar_select %p561, %s560, 63
        %p563 = scmp.lt.s32.totalorder %s21, 0
        %s564 = scalar_select %p563, %s21, 0
        %s565 = sadd.s32 %s564, %s562
        %s566 = smul.addr %s565, 8
        %s567 = scalar_lea.vmem %s3, %s566
      $region44: #{capsule_network_forward.6} parent=39 // pred_fallthru
        _
    $region40: #{capsule_network_forward.6} parent=5 // pred_fallthru
      _
  $region6: #{capsule_network_forward.6} parent=0 // loop_footer
    %s13 = sadd.s32 1, %s9
  $region7: #{capsule_network_forward.6} parent=0 // loop_footer_branch
    %8 = sbr.rel target = $region3
  $region8: #{capsule_network_forward.6} parent=0 // loop_exit
    _

// kernel: capsule_network_forward.7
$region0: #{capsule_network_forward.7}
  #allocation0 [shape = 'u32[]', space=smem, size = 0x4, offset = 0x4, fixed_abs, tag = 'smem constant byte address 0x4 - core index']
  #allocation1 [shape = 'u32[72,128]{1,0:T(1,128)}', space=vmem, size = 0x9000, scoped, tag = 'internal scratch']
  %s0 = inlined_call_operand.vmem [shape: f32[72,200], index: 0, kind: input, shape index: {}]
  %s1 = inlined_call_operand.vmem [shape: f32[200,8], index: 1, kind: input, shape index: {}]
  %s2 = inlined_call_operand.vmem [shape: f32[1,8], index: 2, kind: input, shape index: {}]
  %s3 = inlined_call_operand.vmem [shape: f32[72,8], index: 3, kind: output, shape index: {}]
  %s4 = sld [smem:[#allocation0]]
  $region22: #{capsule_network_forward.7} parent=0
    _
  %s6 = ssub.s32 1, %s4
  %s7 = scalar_select 0, %s6, %s4
  // Predicated region
  $region2: #{capsule_network_forward.7} parent=0 // pred_check
    _
  $region3: #{capsule_network_forward.7} parent=0 // pred_check_branch
    %9 = sbr.rel (0) target = $region5
  $region4: #{capsule_network_forward.7} parent=0 // pred_region
    _
  $region5: #{capsule_network_forward.7} parent=0 // pred_fallthru
    _
  // Predicated region
  $region6: #{capsule_network_forward.7} parent=0 // pred_check
    _
  $region7: #{capsule_network_forward.7} parent=0 // pred_check_branch
    %11 = sbr.rel (0) target = $region9
  $region8: #{capsule_network_forward.7} parent=0 // pred_region
    _
  $region9: #{capsule_network_forward.7} parent=0 // pred_fallthru
    _
  // Predicated region
  $region10: #{capsule_network_forward.7} parent=0 // pred_check
    _
  $region11: #{capsule_network_forward.7} parent=0 // pred_check_branch
    %13 = sbr.rel (0) target = $region13
  $region12: #{capsule_network_forward.7} parent=0 // pred_region
    _
  $region13: #{capsule_network_forward.7} parent=0 // pred_fallthru
    _
  %v14 = vld [vmem:[%s0] sm:$0xff]
  %v15 = vld [vmem:[%s0 + $0x8] sm:$0xff]
  %v16 = vld [vmem:[%s0 + $0x10] sm:$0xff]
  %v17 = vld [vmem:[%s0 + $0x18] sm:$0xff]
  %v18 = vld [vmem:[%s0 + $0x20] sm:$0xff]
  %v19 = vld [vmem:[%s0 + $0x28] sm:$0xff]
  %v20 = vld [vmem:[%s0 + $0x30] sm:$0xff]
  %v21 = vld [vmem:[%s0 + $0x38] sm:$0xff]
  %v22 = vld [vmem:[%s0 + $0x40] sm:$0xff]
  %v23 = vld [vmem:[%s0 + $0x48] sm:$0xff]
  %v24 = vld [vmem:[%s0 + $0x50] sm:$0xff]
  %v25 = vld [vmem:[%s0 + $0x58] sm:$0xff]
  %v26 = vld [vmem:[%s0 + $0x60] sm:$0xff]
  %v27 = vld [vmem:[%s0 + $0x68] sm:$0xff]
  %v28 = vld [vmem:[%s0 + $0x70] sm:$0xff]
  %v29 = vld [vmem:[%s0 + $0x78] sm:$0xff]
  %v30 = vld [vmem:[%s0 + $0x80] sm:$0xff]
  %v31 = vld [vmem:[%s0 + $0x88] sm:$0xff]
  %v32 = vld [vmem:[%s1] sm:$0xff]
  %v33 = vld [vmem:[%s1 + $0x8] sm:$0xff]
  %v34 = vld [vmem:[%s1 + $0x10] sm:$0xff]
  %v35 = vld [vmem:[%s1 + $0x18] sm:$0xff]
  %v36 = vld [vmem:[%s1 + $0x20] sm:$0xff]
  %v37 = vld [vmem:[%s1 + $0x28] sm:$0xff]
  %v38 = vld [vmem:[%s1 + $0x30] sm:$0xff]
  %v39 = vld [vmem:[%s1 + $0x38] sm:$0xff]
  %v40 = vld [vmem:[%s1 + $0x40] sm:$0xff]
  %v41 = vld [vmem:[%s1 + $0x48] sm:$0xff]
  %v42 = vld [vmem:[%s1 + $0x50] sm:$0xff]
  %v43 = vld [vmem:[%s1 + $0x58] sm:$0xff]
  %v44 = vld [vmem:[%s1 + $0x60] sm:$0xff]
  %v45 = vld [vmem:[%s1 + $0x68] sm:$0xff]
  %v46 = vld [vmem:[%s1 + $0x70] sm:$0xff]
  %v47 = vld [vmem:[%s1 + $0x78] sm:$0xff]
  %v48 = vld [vmem:[%s1 + $0x80] sm:$0xff]
  %v49 = vld [vmem:[%s1 + $0x88] sm:$0xff]
  %v50 = vld [vmem:[%s1 + $0x90] sm:$0xff]
  %v51 = vld [vmem:[%s1 + $0x98] sm:$0xff]
  %v52 = vld [vmem:[%s1 + $0xa0] sm:$0xff]
  %v53 = vld [vmem:[%s1 + $0xa8] sm:$0xff]
  %v54 = vld [vmem:[%s1 + $0xb0] sm:$0xff]
  %v55 = vld [vmem:[%s1 + $0xb8] sm:$0xff]
  %v56 = vld [vmem:[%s1 + $0xc0] sm:$0xff]
  %v57 = vld [vmem:[%s2] sm:$0x1]
  %v59 = vperm.slane %v57, 0
  %vm61 = vcmask 588800
  %v63 = vsel %vm61, %v15, 0
  %v66 = vsel %vm61, %v17, 0
  %v69 = vsel %vm61, %v19, 0
  %v72 = vsel %vm61, %v21, 0
  %v75 = vsel %vm61, %v23, 0
  %v78 = vsel %vm61, %v25, 0
  %v81 = vsel %vm61, %v27, 0
  %v84 = vsel %vm61, %v29, 0
  %v87 = vsel %vm61, %v31, 0
  %89 = vmatpush.msra.mxu0 %v47
  %90 = vmatpush.msra.mxu0 %v46
  %91 = vmatpush.msra.mxu0 %v45
  %92 = vmatpush.msra.mxu0 %v44
  %93 = vmatpush.msra.mxu0 %v43
  %94 = vmatpush.msra.mxu0 %v42
  %95 = vmatpush.msra.mxu0 %v41
  %96 = vmatpush.msra.mxu0 %v40
  %97 = vmatpush.msra.mxu0 %v39
  %98 = vmatpush.msra.mxu0 %v38
  %99 = vmatpush.msra.mxu0 %v37
  %100 = vmatpush.msra.mxu0 %v36
  %101 = vmatpush.msra.mxu0 %v35
  %102 = vmatpush.msra.mxu0 %v34
  %103 = vmatpush.msra.mxu0 %v33
  %104 = vmatpush.msra.mxu0 %v32
  %105 = vmatmul.f32.gmra.mxu0 %v14
  %v106 = vpop.f32.mrf.mxu0
  %v107 = vadd.f32 %v59, %v106
  %108 = vmatmul.f32.gmra.mxu0 %v16
  %v109 = vpop.f32.mrf.mxu0
  %v110 = vadd.f32 %v59, %v109
  %111 = vmatmul.f32.gmra.mxu0 %v18
  %v112 = vpop.f32.mrf.mxu0
  %v113 = vadd.f32 %v59, %v112
  %114 = vmatmul.f32.gmra.mxu0 %v20
  %v115 = vpop.f32.mrf.mxu0
  %v116 = vadd.f32 %v59, %v115
  %117 = vmatmul.f32.gmra.mxu0 %v22
  %v118 = vpop.f32.mrf.mxu0
  %v119 = vadd.f32 %v59, %v118
  %120 = vmatmul.f32.gmra.mxu0 %v24
  %v121 = vpop.f32.mrf.mxu0
  %v122 = vadd.f32 %v59, %v121
  %123 = vmatmul.f32.gmra.mxu0 %v26
  %v124 = vpop.f32.mrf.mxu0
  %v125 = vadd.f32 %v59, %v124
  %126 = vmatmul.f32.gmra.mxu0 %v28
  %v127 = vpop.f32.mrf.mxu0
  %v128 = vadd.f32 %v59, %v127
  %129 = vmatmul.f32.gmra.mxu0 %v30
  %v130 = vpop.f32.mrf.mxu0
  %v131 = vadd.f32 %v59, %v130
  %132 = vdwg.mxu0
  %133 = vmatpush.msra.mxu0 0.0
  %134 = vmatpush.msra.mxu0 0.0
  %135 = vmatpush.msra.mxu0 0.0
  %136 = vmatpush.msra.mxu0 0.0
  %137 = vmatpush.msra.mxu0 0.0
  %138 = vmatpush.msra.mxu0 0.0
  %139 = vmatpush.msra.mxu0 0.0
  %140 = vmatpush.msra.mxu0 %v56
  %141 = vmatpush.msra.mxu0 %v55
  %142 = vmatpush.msra.mxu0 %v54
  %143 = vmatpush.msra.mxu0 %v53
  %144 = vmatpush.msra.mxu0 %v52
  %145 = vmatpush.msra.mxu0 %v51
  %146 = vmatpush.msra.mxu0 %v50
  %147 = vmatpush.msra.mxu0 %v49
  %148 = vmatpush.msra.mxu0 %v48
  %149 = vmatmul.f32.gmra.mxu0 %v63
  %v150 = vpop.f32.mrf.mxu0
  %v151 = vadd.f32 %v107, %v150
  %152 = vmatmul.f32.gmra.mxu0 %v66
  %v153 = vpop.f32.mrf.mxu0
  %v154 = vadd.f32 %v110, %v153
  %155 = vmatmul.f32.gmra.mxu0 %v69
  %v156 = vpop.f32.mrf.mxu0
  %v157 = vadd.f32 %v113, %v156
  %158 = vmatmul.f32.gmra.mxu0 %v72
  %v159 = vpop.f32.mrf.mxu0
  %v160 = vadd.f32 %v116, %v159
  %161 = vmatmul.f32.gmra.mxu0 %v75
  %v162 = vpop.f32.mrf.mxu0
  %v163 = vadd.f32 %v119, %v162
  %164 = vmatmul.f32.gmra.mxu0 %v78
  %v165 = vpop.f32.mrf.mxu0
  %v166 = vadd.f32 %v122, %v165
  %167 = vmatmul.f32.gmra.mxu0 %v81
  %v168 = vpop.f32.mrf.mxu0
  %v169 = vadd.f32 %v125, %v168
  %170 = vmatmul.f32.gmra.mxu0 %v84
  %v171 = vpop.f32.mrf.mxu0
  %v172 = vadd.f32 %v128, %v171
  %173 = vmatmul.f32.gmra.mxu0 %v87
  %v174 = vpop.f32.mrf.mxu0
  %v175 = vadd.f32 %v131, %v174
  %176 = vdwg.mxu0
  %vm177 = vcmask 64512
  %178 = vst.msk [vmem:[%s3] sm:$0xff] %vm177, %v151
  %179 = vst.msk [vmem:[%s3 + $0x8] sm:$0xff] %vm177, %v154
  %180 = vst.msk [vmem:[%s3 + $0x10] sm:$0xff] %vm177, %v157
  %181 = vst.msk [vmem:[%s3 + $0x18] sm:$0xff] %vm177, %v160
  %182 = vst.msk [vmem:[%s3 + $0x20] sm:$0xff] %vm177, %v163
  %183 = vst.msk [vmem:[%s3 + $0x28] sm:$0xff] %vm177, %v166
  %184 = vst.msk [vmem:[%s3 + $0x30] sm:$0xff] %vm177, %v169
  %185 = vst.msk [vmem:[%s3 + $0x38] sm:$0xff] %vm177, %v172
  %186 = vst.msk [vmem:[%s3 + $0x40] sm:$0xff] %vm177, %v175
  // Predicated region
  $region14: #{capsule_network_forward.7} parent=0 // pred_check
    _
  $region15: #{capsule_network_forward.7} parent=0 // pred_check_branch
    %188 = sbr.rel (0) target = $region17
  $region16: #{capsule_network_forward.7} parent=0 // pred_region
    _
  $region17: #{capsule_network_forward.7} parent=0 // pred_fallthru
    _
  // Predicated region
  $region18: #{capsule_network_forward.7} parent=0 // pred_check
    _
  $region19: #{capsule_network_forward.7} parent=0 // pred_check_branch
    %190 = sbr.rel (0) target = $region21
  $region20: #{capsule_network_forward.7} parent=0 // pred_region
    _
  $region21: #{capsule_network_forward.7} parent=0 // pred_fallthru
    _

// kernel: mul.0
$region0: #{mul.0}
  #allocation0 [shape = 's32[1]{0}', space=sflag, size = 0x4, scoped, tag = 'scoped memory for mul.0']
  %s0 = inlined_call_operand.vmem [shape: f32[2,32], index: 0, kind: input, shape index: {}]
  %s1 = inlined_call_operand.vmem [shape: f32[2,32], index: 1, kind: input, shape index: {}]
  %s2 = inlined_call_operand.vmem [shape: f32[2,32], index: 2, kind: output, shape index: {}]
  %v3 = vld [vmem:[%s0] sm:$0x3]
  %v4 = vld [vmem:[%s1] sm:$0x3]
  %5 = xla_tuple %v3, %v4
  %6 = xla_tuple %5
  %v7 = vmul.f32 %v3, %v4
  %8 = xla_tuple %v7
  %9 = vst [vmem:[%s2] sm:$0x3] %v7

// kernel: capsule_network_forward.9
$region0: #{capsule_network_forward.9}
  #allocation0 [shape = 'u32[]', space=smem, size = 0x4, offset = 0x4, fixed_abs, tag = 'smem constant byte address 0x4 - core index']
  #allocation1 [shape = 'u32[72,128]{1,0:T(1,128)}', space=vmem, size = 0x9000, scoped, tag = 'internal scratch']
  %s0 = inlined_call_operand.vmem [shape: f32[2,32], index: 0, kind: input, shape index: {}]
  %s1 = inlined_call_operand.vmem [shape: f32[32,512], index: 1, kind: input, shape index: {}]
  %s2 = inlined_call_operand.vmem [shape: f32[1,512], index: 2, kind: input, shape index: {}]
  %s3 = inlined_call_operand.vmem [shape: f32[2,512], index: 3, kind: output, shape index: {}]
  %s4 = sld [smem:[#allocation0]]
  $region22: #{capsule_network_forward.9} parent=0
    _
  %s6 = ssub.s32 1, %s4
  %s7 = scalar_select 0, %s6, %s4
  // Predicated region
  $region2: #{capsule_network_forward.9} parent=0 // pred_check
    _
  $region3: #{capsule_network_forward.9} parent=0 // pred_check_branch
    %9 = sbr.rel (0) target = $region5
  $region4: #{capsule_network_forward.9} parent=0 // pred_region
    _
  $region5: #{capsule_network_forward.9} parent=0 // pred_fallthru
    _
  // Predicated region
  $region6: #{capsule_network_forward.9} parent=0 // pred_check
    _
  $region7: #{capsule_network_forward.9} parent=0 // pred_check_branch
    %11 = sbr.rel (0) target = $region9
  $region8: #{capsule_network_forward.9} parent=0 // pred_region
    _
  $region9: #{capsule_network_forward.9} parent=0 // pred_fallthru
    _
  // Predicated region
  $region10: #{capsule_network_forward.9} parent=0 // pred_check
    _
  $region11: #{capsule_network_forward.9} parent=0 // pred_check_branch
    %13 = sbr.rel (0) target = $region13
  $region12: #{capsule_network_forward.9} parent=0 // pred_region
    _
  $region13: #{capsule_network_forward.9} parent=0 // pred_fallthru
    _
  %v14 = vld [vmem:[%s0] sm:$0x3]
  %v15 = vld [vmem:[%s1] sm:$0xff]
  %v16 = vld [vmem:[%s1 + $0x8] sm:$0xff]
  %v17 = vld [vmem:[%s1 + $0x10] sm:$0xff]
  %v18 = vld [vmem:[%s1 + $0x18] sm:$0xff]
  %v19 = vld [vmem:[%s1 + $0x20] sm:$0xff]
  %v20 = vld [vmem:[%s1 + $0x28] sm:$0xff]
  %v21 = vld [vmem:[%s1 + $0x30] sm:$0xff]
  %v22 = vld [vmem:[%s1 + $0x38] sm:$0xff]
  %v23 = vld [vmem:[%s1 + $0x40] sm:$0xff]
  %v24 = vld [vmem:[%s1 + $0x48] sm:$0xff]
  %v25 = vld [vmem:[%s1 + $0x50] sm:$0xff]
  %v26 = vld [vmem:[%s1 + $0x58] sm:$0xff]
  %v27 = vld [vmem:[%s1 + $0x60] sm:$0xff]
  %v28 = vld [vmem:[%s1 + $0x68] sm:$0xff]
  %v29 = vld [vmem:[%s1 + $0x70] sm:$0xff]
  %v30 = vld [vmem:[%s1 + $0x78] sm:$0xff]
  %v31 = vld [vmem:[%s2] sm:$0xf]
  %v33 = vperm.slane %v31, 0
  %v34 = vperm.slane %v31, 1
  %v35 = vperm.slane %v31, 2
  %v36 = vperm.slane %v31, 3
  %vm41 = vcmask 261120
  %v43 = vsel %vm41, %v14, 0
  %45 = vmatpush.msra.mxu0 0.0
  %46 = vmatpush.msra.mxu0 0.0
  %47 = vmatpush.msra.mxu0 0.0
  %48 = vmatpush.msra.mxu0 0.0
  %49 = vmatpush.msra.mxu0 0.0
  %50 = vmatpush.msra.mxu0 0.0
  %51 = vmatpush.msra.mxu0 0.0
  %52 = vmatpush.msra.mxu0 0.0
  %53 = vmatpush.msra.mxu0 0.0
  %54 = vmatpush.msra.mxu0 0.0
  %55 = vmatpush.msra.mxu0 0.0
  %56 = vmatpush.msra.mxu0 0.0
  %57 = vmatpush.msra.mxu0 %v27
  %58 = vmatpush.msra.mxu0 %v23
  %59 = vmatpush.msra.mxu0 %v19
  %60 = vmatpush.msra.mxu0 %v15
  %61 = vmatmul.f32.gmra.mxu0 %v43
  %v62 = vpop.f32.mrf.mxu0
  %v63 = vadd.f32 %v33, %v62
  %64 = vdwg.mxu0
  %65 = vmatpush.msra.mxu0 0.0
  %66 = vmatpush.msra.mxu0 0.0
  %67 = vmatpush.msra.mxu0 0.0
  %68 = vmatpush.msra.mxu0 0.0
  %69 = vmatpush.msra.mxu0 0.0
  %70 = vmatpush.msra.mxu0 0.0
  %71 = vmatpush.msra.mxu0 0.0
  %72 = vmatpush.msra.mxu0 0.0
  %73 = vmatpush.msra.mxu0 0.0
  %74 = vmatpush.msra.mxu0 0.0
  %75 = vmatpush.msra.mxu0 0.0
  %76 = vmatpush.msra.mxu0 0.0
  %77 = vmatpush.msra.mxu0 %v28
  %78 = vmatpush.msra.mxu0 %v24
  %79 = vmatpush.msra.mxu0 %v20
  %80 = vmatpush.msra.mxu0 %v16
  %81 = vmatmul.f32.gmra.mxu0 %v43
  %v82 = vpop.f32.mrf.mxu0
  %v83 = vadd.f32 %v34, %v82
  %84 = vdwg.mxu0
  %85 = vmatpush.msra.mxu0 0.0
  %86 = vmatpush.msra.mxu0 0.0
  %87 = vmatpush.msra.mxu0 0.0
  %88 = vmatpush.msra.mxu0 0.0
  %89 = vmatpush.msra.mxu0 0.0
  %90 = vmatpush.msra.mxu0 0.0
  %91 = vmatpush.msra.mxu0 0.0
  %92 = vmatpush.msra.mxu0 0.0
  %93 = vmatpush.msra.mxu0 0.0
  %94 = vmatpush.msra.mxu0 0.0
  %95 = vmatpush.msra.mxu0 0.0
  %96 = vmatpush.msra.mxu0 0.0
  %97 = vmatpush.msra.mxu0 %v29
  %98 = vmatpush.msra.mxu0 %v25
  %99 = vmatpush.msra.mxu0 %v21
  %100 = vmatpush.msra.mxu0 %v17
  %101 = vmatmul.f32.gmra.mxu0 %v43
  %v102 = vpop.f32.mrf.mxu0
  %v103 = vadd.f32 %v35, %v102
  %104 = vdwg.mxu0
  %105 = vmatpush.msra.mxu0 0.0
  %106 = vmatpush.msra.mxu0 0.0
  %107 = vmatpush.msra.mxu0 0.0
  %108 = vmatpush.msra.mxu0 0.0
  %109 = vmatpush.msra.mxu0 0.0
  %110 = vmatpush.msra.mxu0 0.0
  %111 = vmatpush.msra.mxu0 0.0
  %112 = vmatpush.msra.mxu0 0.0
  %113 = vmatpush.msra.mxu0 0.0
  %114 = vmatpush.msra.mxu0 0.0
  %115 = vmatpush.msra.mxu0 0.0
  %116 = vmatpush.msra.mxu0 0.0
  %117 = vmatpush.msra.mxu0 %v30
  %118 = vmatpush.msra.mxu0 %v26
  %119 = vmatpush.msra.mxu0 %v22
  %120 = vmatpush.msra.mxu0 %v18
  %121 = vmatmul.f32.gmra.mxu0 %v43
  %v122 = vpop.f32.mrf.mxu0
  %v123 = vadd.f32 %v36, %v122
  %124 = vdwg.mxu0
  %v125 = vmax.f32 %v63, 0.0
  %v126 = vmax.f32 %v83, 0.0
  %v127 = vmax.f32 %v103, 0.0
  %v128 = vmax.f32 %v123, 0.0
  %v133 = vrot.slane %v126, 6
  %v134 = vrot.slane %v127, 4
  %v135 = vrot.slane %v128, 2
  %vm136 = vcmask 1041408
  %v137 = vsel %vm136, %v125, %v133
  %vm138 = vcmask 1045508
  %v139 = vsel %vm138, %v134, %v135
  %vm140 = vcmask 1043456
  %v141 = vsel %vm140, %v137, %v139
  %143 = vst [vmem:[%s3] sm:$0xff] %v141
  // Predicated region
  $region14: #{capsule_network_forward.9} parent=0 // pred_check
    _
  $region15: #{capsule_network_forward.9} parent=0 // pred_check_branch
    %145 = sbr.rel (0) target = $region17
  $region16: #{capsule_network_forward.9} parent=0 // pred_region
    _
  $region17: #{capsule_network_forward.9} parent=0 // pred_fallthru
    _
  // Predicated region
  $region18: #{capsule_network_forward.9} parent=0 // pred_check
    _
  $region19: #{capsule_network_forward.9} parent=0 // pred_check_branch
    %147 = sbr.rel (0) target = $region21
  $region20: #{capsule_network_forward.9} parent=0 // pred_region
    _
  $region21: #{capsule_network_forward.9} parent=0 // pred_fallthru
    _

// kernel: capsule_network_forward.8
$region0: #{capsule_network_forward.8}
  #allocation0 [shape = 'u32[]', space=smem, size = 0x4, offset = 0x4, fixed_abs, tag = 'smem constant byte address 0x4 - core index']
  #allocation1 [shape = 'u32[72,128]{1,0:T(1,128)}', space=vmem, size = 0x9000, scoped, tag = 'internal scratch']
  %s0 = inlined_call_operand.vmem [shape: f32[2,4,72], index: 0, kind: input, shape index: {}]
  %s1 = inlined_call_operand.vmem [shape: f32[4,4,8,72], index: 1, kind: input, shape index: {}]
  %s2 = inlined_call_operand.vmem [shape: f32[2,32], index: 2, kind: output, shape index: {0}]
  %s3 = inlined_call_operand.vmem [shape: f32[2,4], index: 3, kind: output, shape index: {1}]
  %4 = xla_tuple %s2, %s3
  %s5 = sld [smem:[#allocation0]]
  $region26: #{capsule_network_forward.8} parent=0
    _
  %s7 = ssub.s32 1, %s5
  %s8 = scalar_select 0, %s7, %s5
  // Predicated region
  $region2: #{capsule_network_forward.8} parent=0 // pred_check
    _
  $region3: #{capsule_network_forward.8} parent=0 // pred_check_branch
    %10 = sbr.rel (0) target = $region5
  $region4: #{capsule_network_forward.8} parent=0 // pred_region
    _
  $region5: #{capsule_network_forward.8} parent=0 // pred_fallthru
    _
  // Predicated region
  $region6: #{capsule_network_forward.8} parent=0 // pred_check
    _
  $region7: #{capsule_network_forward.8} parent=0 // pred_check_branch
    %12 = sbr.rel (0) target = $region9
  $region8: #{capsule_network_forward.8} parent=0 // pred_region
    _
  $region9: #{capsule_network_forward.8} parent=0 // pred_fallthru
    _
  %v13 = vld [vmem:[%s0] sm:$0xf]
  %v14 = vld [vmem:[%s0 + $0x4] sm:$0xf]
  %v15 = vmul.f32 %v13, %v13
  %v16 = vmul.f32 %v14, %v14
  %vm17 = vcmask 584704
  %v18 = vsel %vm17, %v15, 0.0
  %v19 = vrot.slane %v18, 4
  %v20 = vadd.f32 %v18, %v19
  %v21 = vrot.slane %v20, 2
  %v22 = vadd.f32 %v20, %v21
  %v23 = vrot.slane %v22, 1
  %v24 = vadd.f32 %v22, %v23
  %v25 = vsel %vm17, %v16, 0.0
  %v26 = vrot.slane %v25, 4
  %v27 = vadd.f32 %v25, %v26
  %v28 = vrot.slane %v27, 2
  %v29 = vadd.f32 %v27, %v28
  %v30 = vrot.slane %v29, 1
  %v31 = vadd.f32 %v29, %v30
  %v32 = vadd.f32 %v24, 1.0
  %v33 = vadd.f32 %v31, 1.0
  %v34 = vrcp.pop %v32
  %v35 = vrcp.pop %v33
  %v36 = vmul.f32 %v24, %v34
  %v37 = vmul.f32 %v31, %v35
  %v38 = vadd.f32 %v24, 1e-08
  %v39 = vadd.f32 %v31, 1e-08
  %v40 = vrsqrt.pop %v38
  %v41 = vmul.f32 %v40, %v38
  %v42 = vmul.f32 %v41, %v40
  %v43 = vmul.f32 0.5, %v42
  %v44 = vsub.f32 1.5, %v43
  %v45 = vmul.f32 %v40, %v44
  %vm46 = vweird.f32 %v38
  %vm47 = vweird.f32 %v40
  %vm48 = vmor %vm46, %vm47
  %v49 = vsel %vm48, %v40, %v45
  %v50 = vrsqrt.pop %v39
  %v51 = vmul.f32 %v50, %v39
  %v52 = vmul.f32 %v51, %v50
  %v53 = vmul.f32 0.5, %v52
  %v54 = vsub.f32 1.5, %v53
  %v55 = vmul.f32 %v50, %v54
  %vm56 = vweird.f32 %v39
  %vm57 = vweird.f32 %v50
  %vm58 = vmor %vm56, %vm57
  %v59 = vsel %vm58, %v50, %v55
  %v60 = vmul.f32 %v36, %v49
  %v61 = vmul.f32 %v37, %v59
  %v62 = vld [vmem:[%s1] sm:$0xff]
  %v63 = vld [vmem:[%s1 + $0x8] sm:$0xff]
  %v64 = vld [vmem:[%s1 + $0x10] sm:$0xff]
  %v65 = vld [vmem:[%s1 + $0x18] sm:$0xff]
  %v66 = vperm.slane %v13, 0
  %v67 = vperm.slane %v14, 0
  %v68 = vmul.f32 %v66, %v62
  %v69 = vmul.f32 %v66, %v63
  %v70 = vmul.f32 %v66, %v64
  %v71 = vmul.f32 %v66, %v65
  %v72 = vmul.f32 %v67, %v62
  %v73 = vmul.f32 %v67, %v63
  %v74 = vmul.f32 %v67, %v64
  %v75 = vmul.f32 %v67, %v65
  %s76 = scalar_lea.vmem %s1, 32
  %v77 = vld [vmem:[%s76] sm:$0xff]
  %v78 = vld [vmem:[%s76 + $0x8] sm:$0xff]
  %v79 = vld [vmem:[%s76 + $0x10] sm:$0xff]
  %v80 = vld [vmem:[%s76 + $0x18] sm:$0xff]
  %v81 = vperm.slane %v13, 1
  %v82 = vperm.slane %v14, 1
  %v83 = vmul.f32 %v81, %v77
  %v84 = vmul.f32 %v81, %v78
  %v85 = vmul.f32 %v81, %v79
  %v86 = vmul.f32 %v81, %v80
  %v87 = vmul.f32 %v82, %v77
  %v88 = vmul.f32 %v82, %v78
  %v89 = vmul.f32 %v82, %v79
  %v90 = vmul.f32 %v82, %v80
  %v91 = vadd.f32 %v68, %v83
  %v92 = vadd.f32 %v69, %v84
  %v93 = vadd.f32 %v70, %v85
  %v94 = vadd.f32 %v71, %v86
  %v95 = vadd.f32 %v72, %v87
  %v96 = vadd.f32 %v73, %v88
  %v97 = vadd.f32 %v74, %v89
  %v98 = vadd.f32 %v75, %v90
  %s99 = scalar_lea.vmem %s1, 64
  %v100 = vld [vmem:[%s99] sm:$0xff]
  %v101 = vld [vmem:[%s99 + $0x8] sm:$0xff]
  %v102 = vld [vmem:[%s99 + $0x10] sm:$0xff]
  %v103 = vld [vmem:[%s99 + $0x18] sm:$0xff]
  %v104 = vperm.slane %v13, 2
  %v105 = vperm.slane %v14, 2
  %v106 = vmul.f32 %v104, %v100
  %v107 = vmul.f32 %v104, %v101
  %v108 = vmul.f32 %v104, %v102
  %v109 = vmul.f32 %v104, %v103
  %v110 = vmul.f32 %v105, %v100
  %v111 = vmul.f32 %v105, %v101
  %v112 = vmul.f32 %v105, %v102
  %v113 = vmul.f32 %v105, %v103
  %v114 = vadd.f32 %v91, %v106
  %v115 = vadd.f32 %v92, %v107
  %v116 = vadd.f32 %v93, %v108
  %v117 = vadd.f32 %v94, %v109
  %v118 = vadd.f32 %v95, %v110
  %v119 = vadd.f32 %v96, %v111
  %v120 = vadd.f32 %v97, %v112
  %v121 = vadd.f32 %v98, %v113
  %s122 = scalar_lea.vmem %s1, 96
  %v123 = vld [vmem:[%s122] sm:$0xff]
  %v124 = vld [vmem:[%s122 + $0x8] sm:$0xff]
  %v125 = vld [vmem:[%s122 + $0x10] sm:$0xff]
  %v126 = vld [vmem:[%s122 + $0x18] sm:$0xff]
  %v127 = vperm.slane %v13, 3
  %v128 = vperm.slane %v14, 3
  %v129 = vmul.f32 %v127, %v123
  %v130 = vmul.f32 %v127, %v124
  %v131 = vmul.f32 %v127, %v125
  %v132 = vmul.f32 %v127, %v126
  %v133 = vmul.f32 %v128, %v123
  %v134 = vmul.f32 %v128, %v124
  %v135 = vmul.f32 %v128, %v125
  %v136 = vmul.f32 %v128, %v126
  %v137 = vadd.f32 %v114, %v129
  %v138 = vadd.f32 %v115, %v130
  %v139 = vadd.f32 %v116, %v131
  %v140 = vadd.f32 %v117, %v132
  %v141 = vadd.f32 %v118, %v133
  %v142 = vadd.f32 %v119, %v134
  %v143 = vadd.f32 %v120, %v135
  %v144 = vadd.f32 %v121, %v136
  %v145 = vmul.f32 %v137, %v60
  %v146 = vmul.f32 %v138, %v60
  %v147 = vmul.f32 %v139, %v60
  %v148 = vmul.f32 %v140, %v60
  %v149 = vmul.f32 %v141, %v61
  %v150 = vmul.f32 %v142, %v61
  %v151 = vmul.f32 %v143, %v61
  %v152 = vmul.f32 %v144, %v61
  %vm153 = vcmask 1043456
  %v154 = vsel %vm153, 1.0, 0.0
  %v155 = vrot.slane %v154, 4
  %v156 = vadd.f32 %v154, %v155
  %v157 = vrot.slane %v156, 2
  %v158 = vadd.f32 %v156, %v157
  %v159 = vrot.slane %v158, 1
  %v160 = vadd.f32 %v158, %v159
  %v161 = vrcp.pop %v160
  %v162 = vmul.f32 %v145, %v161
  %vm163 = vcmask 588800
  %v164 = vsel %vm163, %v162, 0.0
  %165 = vadd.xlane.f32.xlu0 %v164
  %v166 = vpop.xlane.xlu0 %165
  %v167 = vmul.f32 %v146, %v161
  %v168 = vsel %vm163, %v167, 0.0
  %169 = vadd.xlane.f32.xlu0 %v168
  %v170 = vpop.xlane.xlu0 %169
  %v171 = vmul.f32 %v147, %v161
  %v172 = vsel %vm163, %v171, 0.0
  %173 = vadd.xlane.f32.xlu0 %v172
  %v174 = vpop.xlane.xlu0 %173
  %v175 = vmul.f32 %v148, %v161
  %v176 = vsel %vm163, %v175, 0.0
  %177 = vadd.xlane.f32.xlu0 %v176
  %v178 = vpop.xlane.xlu0 %177
  %v179 = vmul.f32 %v149, %v161
  %v180 = vsel %vm163, %v179, 0.0
  %181 = vadd.xlane.f32.xlu0 %v180
  %v182 = vpop.xlane.xlu0 %181
  %v183 = vmul.f32 %v150, %v161
  %v184 = vsel %vm163, %v183, 0.0
  %185 = vadd.xlane.f32.xlu0 %v184
  %v186 = vpop.xlane.xlu0 %185
  %v187 = vmul.f32 %v151, %v161
  %v188 = vsel %vm163, %v187, 0.0
  %189 = vadd.xlane.f32.xlu0 %v188
  %v190 = vpop.xlane.xlu0 %189
  %v191 = vmul.f32 %v152, %v161
  %v192 = vsel %vm163, %v191, 0.0
  %193 = vadd.xlane.f32.xlu0 %v192
  %v194 = vpop.xlane.xlu0 %193
  %v195 = vmul.f32 %v166, %v166
  %v196 = vmul.f32 %v170, %v170
  %v197 = vmul.f32 %v174, %v174
  %v198 = vmul.f32 %v178, %v178
  %v199 = vmul.f32 %v182, %v182
  %v200 = vmul.f32 %v186, %v186
  %v201 = vmul.f32 %v190, %v190
  %v202 = vmul.f32 %v194, %v194
  %211 = vset.pattern.permute.xlu0 0
  %212 = vperm.xlu0 %211, %v195
  %v213 = vpop.permute.xlu0 %212
  %214 = vset.pattern.permute.xlu0 0
  %215 = vperm.xlu0 %214, %v196
  %v216 = vpop.permute.xlu0 %215
  %217 = vset.pattern.permute.xlu0 0
  %218 = vperm.xlu0 %217, %v197
  %v219 = vpop.permute.xlu0 %218
  %220 = vset.pattern.permute.xlu0 0
  %221 = vperm.xlu0 %220, %v198
  %v222 = vpop.permute.xlu0 %221
  %223 = vset.pattern.permute.xlu0 0
  %224 = vperm.xlu0 %223, %v199
  %v225 = vpop.permute.xlu0 %224
  %226 = vset.pattern.permute.xlu0 0
  %227 = vperm.xlu0 %226, %v200
  %v228 = vpop.permute.xlu0 %227
  %229 = vset.pattern.permute.xlu0 0
  %230 = vperm.xlu0 %229, %v201
  %v231 = vpop.permute.xlu0 %230
  %232 = vset.pattern.permute.xlu0 0
  %233 = vperm.xlu0 %232, %v202
  %v234 = vpop.permute.xlu0 %233
  %v235 = vlaneseq
  %v236 = vand.u32 %v235, 127
  %v237 = vperm.slane %v213, %v236
  %v238 = vperm.slane %v216, %v236
  %v239 = vperm.slane %v219, %v236
  %v240 = vperm.slane %v222, %v236
  %v241 = vperm.slane %v225, %v236
  %v242 = vperm.slane %v228, %v236
  %v243 = vperm.slane %v231, %v236
  %v244 = vperm.slane %v234, %v236
  %vm245 = vcmask 1041409
  %v246 = vsel %vm245, %v238, %v237
  %vm247 = vcmask 1042434
  %v248 = vsel %vm247, %v239, %v246
  %vm249 = vcmask 1043459
  %v250 = vsel %vm249, %v240, %v248
  %vm251 = vcmask 1044484
  %v252 = vsel %vm251, %v241, %v250
  %vm253 = vcmask 1045509
  %v254 = vsel %vm253, %v242, %v252
  %vm255 = vcmask 1046534
  %v256 = vsel %vm255, %v243, %v254
  %vm257 = vcmask 1047559
  %v258 = vsel %vm257, %v244, %v256
  %vm260 = vcmask 64512
  %v261 = vsel %vm260, %v258, 0.0
  %262 = vadd.xlane.f32.xlu0 %v261
  %v263 = vpop.xlane.xlu0 %262
  %v264 = vadd.f32 %v263, 1.0
  %v265 = vrcp.pop %v264
  %v266 = vmul.f32 %v263, %v265
  %v267 = vadd.f32 %v263, 1e-08
  %v268 = vrsqrt.pop %v267
  %v269 = vmul.f32 %v268, %v267
  %v270 = vmul.f32 %v269, %v268
  %v271 = vmul.f32 0.5, %v270
  %v272 = vsub.f32 1.5, %v271
  %v273 = vmul.f32 %v268, %v272
  %vm274 = vweird.f32 %v267
  %vm275 = vweird.f32 %v268
  %vm276 = vmor %vm274, %vm275
  %v277 = vsel %vm276, %v268, %v273
  %v278 = vmul.f32 %v266, %v277
  %v280 = vperm.slane %v278, 0
  %v281 = vperm.slane %v278, 1
  %v282 = vperm.slane %v278, 2
  %v283 = vperm.slane %v278, 3
  %v284 = vperm.slane %v278, 4
  %v285 = vperm.slane %v278, 5
  %v286 = vperm.slane %v278, 6
  %v287 = vperm.slane %v278, 7
  %v296 = vmul.f32 %v166, %v280
  %v297 = vmul.f32 %v170, %v281
  %v298 = vmul.f32 %v174, %v282
  %v299 = vmul.f32 %v178, %v283
  %v300 = vmul.f32 %v182, %v284
  %v301 = vmul.f32 %v186, %v285
  %v302 = vmul.f32 %v190, %v286
  %v303 = vmul.f32 %v194, %v287
  %305 = vset.pattern.permute.xlu0 0
  %306 = vperm.xlu0 %305, %v296
  %v307 = vpop.permute.xlu0 %306
  %310 = vset.pattern.permute.xlu0 0
  %311 = vperm.xlu0 %310, %v297
  %v312 = vpop.permute.xlu0 %311
  %315 = vset.pattern.permute.xlu0 0
  %316 = vperm.xlu0 %315, %v298
  %v317 = vpop.permute.xlu0 %316
  %320 = vset.pattern.permute.xlu0 0
  %321 = vperm.xlu0 %320, %v299
  %v322 = vpop.permute.xlu0 %321
  %325 = vset.pattern.permute.xlu0 0
  %326 = vperm.xlu0 %325, %v300
  %v327 = vpop.permute.xlu0 %326
  %330 = vset.pattern.permute.xlu0 0
  %331 = vperm.xlu0 %330, %v301
  %v332 = vpop.permute.xlu0 %331
  %335 = vset.pattern.permute.xlu0 0
  %336 = vperm.xlu0 %335, %v302
  %v337 = vpop.permute.xlu0 %336
  %340 = vset.pattern.permute.xlu0 0
  %341 = vperm.xlu0 %340, %v303
  %v342 = vpop.permute.xlu0 %341
  %v344 = vmul.f32 %v145, %v307
  %v345 = vmul.f32 %v146, %v312
  %v346 = vmul.f32 %v147, %v317
  %v347 = vmul.f32 %v148, %v322
  %v348 = vmul.f32 %v149, %v327
  %v349 = vmul.f32 %v150, %v332
  %v350 = vmul.f32 %v151, %v337
  %v351 = vmul.f32 %v152, %v342
  %v352 = vsel %vm163, %v344, 0.0
  %v353 = vrot.slane %v352, 4
  %v354 = vadd.f32 %v352, %v353
  %v355 = vrot.slane %v354, 2
  %v356 = vadd.f32 %v354, %v355
  %v357 = vrot.slane %v356, 1
  %v358 = vadd.f32 %v356, %v357
  %v359 = vsel %vm163, %v345, 0.0
  %v360 = vrot.slane %v359, 4
  %v361 = vadd.f32 %v359, %v360
  %v362 = vrot.slane %v361, 2
  %v363 = vadd.f32 %v361, %v362
  %v364 = vrot.slane %v363, 1
  %v365 = vadd.f32 %v363, %v364
  %v366 = vsel %vm163, %v346, 0.0
  %v367 = vrot.slane %v366, 4
  %v368 = vadd.f32 %v366, %v367
  %v369 = vrot.slane %v368, 2
  %v370 = vadd.f32 %v368, %v369
  %v371 = vrot.slane %v370, 1
  %v372 = vadd.f32 %v370, %v371
  %v373 = vsel %vm163, %v347, 0.0
  %v374 = vrot.slane %v373, 4
  %v375 = vadd.f32 %v373, %v374
  %v376 = vrot.slane %v375, 2
  %v377 = vadd.f32 %v375, %v376
  %v378 = vrot.slane %v377, 1
  %v379 = vadd.f32 %v377, %v378
  %v380 = vsel %vm163, %v348, 0.0
  %v381 = vrot.slane %v380, 4
  %v382 = vadd.f32 %v380, %v381
  %v383 = vrot.slane %v382, 2
  %v384 = vadd.f32 %v382, %v383
  %v385 = vrot.slane %v384, 1
  %v386 = vadd.f32 %v384, %v385
  %v387 = vsel %vm163, %v349, 0.0
  %v388 = vrot.slane %v387, 4
  %v389 = vadd.f32 %v387, %v388
  %v390 = vrot.slane %v389, 2
  %v391 = vadd.f32 %v389, %v390
  %v392 = vrot.slane %v391, 1
  %v393 = vadd.f32 %v391, %v392
  %v394 = vsel %vm163, %v350, 0.0
  %v395 = vrot.slane %v394, 4
  %v396 = vadd.f32 %v394, %v395
  %v397 = vrot.slane %v396, 2
  %v398 = vadd.f32 %v396, %v397
  %v399 = vrot.slane %v398, 1
  %v400 = vadd.f32 %v398, %v399
  %v401 = vsel %vm163, %v351, 0.0
  %v402 = vrot.slane %v401, 4
  %v403 = vadd.f32 %v401, %v402
  %v404 = vrot.slane %v403, 2
  %v405 = vadd.f32 %v403, %v404
  %v406 = vrot.slane %v405, 1
  %v407 = vadd.f32 %v405, %v406
  %v408 = vadd.f32 %v358, 0.0
  %v409 = vadd.f32 %v365, 0.0
  %v410 = vadd.f32 %v372, 0.0
  %v411 = vadd.f32 %v379, 0.0
  %v412 = vadd.f32 %v386, 0.0
  %v413 = vadd.f32 %v393, 0.0
  %v414 = vadd.f32 %v400, 0.0
  %v415 = vadd.f32 %v407, 0.0
  %v416 = vsel %vm163, %v408, -inf
  %v417 = vsel %vm163, %v409, -inf
  %v418 = vsel %vm163, %v410, -inf
  %v419 = vmax.f32 %v416, %v418
  %v420 = vsel %vm163, %v411, -inf
  %v421 = vmax.f32 %v417, %v420
  %v422 = vmax.f32 %v419, %v421
  %v423 = vsel %vm163, %v412, -inf
  %v424 = vsel %vm163, %v413, -inf
  %v425 = vsel %vm163, %v414, -inf
  %v426 = vmax.f32 %v423, %v425
  %v427 = vsel %vm163, %v415, -inf
  %v428 = vmax.f32 %v424, %v427
  %v429 = vmax.f32 %v426, %v428
  %v430 = vsub.f32 %v408, %v422
  %v431 = vsub.f32 %v409, %v422
  %v432 = vsub.f32 %v410, %v422
  %v433 = vsub.f32 %v411, %v422
  %v434 = vsub.f32 %v412, %v429
  %v435 = vsub.f32 %v413, %v429
  %v436 = vsub.f32 %v414, %v429
  %v437 = vsub.f32 %v415, %v429
  %v438 = vmul.f32 %v430, 1.442695
  %v439 = vpow.pop %v438
  %v440 = vmul.f32 %v431, 1.442695
  %v441 = vpow.pop %v440
  %v442 = vmul.f32 %v432, 1.442695
  %v443 = vpow.pop %v442
  %v444 = vmul.f32 %v433, 1.442695
  %v445 = vpow.pop %v444
  %v446 = vmul.f32 %v434, 1.442695
  %v447 = vpow.pop %v446
  %v448 = vmul.f32 %v435, 1.442695
  %v449 = vpow.pop %v448
  %v450 = vmul.f32 %v436, 1.442695
  %v451 = vpow.pop %v450
  %v452 = vmul.f32 %v437, 1.442695
  %v453 = vpow.pop %v452
  %v462 = vrot.slane %v441, 7
  %v463 = vsel %vm245, %v462, %v439
  %v464 = vrot.slane %v443, 6
  %v465 = vsel %vm247, %v464, %v463
  %v466 = vrot.slane %v445, 5
  %v467 = vsel %vm249, %v466, %v465
  %v468 = vrot.slane %v449, 7
  %v469 = vsel %vm245, %v468, %v447
  %v470 = vrot.slane %v451, 6
  %v471 = vsel %vm247, %v470, %v469
  %v472 = vrot.slane %v453, 5
  %v473 = vsel %vm249, %v472, %v471
  %v476 = vsel %vm17, %v467, 0.0
  %v477 = vrot.slane %v476, 4
  %v478 = vadd.f32 %v476, %v477
  %v479 = vrot.slane %v478, 2
  %v480 = vadd.f32 %v478, %v479
  %v481 = vrot.slane %v480, 1
  %v482 = vadd.f32 %v480, %v481
  %v483 = vsel %vm17, %v473, 0.0
  %v484 = vrot.slane %v483, 4
  %v485 = vadd.f32 %v483, %v484
  %v486 = vrot.slane %v485, 2
  %v487 = vadd.f32 %v485, %v486
  %v488 = vrot.slane %v487, 1
  %v489 = vadd.f32 %v487, %v488
  %v490 = vrcp.pop %v482
  %v491 = vrcp.pop %v489
  %v492 = vperm.slane %v490, 0
  %v493 = vperm.slane %v491, 0
  %v494 = vmul.f32 %v439, %v492
  %v495 = vmul.f32 %v441, %v492
  %v496 = vmul.f32 %v443, %v492
  %v497 = vmul.f32 %v445, %v492
  %v498 = vmul.f32 %v447, %v493
  %v499 = vmul.f32 %v449, %v493
  %v500 = vmul.f32 %v451, %v493
  %v501 = vmul.f32 %v453, %v493
  %v502 = vperm.slane %v494, 0
  %v503 = vmul.f32 %v145, %v502
  %v504 = vsel %vm163, %v503, 0.0
  %505 = vadd.xlane.f32.xlu0 %v504
  %v506 = vpop.xlane.xlu0 %505
  %v507 = vperm.slane %v495, 0
  %v508 = vmul.f32 %v146, %v507
  %v509 = vsel %vm163, %v508, 0.0
  %510 = vadd.xlane.f32.xlu0 %v509
  %v511 = vpop.xlane.xlu0 %510
  %v512 = vperm.slane %v496, 0
  %v513 = vmul.f32 %v147, %v512
  %v514 = vsel %vm163, %v513, 0.0
  %515 = vadd.xlane.f32.xlu0 %v514
  %v516 = vpop.xlane.xlu0 %515
  %v517 = vperm.slane %v497, 0
  %v518 = vmul.f32 %v148, %v517
  %v519 = vsel %vm163, %v518, 0.0
  %520 = vadd.xlane.f32.xlu0 %v519
  %v521 = vpop.xlane.xlu0 %520
  %v522 = vperm.slane %v498, 0
  %v523 = vmul.f32 %v149, %v522
  %v524 = vsel %vm163, %v523, 0.0
  %525 = vadd.xlane.f32.xlu0 %v524
  %v526 = vpop.xlane.xlu0 %525
  %v527 = vperm.slane %v499, 0
  %v528 = vmul.f32 %v150, %v527
  %v529 = vsel %vm163, %v528, 0.0
  %530 = vadd.xlane.f32.xlu0 %v529
  %v531 = vpop.xlane.xlu0 %530
  %v532 = vperm.slane %v500, 0
  %v533 = vmul.f32 %v151, %v532
  %v534 = vsel %vm163, %v533, 0.0
  %535 = vadd.xlane.f32.xlu0 %v534
  %v536 = vpop.xlane.xlu0 %535
  %v537 = vperm.slane %v501, 0
  %v538 = vmul.f32 %v152, %v537
  %v539 = vsel %vm163, %v538, 0.0
  %540 = vadd.xlane.f32.xlu0 %v539
  %v541 = vpop.xlane.xlu0 %540
  %v542 = vmul.f32 %v506, %v506
  %v543 = vmul.f32 %v511, %v511
  %v544 = vmul.f32 %v516, %v516
  %v545 = vmul.f32 %v521, %v521
  %v546 = vmul.f32 %v526, %v526
  %v547 = vmul.f32 %v531, %v531
  %v548 = vmul.f32 %v536, %v536
  %v549 = vmul.f32 %v541, %v541
  %558 = vset.pattern.permute.xlu0 0
  %559 = vperm.xlu0 %558, %v542
  %v560 = vpop.permute.xlu0 %559
  %561 = vset.pattern.permute.xlu0 0
  %562 = vperm.xlu0 %561, %v543
  %v563 = vpop.permute.xlu0 %562
  %564 = vset.pattern.permute.xlu0 0
  %565 = vperm.xlu0 %564, %v544
  %v566 = vpop.permute.xlu0 %565
  %567 = vset.pattern.permute.xlu0 0
  %568 = vperm.xlu0 %567, %v545
  %v569 = vpop.permute.xlu0 %568
  %570 = vset.pattern.permute.xlu0 0
  %571 = vperm.xlu0 %570, %v546
  %v572 = vpop.permute.xlu0 %571
  %573 = vset.pattern.permute.xlu0 0
  %574 = vperm.xlu0 %573, %v547
  %v575 = vpop.permute.xlu0 %574
  %576 = vset.pattern.permute.xlu0 0
  %577 = vperm.xlu0 %576, %v548
  %v578 = vpop.permute.xlu0 %577
  %579 = vset.pattern.permute.xlu0 0
  %580 = vperm.xlu0 %579, %v549
  %v581 = vpop.permute.xlu0 %580
  %v582 = vperm.slane %v560, %v236
  %v583 = vperm.slane %v563, %v236
  %v584 = vperm.slane %v566, %v236
  %v585 = vperm.slane %v569, %v236
  %v586 = vperm.slane %v572, %v236
  %v587 = vperm.slane %v575, %v236
  %v588 = vperm.slane %v578, %v236
  %v589 = vperm.slane %v581, %v236
  %v590 = vsel %vm245, %v583, %v582
  %v591 = vsel %vm247, %v584, %v590
  %v592 = vsel %vm249, %v585, %v591
  %v593 = vsel %vm251, %v586, %v592
  %v594 = vsel %vm253, %v587, %v593
  %v595 = vsel %vm255, %v588, %v594
  %v596 = vsel %vm257, %v589, %v595
  %v598 = vsel %vm260, %v596, 0.0
  %599 = vadd.xlane.f32.xlu0 %v598
  %v600 = vpop.xlane.xlu0 %599
  %v601 = vadd.f32 %v600, 1.0
  %v602 = vrcp.pop %v601
  %v603 = vmul.f32 %v600, %v602
  %v604 = vadd.f32 %v600, 1e-08
  %v605 = vrsqrt.pop %v604
  %v606 = vmul.f32 %v605, %v604
  %v607 = vmul.f32 %v606, %v605
  %v608 = vmul.f32 0.5, %v607
  %v609 = vsub.f32 1.5, %v608
  %v610 = vmul.f32 %v605, %v609
  %vm611 = vweird.f32 %v604
  %vm612 = vweird.f32 %v605
  %vm613 = vmor %vm611, %vm612
  %v614 = vsel %vm613, %v605, %v610
  %v615 = vmul.f32 %v603, %v614
  %v617 = vperm.slane %v615, 0
  %v618 = vperm.slane %v615, 1
  %v619 = vperm.slane %v615, 2
  %v620 = vperm.slane %v615, 3
  %v621 = vperm.slane %v615, 4
  %v622 = vperm.slane %v615, 5
  %v623 = vperm.slane %v615, 6
  %v624 = vperm.slane %v615, 7
  %v633 = vmul.f32 %v506, %v617
  %v634 = vmul.f32 %v511, %v618
  %v635 = vmul.f32 %v516, %v619
  %v636 = vmul.f32 %v521, %v620
  %v637 = vmul.f32 %v526, %v621
  %v638 = vmul.f32 %v531, %v622
  %v639 = vmul.f32 %v536, %v623
  %v640 = vmul.f32 %v541, %v624
  %642 = vset.pattern.permute.xlu0 0
  %643 = vperm.xlu0 %642, %v633
  %v644 = vpop.permute.xlu0 %643
  %647 = vset.pattern.permute.xlu0 0
  %648 = vperm.xlu0 %647, %v634
  %v649 = vpop.permute.xlu0 %648
  %652 = vset.pattern.permute.xlu0 0
  %653 = vperm.xlu0 %652, %v635
  %v654 = vpop.permute.xlu0 %653
  %657 = vset.pattern.permute.xlu0 0
  %658 = vperm.xlu0 %657, %v636
  %v659 = vpop.permute.xlu0 %658
  %662 = vset.pattern.permute.xlu0 0
  %663 = vperm.xlu0 %662, %v637
  %v664 = vpop.permute.xlu0 %663
  %667 = vset.pattern.permute.xlu0 0
  %668 = vperm.xlu0 %667, %v638
  %v669 = vpop.permute.xlu0 %668
  %672 = vset.pattern.permute.xlu0 0
  %673 = vperm.xlu0 %672, %v639
  %v674 = vpop.permute.xlu0 %673
  %677 = vset.pattern.permute.xlu0 0
  %678 = vperm.xlu0 %677, %v640
  %v679 = vpop.permute.xlu0 %678
  %v681 = vmul.f32 %v145, %v644
  %v682 = vmul.f32 %v146, %v649
  %v683 = vmul.f32 %v147, %v654
  %v684 = vmul.f32 %v148, %v659
  %v685 = vmul.f32 %v149, %v664
  %v686 = vmul.f32 %v150, %v669
  %v687 = vmul.f32 %v151, %v674
  %v688 = vmul.f32 %v152, %v679
  %v689 = vsel %vm163, %v681, 0.0
  %v690 = vrot.slane %v689, 4
  %v691 = vadd.f32 %v689, %v690
  %v692 = vrot.slane %v691, 2
  %v693 = vadd.f32 %v691, %v692
  %v694 = vrot.slane %v693, 1
  %v695 = vadd.f32 %v693, %v694
  %v696 = vsel %vm163, %v682, 0.0
  %v697 = vrot.slane %v696, 4
  %v698 = vadd.f32 %v696, %v697
  %v699 = vrot.slane %v698, 2
  %v700 = vadd.f32 %v698, %v699
  %v701 = vrot.slane %v700, 1
  %v702 = vadd.f32 %v700, %v701
  %v703 = vsel %vm163, %v683, 0.0
  %v704 = vrot.slane %v703, 4
  %v705 = vadd.f32 %v703, %v704
  %v706 = vrot.slane %v705, 2
  %v707 = vadd.f32 %v705, %v706
  %v708 = vrot.slane %v707, 1
  %v709 = vadd.f32 %v707, %v708
  %v710 = vsel %vm163, %v684, 0.0
  %v711 = vrot.slane %v710, 4
  %v712 = vadd.f32 %v710, %v711
  %v713 = vrot.slane %v712, 2
  %v714 = vadd.f32 %v712, %v713
  %v715 = vrot.slane %v714, 1
  %v716 = vadd.f32 %v714, %v715
  %v717 = vsel %vm163, %v685, 0.0
  %v718 = vrot.slane %v717, 4
  %v719 = vadd.f32 %v717, %v718
  %v720 = vrot.slane %v719, 2
  %v721 = vadd.f32 %v719, %v720
  %v722 = vrot.slane %v721, 1
  %v723 = vadd.f32 %v721, %v722
  %v724 = vsel %vm163, %v686, 0.0
  %v725 = vrot.slane %v724, 4
  %v726 = vadd.f32 %v724, %v725
  %v727 = vrot.slane %v726, 2
  %v728 = vadd.f32 %v726, %v727
  %v729 = vrot.slane %v728, 1
  %v730 = vadd.f32 %v728, %v729
  %v731 = vsel %vm163, %v687, 0.0
  %v732 = vrot.slane %v731, 4
  %v733 = vadd.f32 %v731, %v732
  %v734 = vrot.slane %v733, 2
  %v735 = vadd.f32 %v733, %v734
  %v736 = vrot.slane %v735, 1
  %v737 = vadd.f32 %v735, %v736
  %v738 = vsel %vm163, %v688, 0.0
  %v739 = vrot.slane %v738, 4
  %v740 = vadd.f32 %v738, %v739
  %v741 = vrot.slane %v740, 2
  %v742 = vadd.f32 %v740, %v741
  %v743 = vrot.slane %v742, 1
  %v744 = vadd.f32 %v742, %v743
  %v745 = vadd.f32 %v408, %v695
  %v746 = vadd.f32 %v409, %v702
  %v747 = vadd.f32 %v410, %v709
  %v748 = vadd.f32 %v411, %v716
  %v749 = vadd.f32 %v412, %v723
  %v750 = vadd.f32 %v413, %v730
  %v751 = vadd.f32 %v414, %v737
  %v752 = vadd.f32 %v415, %v744
  %v753 = vsel %vm163, %v745, -inf
  %v754 = vsel %vm163, %v746, -inf
  %v755 = vsel %vm163, %v747, -inf
  %v756 = vmax.f32 %v753, %v755
  %v757 = vsel %vm163, %v748, -inf
  %v758 = vmax.f32 %v754, %v757
  %v759 = vmax.f32 %v756, %v758
  %v760 = vsel %vm163, %v749, -inf
  %v761 = vsel %vm163, %v750, -inf
  %v762 = vsel %vm163, %v751, -inf
  %v763 = vmax.f32 %v760, %v762
  %v764 = vsel %vm163, %v752, -inf
  %v765 = vmax.f32 %v761, %v764
  %v766 = vmax.f32 %v763, %v765
  %v767 = vsub.f32 %v745, %v759
  %v768 = vsub.f32 %v746, %v759
  %v769 = vsub.f32 %v747, %v759
  %v770 = vsub.f32 %v748, %v759
  %v771 = vsub.f32 %v749, %v766
  %v772 = vsub.f32 %v750, %v766
  %v773 = vsub.f32 %v751, %v766
  %v774 = vsub.f32 %v752, %v766
  %v775 = vmul.f32 %v767, 1.442695
  %v776 = vpow.pop %v775
  %v777 = vmul.f32 %v768, 1.442695
  %v778 = vpow.pop %v777
  %v779 = vmul.f32 %v769, 1.442695
  %v780 = vpow.pop %v779
  %v781 = vmul.f32 %v770, 1.442695
  %v782 = vpow.pop %v781
  %v783 = vmul.f32 %v771, 1.442695
  %v784 = vpow.pop %v783
  %v785 = vmul.f32 %v772, 1.442695
  %v786 = vpow.pop %v785
  %v787 = vmul.f32 %v773, 1.442695
  %v788 = vpow.pop %v787
  %v789 = vmul.f32 %v774, 1.442695
  %v790 = vpow.pop %v789
  %v799 = vrot.slane %v778, 7
  %v800 = vsel %vm245, %v799, %v776
  %v801 = vrot.slane %v780, 6
  %v802 = vsel %vm247, %v801, %v800
  %v803 = vrot.slane %v782, 5
  %v804 = vsel %vm249, %v803, %v802
  %v805 = vrot.slane %v786, 7
  %v806 = vsel %vm245, %v805, %v784
  %v807 = vrot.slane %v788, 6
  %v808 = vsel %vm247, %v807, %v806
  %v809 = vrot.slane %v790, 5
  %v810 = vsel %vm249, %v809, %v808
  %v813 = vsel %vm17, %v804, 0.0
  %v814 = vrot.slane %v813, 4
  %v815 = vadd.f32 %v813, %v814
  %v816 = vrot.slane %v815, 2
  %v817 = vadd.f32 %v815, %v816
  %v818 = vrot.slane %v817, 1
  %v819 = vadd.f32 %v817, %v818
  %v820 = vsel %vm17, %v810, 0.0
  %v821 = vrot.slane %v820, 4
  %v822 = vadd.f32 %v820, %v821
  %v823 = vrot.slane %v822, 2
  %v824 = vadd.f32 %v822, %v823
  %v825 = vrot.slane %v824, 1
  %v826 = vadd.f32 %v824, %v825
  %v827 = vrcp.pop %v819
  %v828 = vrcp.pop %v826
  %v829 = vperm.slane %v827, 0
  %v830 = vperm.slane %v828, 0
  %v831 = vmul.f32 %v776, %v829
  %v832 = vmul.f32 %v778, %v829
  %v833 = vmul.f32 %v780, %v829
  %v834 = vmul.f32 %v782, %v829
  %v835 = vmul.f32 %v784, %v830
  %v836 = vmul.f32 %v786, %v830
  %v837 = vmul.f32 %v788, %v830
  %v838 = vmul.f32 %v790, %v830
  %v839 = vperm.slane %v831, 0
  %v840 = vmul.f32 %v145, %v839
  %v841 = vsel %vm163, %v840, 0.0
  %842 = vadd.xlane.f32.xlu0 %v841
  %v843 = vpop.xlane.xlu0 %842
  %v844 = vperm.slane %v832, 0
  %v845 = vmul.f32 %v146, %v844
  %v846 = vsel %vm163, %v845, 0.0
  %847 = vadd.xlane.f32.xlu0 %v846
  %v848 = vpop.xlane.xlu0 %847
  %v849 = vperm.slane %v833, 0
  %v850 = vmul.f32 %v147, %v849
  %v851 = vsel %vm163, %v850, 0.0
  %852 = vadd.xlane.f32.xlu0 %v851
  %v853 = vpop.xlane.xlu0 %852
  %v854 = vperm.slane %v834, 0
  %v855 = vmul.f32 %v148, %v854
  %v856 = vsel %vm163, %v855, 0.0
  %857 = vadd.xlane.f32.xlu0 %v856
  %v858 = vpop.xlane.xlu0 %857
  %v859 = vperm.slane %v835, 0
  %v860 = vmul.f32 %v149, %v859
  %v861 = vsel %vm163, %v860, 0.0
  %862 = vadd.xlane.f32.xlu0 %v861
  %v863 = vpop.xlane.xlu0 %862
  %v864 = vperm.slane %v836, 0
  %v865 = vmul.f32 %v150, %v864
  %v866 = vsel %vm163, %v865, 0.0
  %867 = vadd.xlane.f32.xlu0 %v866
  %v868 = vpop.xlane.xlu0 %867
  %v869 = vperm.slane %v837, 0
  %v870 = vmul.f32 %v151, %v869
  %v871 = vsel %vm163, %v870, 0.0
  %872 = vadd.xlane.f32.xlu0 %v871
  %v873 = vpop.xlane.xlu0 %872
  %v874 = vperm.slane %v838, 0
  %v875 = vmul.f32 %v152, %v874
  %v876 = vsel %vm163, %v875, 0.0
  %877 = vadd.xlane.f32.xlu0 %v876
  %v878 = vpop.xlane.xlu0 %877
  %v879 = vmul.f32 %v843, %v843
  %v880 = vmul.f32 %v848, %v848
  %v881 = vmul.f32 %v853, %v853
  %v882 = vmul.f32 %v858, %v858
  %v883 = vmul.f32 %v863, %v863
  %v884 = vmul.f32 %v868, %v868
  %v885 = vmul.f32 %v873, %v873
  %v886 = vmul.f32 %v878, %v878
  %895 = vset.pattern.permute.xlu0 0
  %896 = vperm.xlu0 %895, %v879
  %v897 = vpop.permute.xlu0 %896
  %898 = vset.pattern.permute.xlu0 0
  %899 = vperm.xlu0 %898, %v880
  %v900 = vpop.permute.xlu0 %899
  %901 = vset.pattern.permute.xlu0 0
  %902 = vperm.xlu0 %901, %v881
  %v903 = vpop.permute.xlu0 %902
  %904 = vset.pattern.permute.xlu0 0
  %905 = vperm.xlu0 %904, %v882
  %v906 = vpop.permute.xlu0 %905
  %907 = vset.pattern.permute.xlu0 0
  %908 = vperm.xlu0 %907, %v883
  %v909 = vpop.permute.xlu0 %908
  %910 = vset.pattern.permute.xlu0 0
  %911 = vperm.xlu0 %910, %v884
  %v912 = vpop.permute.xlu0 %911
  %913 = vset.pattern.permute.xlu0 0
  %914 = vperm.xlu0 %913, %v885
  %v915 = vpop.permute.xlu0 %914
  %916 = vset.pattern.permute.xlu0 0
  %917 = vperm.xlu0 %916, %v886
  %v918 = vpop.permute.xlu0 %917
  %v919 = vperm.slane %v897, %v236
  %v920 = vperm.slane %v900, %v236
  %v921 = vperm.slane %v903, %v236
  %v922 = vperm.slane %v906, %v236
  %v923 = vperm.slane %v909, %v236
  %v924 = vperm.slane %v912, %v236
  %v925 = vperm.slane %v915, %v236
  %v926 = vperm.slane %v918, %v236
  %v927 = vsel %vm245, %v920, %v919
  %v928 = vsel %vm247, %v921, %v927
  %v929 = vsel %vm249, %v922, %v928
  %v930 = vsel %vm251, %v923, %v929
  %v931 = vsel %vm253, %v924, %v930
  %v932 = vsel %vm255, %v925, %v931
  %v933 = vsel %vm257, %v926, %v932
  %v935 = vsel %vm260, %v933, 0.0
  %936 = vadd.xlane.f32.xlu0 %v935
  %v937 = vpop.xlane.xlu0 %936
  %v938 = vadd.f32 %v937, 1.0
  %v939 = vrcp.pop %v938
  %v940 = vmul.f32 %v937, %v939
  %v941 = vadd.f32 %v937, 1e-08
  %v942 = vrsqrt.pop %v941
  %v943 = vmul.f32 %v942, %v941
  %v944 = vmul.f32 %v943, %v942
  %v945 = vmul.f32 0.5, %v944
  %v946 = vsub.f32 1.5, %v945
  %v947 = vmul.f32 %v942, %v946
  %vm948 = vweird.f32 %v941
  %vm949 = vweird.f32 %v942
  %vm950 = vmor %vm948, %vm949
  %v951 = vsel %vm950, %v942, %v947
  %v952 = vmul.f32 %v940, %v951
  %v954 = vperm.slane %v952, 0
  %v955 = vperm.slane %v952, 1
  %v956 = vperm.slane %v952, 2
  %v957 = vperm.slane %v952, 3
  %v958 = vperm.slane %v952, 4
  %v959 = vperm.slane %v952, 5
  %v960 = vperm.slane %v952, 6
  %v961 = vperm.slane %v952, 7
  %v970 = vmul.f32 %v843, %v954
  %v971 = vmul.f32 %v848, %v955
  %v972 = vmul.f32 %v853, %v956
  %v973 = vmul.f32 %v858, %v957
  %v974 = vmul.f32 %v863, %v958
  %v975 = vmul.f32 %v868, %v959
  %v976 = vmul.f32 %v873, %v960
  %v977 = vmul.f32 %v878, %v961
  %v978 = vmul.f32 %v970, %v970
  %v979 = vmul.f32 %v971, %v971
  %v980 = vmul.f32 %v972, %v972
  %v981 = vmul.f32 %v973, %v973
  %v982 = vmul.f32 %v974, %v974
  %v983 = vmul.f32 %v975, %v975
  %v984 = vmul.f32 %v976, %v976
  %v985 = vmul.f32 %v977, %v977
  %994 = vset.pattern.permute.xlu0 0
  %995 = vperm.xlu0 %994, %v978
  %v996 = vpop.permute.xlu0 %995
  %997 = vset.pattern.permute.xlu0 0
  %998 = vperm.xlu0 %997, %v979
  %v999 = vpop.permute.xlu0 %998
  %1000 = vset.pattern.permute.xlu0 0
  %1001 = vperm.xlu0 %1000, %v980
  %v1002 = vpop.permute.xlu0 %1001
  %1003 = vset.pattern.permute.xlu0 0
  %1004 = vperm.xlu0 %1003, %v981
  %v1005 = vpop.permute.xlu0 %1004
  %1006 = vset.pattern.permute.xlu0 0
  %1007 = vperm.xlu0 %1006, %v982
  %v1008 = vpop.permute.xlu0 %1007
  %1009 = vset.pattern.permute.xlu0 0
  %1010 = vperm.xlu0 %1009, %v983
  %v1011 = vpop.permute.xlu0 %1010
  %1012 = vset.pattern.permute.xlu0 0
  %1013 = vperm.xlu0 %1012, %v984
  %v1014 = vpop.permute.xlu0 %1013
  %1015 = vset.pattern.permute.xlu0 0
  %1016 = vperm.xlu0 %1015, %v985
  %v1017 = vpop.permute.xlu0 %1016
  %v1018 = vperm.slane %v996, %v236
  %v1019 = vperm.slane %v999, %v236
  %v1020 = vperm.slane %v1002, %v236
  %v1021 = vperm.slane %v1005, %v236
  %v1022 = vperm.slane %v1008, %v236
  %v1023 = vperm.slane %v1011, %v236
  %v1024 = vperm.slane %v1014, %v236
  %v1025 = vperm.slane %v1017, %v236
  %v1026 = vsel %vm245, %v1019, %v1018
  %v1027 = vsel %vm247, %v1020, %v1026
  %v1028 = vsel %vm249, %v1021, %v1027
  %v1029 = vsel %vm245, %v1023, %v1022
  %v1030 = vsel %vm247, %v1024, %v1029
  %v1031 = vsel %vm249, %v1025, %v1030
  %vm1034 = vcmask 60416
  %v1035 = vsel %vm1034, %v1028, 0.0
  %1036 = vadd.xlane.f32.xlu0 %v1035
  %v1037 = vpop.xlane.xlu0 %1036
  %v1038 = vsel %vm1034, %v1031, 0.0
  %1039 = vadd.xlane.f32.xlu0 %v1038
  %v1040 = vpop.xlane.xlu0 %1039
  %v1041 = vrsqrt.pop %v1037
  %v1042 = vmul.f32 %v1041, %v1037
  %v1043 = vmul.f32 %v1042, %v1041
  %v1044 = vmul.f32 0.5, %v1043
  %v1045 = vsub.f32 1.5, %v1044
  %v1046 = vmul.f32 %v1041, %v1045
  %v1047 = vmul.f32 %v1037, %v1046
  %vm1048 = vcmp.eq.f32.partialorder %v1037, inf
  %v1049 = vsel %vm1048, %v1037, %v1047
  %vm1050 = vcmp.eq.f32.partialorder %v1037, 0.0
  %v1051 = vand.u32 %v1037, 2147483648
  %v1052 = vsel %vm1050, %v1051, %v1049
  %v1053 = vrsqrt.pop %v1040
  %v1054 = vmul.f32 %v1053, %v1040
  %v1055 = vmul.f32 %v1054, %v1053
  %v1056 = vmul.f32 0.5, %v1055
  %v1057 = vsub.f32 1.5, %v1056
  %v1058 = vmul.f32 %v1053, %v1057
  %v1059 = vmul.f32 %v1040, %v1058
  %vm1060 = vcmp.eq.f32.partialorder %v1040, inf
  %v1061 = vsel %vm1060, %v1040, %v1059
  %vm1062 = vcmp.eq.f32.partialorder %v1040, 0.0
  %v1063 = vand.u32 %v1040, 2147483648
  %v1064 = vsel %vm1062, %v1063, %v1061
  %v1067 = vperm.slane %v1052, %v236
  %v1068 = vperm.slane %v1064, %v236
  %v1069 = vsel %vm245, %v1068, %v1067
  %vm1071 = vcmask 25600
  %1072 = vst.msk [vmem:[%s3] sm:$0x3] %vm1071, %v1069
  %1081 = vset.pattern.permute.xlu0 0
  %1082 = vperm.xlu0 %1081, %v970
  %v1083 = vpop.permute.xlu0 %1082
  %1084 = vset.pattern.permute.xlu0 0
  %1085 = vperm.xlu0 %1084, %v971
  %v1086 = vpop.permute.xlu0 %1085
  %1087 = vset.pattern.permute.xlu0 0
  %1088 = vperm.xlu0 %1087, %v972
  %v1089 = vpop.permute.xlu0 %1088
  %1090 = vset.pattern.permute.xlu0 0
  %1091 = vperm.xlu0 %1090, %v973
  %v1092 = vpop.permute.xlu0 %1091
  %1093 = vset.pattern.permute.xlu0 0
  %1094 = vperm.xlu0 %1093, %v974
  %v1095 = vpop.permute.xlu0 %1094
  %1096 = vset.pattern.permute.xlu0 0
  %1097 = vperm.xlu0 %1096, %v975
  %v1098 = vpop.permute.xlu0 %1097
  %1099 = vset.pattern.permute.xlu0 0
  %1100 = vperm.xlu0 %1099, %v976
  %v1101 = vpop.permute.xlu0 %1100
  %1102 = vset.pattern.permute.xlu0 0
  %1103 = vperm.xlu0 %1102, %v977
  %v1104 = vpop.permute.xlu0 %1103
  %v1105 = vperm.slane %v1083, %v236
  %v1106 = vadd.s32 %v236, 4294967288
  %v1107 = vperm.slane %v1086, %v1106
  %vm1108 = vcmask 130112
  %v1109 = vsel %vm1108, %v1107, %v1105
  %v1110 = vadd.s32 %v236, 4294967280
  %v1111 = vperm.slane %v1089, %v1110
  %vm1112 = vcmask 195712
  %v1113 = vsel %vm1112, %v1111, %v1109
  %v1114 = vadd.s32 %v236, 4294967272
  %v1115 = vperm.slane %v1092, %v1114
  %vm1116 = vcmask 261312
  %v1117 = vsel %vm1116, %v1115, %v1113
  %v1118 = vperm.slane %v1095, %v236
  %v1119 = vperm.slane %v1098, %v1106
  %v1120 = vsel %vm1108, %v1119, %v1118
  %v1121 = vperm.slane %v1101, %v1110
  %v1122 = vsel %vm1112, %v1121, %v1120
  %v1123 = vperm.slane %v1104, %v1114
  %v1124 = vsel %vm1116, %v1123, %v1122
  %v1125 = vsel %vm245, %v1124, %v1117
  %vm1127 = vcmask 254976
  %1128 = vst.msk [vmem:[%s2] sm:$0x3] %vm1127, %v1125
  // Predicated region
  $region10: #{capsule_network_forward.8} parent=0 // pred_check
    _
  $region11: #{capsule_network_forward.8} parent=0 // pred_check_branch
    %1130 = sbr.rel (0) target = $region13
  $region12: #{capsule_network_forward.8} parent=0 // pred_region
    _
  $region13: #{capsule_network_forward.8} parent=0 // pred_fallthru
    _
  // Predicated region
  $region14: #{capsule_network_forward.8} parent=0 // pred_check
    _
  $region15: #{capsule_network_forward.8} parent=0 // pred_check_branch
    %1132 = sbr.rel (0) target = $region17
  $region16: #{capsule_network_forward.8} parent=0 // pred_region
    _
  $region17: #{capsule_network_forward.8} parent=0 // pred_fallthru
    _
  // Predicated region
  $region18: #{capsule_network_forward.8} parent=0 // pred_check
    _
  $region19: #{capsule_network_forward.8} parent=0 // pred_check_branch
    %1134 = sbr.rel (0) target = $region21
  $region20: #{capsule_network_forward.8} parent=0 // pred_region
    _
  $region21: #{capsule_network_forward.8} parent=0 // pred_fallthru
    _
  // Predicated region
  $region22: #{capsule_network_forward.8} parent=0 // pred_check
    _
  $region23: #{capsule_network_forward.8} parent=0 // pred_check_branch
    %1136 = sbr.rel (0) target = $region25
  $region24: #{capsule_network_forward.8} parent=0 // pred_region
    _
  $region25: #{capsule_network_forward.8} parent=0 // pred_fallthru
    _

// kernel: capsule_network_forward.10
$region0: #{capsule_network_forward.10}
  #allocation0 [shape = 'u32[]', space=smem, size = 0x4, offset = 0x4, fixed_abs, tag = 'smem constant byte address 0x4 - core index']
  #allocation1 [shape = 'u32[72,128]{1,0:T(1,128)}', space=vmem, size = 0x9000, scoped, tag = 'internal scratch']
  %s0 = inlined_call_operand.vmem [shape: f32[2,512], index: 0, kind: input, shape index: {}]
  %s1 = inlined_call_operand.vmem [shape: f32[512,1024], index: 1, kind: input, shape index: {}]
  %s2 = inlined_call_operand.vmem [shape: f32[1,1024], index: 2, kind: input, shape index: {}]
  %s3 = inlined_call_operand.vmem [shape: f32[2,1024], index: 3, kind: output, shape index: {}]
  %s4 = sld [smem:[#allocation0]]
  $region68: #{capsule_network_forward.10} parent=0
    _
  %s6 = ssub.s32 1, %s4
  %s7 = scalar_select 0, %s6, %s4
  $region1: #{capsule_network_forward.10} parent=0
    #allocation2 [shape = 'u8[2097152]{0}', space=vmem, size = 0x200000, scoped, tag = 'input window, operand 1']
    loop: start=0, step=1, limit=4
    $region2: #{capsule_network_forward.10} parent=1 // loop_pre_header
      _
    $region3: #{capsule_network_forward.10} parent=1 // loop_header
      %s9 = sphi 0, %s13
      %p10 = scmp.ge.s32.totalorder %s9, 4
      %s16 = sphi 0, %s28
      %s17 = sphi 0, %s24
      %s18 = sphi 0, %s16
      %s19 = sphi 0, %s17
      %s20 = sphi 0, %s18
      %s21 = sphi 0, %s19
      %s31 = sphi 0, %s33
      %s34 = sphi 0, %s31
      %s35 = sphi 0, %s34
      %s51 = sphi 0, %s35
      %s57 = sphi 0, %s59
      %s60 = sphi 0, %s57
      %s61 = sphi 0, %s60
      %s77 = sphi 0, %s61
      %s83 = sphi 0, %s85
      %s86 = sphi 0, %s83
      %s87 = sphi 0, %s86
      %s103 = sphi 0, %s87
      %s111 = sphi 0, %s113
      %s114 = sphi 0, %s111
      %s115 = sphi 0, %s114
      %s131 = sphi 0, %s115
    $region4: #{capsule_network_forward.10} parent=1 // loop_header_branch
      %12 = sbr.rel (%p10) target = $region8
    $region5: #{capsule_network_forward.10} parent=1 // loop_body
      %s14 = ssub.s32 %s9, 1
      %s15 = ssub.s32 %s9, 2
      %s22 = sadd.s32 1, %s17
      %p23 = scmp.ge.s32.totalorder %s22, 2
      %s24 = scalar_select %p23, 0, %s22
      %s25 = sadd.s32 1, %s16
      %s26 = scalar_select %p23, %s25, %s16
      %p27 = scmp.ge.s32.totalorder %s26, 1
      %s28 = scalar_select %p27, 0, %s26
      %s29 = ssub.s32 %s16, %s28
      %p30 = scmp.eq.s32.totalorder %s29, 0
      %s32 = sadd.s32 %s31, 1
      %s33 = scalar_select %p30, %s31, %s32
      %p36 = pneg %p30
      %p37 = scmp.eq.s32.totalorder %s9, 1
      %p38 = por %p36, %p37
      %p39 = scmp.ne.s32.totalorder %s31, %s34
      %p40 = scmp.eq.s32.totalorder %s9, 0
      %p41 = por %p39, %p40
      %p42 = scmp.ne.s32.totalorder %s31, %s34
      %p43 = scmp.eq.s32.totalorder %s14, 1
      %p44 = por %p42, %p43
      %p45 = scmp.ne.s32.totalorder %s34, %s35
      %p46 = scmp.eq.s32.totalorder %s14, 0
      %p47 = por %p45, %p46
      %p48 = scmp.ne.s32.totalorder %s34, %s35
      %p49 = scmp.eq.s32.totalorder %s15, 1
      %p50 = por %p48, %p49
      %p52 = scmp.ne.s32.totalorder %s35, %s51
      %p53 = scmp.eq.s32.totalorder %s15, 0
      %p54 = por %p52, %p53
      %s55 = ssub.s32 %s17, %s24
      %p56 = scmp.eq.s32.totalorder %s55, 0
      %s58 = sadd.s32 %s57, 1
      %s59 = scalar_select %p56, %s57, %s58
      %p62 = pneg %p56
      %p63 = scmp.eq.s32.totalorder %s9, 1
      %p64 = por %p62, %p63
      %p65 = scmp.ne.s32.totalorder %s57, %s60
      %p66 = scmp.eq.s32.totalorder %s9, 0
      %p67 = por %p65, %p66
      %p68 = scmp.ne.s32.totalorder %s57, %s60
      %p69 = scmp.eq.s32.totalorder %s14, 1
      %p70 = por %p68, %p69
      %p71 = scmp.ne.s32.totalorder %s60, %s61
      %p72 = scmp.eq.s32.totalorder %s14, 0
      %p73 = por %p71, %p72
      %p74 = scmp.ne.s32.totalorder %s60, %s61
      %p75 = scmp.eq.s32.totalorder %s15, 1
      %p76 = por %p74, %p75
      %p78 = scmp.ne.s32.totalorder %s61, %s77
      %p79 = scmp.eq.s32.totalorder %s15, 0
      %p80 = por %p78, %p79
      %s81 = ssub.s32 %s17, %s24
      %p82 = scmp.eq.s32.totalorder %s81, 0
      %s84 = sadd.s32 %s83, 1
      %s85 = scalar_select %p82, %s83, %s84
      %p88 = pneg %p82
      %p89 = scmp.eq.s32.totalorder %s9, 1
      %p90 = por %p88, %p89
      %p91 = scmp.ne.s32.totalorder %s83, %s86
      %p92 = scmp.eq.s32.totalorder %s9, 0
      %p93 = por %p91, %p92
      %p94 = scmp.ne.s32.totalorder %s83, %s86
      %p95 = scmp.eq.s32.totalorder %s14, 1
      %p96 = por %p94, %p95
      %p97 = scmp.ne.s32.totalorder %s86, %s87
      %p98 = scmp.eq.s32.totalorder %s14, 0
      %p99 = por %p97, %p98
      %p100 = scmp.ne.s32.totalorder %s86, %s87
      %p101 = scmp.eq.s32.totalorder %s15, 1
      %p102 = por %p100, %p101
      %p104 = scmp.ne.s32.totalorder %s87, %s103
      %p105 = scmp.eq.s32.totalorder %s15, 0
      %p106 = por %p104, %p105
      %s107 = ssub.s32 %s16, %s28
      %s108 = ssub.s32 %s17, %s24
      %s109 = sor.u32 %s107, %s108
      %p110 = scmp.eq.s32.totalorder %s109, 0
      %s112 = sadd.s32 %s111, 1
      %s113 = scalar_select %p110, %s111, %s112
      %p116 = pneg %p110
      %p117 = scmp.eq.s32.totalorder %s9, 1
      %p118 = por %p116, %p117
      %p119 = scmp.ne.s32.totalorder %s111, %s114
      %p120 = scmp.eq.s32.totalorder %s9, 0
      %p121 = por %p119, %p120
      %p122 = scmp.ne.s32.totalorder %s111, %s114
      %p123 = scmp.eq.s32.totalorder %s14, 1
      %p124 = por %p122, %p123
      %p125 = scmp.ne.s32.totalorder %s114, %s115
      %p126 = scmp.eq.s32.totalorder %s14, 0
      %p127 = por %p125, %p126
      %p128 = scmp.ne.s32.totalorder %s114, %s115
      %p129 = scmp.eq.s32.totalorder %s15, 1
      %p130 = por %p128, %p129
      %p132 = scmp.ne.s32.totalorder %s115, %s131
      %p133 = scmp.eq.s32.totalorder %s15, 0
      %p134 = por %p132, %p133
      %p135 = scmp.le.s32.totalorder 1, %s9
      %p136 = scmp.lt.s32.totalorder %s9, 3
      %p137 = pnand %p135, %p136
      %p138 = pneg %p137
      // Predicated region
      $region9: #{capsule_network_forward.10} parent=5 // pred_check
        _
      $region10: #{capsule_network_forward.10} parent=5 // pred_check_branch
        %140 = sbr.rel (%p137) target = $region12
      $region11: #{capsule_network_forward.10} parent=5 // pred_region
        %s141 = ssub.s32 %s9, 1
        // Predicated region
        $region13: #{capsule_network_forward.10} parent=11 // pred_check
          %p142 = pneg %p47
        $region14: #{capsule_network_forward.10} parent=11 // pred_check_branch
          %144 = sbr.rel (%p142) target = $region16
        $region15: #{capsule_network_forward.10} parent=11 // pred_region
          %p145 = scmp.lt.s32.totalorder %s18, 0
          %s146 = scalar_select %p145, %s18, 0
          %s147 = smul.addr %s146, 4
          %s148 = smul.addr %s147, 2
          %s149 = scalar_lea.vmem %s0, %s148
        $region16: #{capsule_network_forward.10} parent=11 // pred_fallthru
          _
      $region12: #{capsule_network_forward.10} parent=5 // pred_fallthru
        _
      %p150 = scmp.lt.s32.totalorder %s9, 2
      // Predicated region
      $region17: #{capsule_network_forward.10} parent=5 // pred_check
        %p151 = pneg %p150
      $region18: #{capsule_network_forward.10} parent=5 // pred_check_branch
        %153 = sbr.rel (%p151) target = $region20
      $region19: #{capsule_network_forward.10} parent=5 // pred_region
        // Predicated region
        $region21: #{capsule_network_forward.10} parent=19 // pred_check
          %p154 = pneg %p67
        $region22: #{capsule_network_forward.10} parent=19 // pred_check_branch
          %156 = sbr.rel (%p154) target = $region24
        $region23: #{capsule_network_forward.10} parent=19 // pred_region
          %s157 = sand.u32 %s57, 1
          %s158 = sand.u32 %s57, 1
          %s159 = smul.addr %s158, 2048
          %s160 = scalar_lea.vmem [#allocation2], %s159
          %s161 = smul.u32 4, %s17
          %s162 = smul.addr %s161, 8
          %s163 = scalar_lea.vmem %s1, %s162
          // Predicated region
          $region25: #{capsule_network_forward.10} parent=23 // pred_check
            _
          $region26: #{capsule_network_forward.10} parent=23 // pred_check_branch
            %165 = sbr.rel (0) target = $region28
          $region27: #{capsule_network_forward.10} parent=23 // pred_region
            // Predicated region
            $region29: #{capsule_network_forward.10} parent=27 // pred_check
              _
            $region30: #{capsule_network_forward.10} parent=27 // pred_check_branch
              %167 = sbr.rel (0) target = $region32
            $region31: #{capsule_network_forward.10} parent=27 // pred_region
              loop: start=0, step=1, limit=1
              $region33: #{capsule_network_forward.10} parent=31 // loop_pre_header
                _
              $region34: #{capsule_network_forward.10} parent=31 // loop_header
                %s169 = sphi 0, %s173
                %p170 = scmp.ge.s32.totalorder %s169, 1
                %s174 = sphi %s163, %s163
                %s175 = sphi %s160, %s160
              $region35: #{capsule_network_forward.10} parent=31 // loop_header_branch
                %172 = sbr.rel (%p170) target = $region39
              $region36: #{capsule_network_forward.10} parent=31 // loop_body
                %v176 = vld [vmem:[%s174] sm:$0xff]
                %177 = vst [vmem:[%s175] sm:$0xff] %v176
                %v178 = vld [vmem:[%s174 + $0x8] sm:$0xff]
                %179 = vst [vmem:[%s175 + $0x8] sm:$0xff] %v178
                %v180 = vld [vmem:[%s174 + $0x10] sm:$0xff]
                %181 = vst [vmem:[%s175 + $0x10] sm:$0xff] %v180
                %v182 = vld [vmem:[%s174 + $0x18] sm:$0xff]
                %183 = vst [vmem:[%s175 + $0x18] sm:$0xff] %v182
                %v184 = vld [vmem:[%s174 + $0x40] sm:$0xff]
                %185 = vst [vmem:[%s175 + $0x20] sm:$0xff] %v184
                %v186 = vld [vmem:[%s174 + $0x48] sm:$0xff]
                %187 = vst [vmem:[%s175 + $0x28] sm:$0xff] %v186
                %v188 = vld [vmem:[%s174 + $0x50] sm:$0xff]
                %189 = vst [vmem:[%s175 + $0x30] sm:$0xff] %v188
                %v190 = vld [vmem:[%s174 + $0x58] sm:$0xff]
                %191 = vst [vmem:[%s175 + $0x38] sm:$0xff] %v190
                %v192 = vld [vmem:[%s174 + $0x80] sm:$0xff]
                %193 = vst [vmem:[%s175 + $0x40] sm:$0xff] %v192
                %v194 = vld [vmem:[%s174 + $0x88] sm:$0xff]
                %195 = vst [vmem:[%s175 + $0x48] sm:$0xff] %v194
                %v196 = vld [vmem:[%s174 + $0x90] sm:$0xff]
                %197 = vst [vmem:[%s175 + $0x50] sm:$0xff] %v196
                %v198 = vld [vmem:[%s174 + $0x98] sm:$0xff]
                %199 = vst [vmem:[%s175 + $0x58] sm:$0xff] %v198
                %v200 = vld [vmem:[%s174 + $0xc0] sm:$0xff]
                %201 = vst [vmem:[%s175 + $0x60] sm:$0xff] %v200
                %v202 = vld [vmem:[%s174 + $0xc8] sm:$0xff]
                %203 = vst [vmem:[%s175 + $0x68] sm:$0xff] %v202
                %v204 = vld [vmem:[%s174 + $0xd0] sm:$0xff]
                %205 = vst [vmem:[%s175 + $0x70] sm:$0xff] %v204
                %v206 = vld [vmem:[%s174 + $0xd8] sm:$0xff]
                %207 = vst [vmem:[%s175 + $0x78] sm:$0xff] %v206
                %v208 = vld [vmem:[%s174 + $0x100] sm:$0xff]
                %209 = vst [vmem:[%s175 + $0x80] sm:$0xff] %v208
                %v210 = vld [vmem:[%s174 + $0x108] sm:$0xff]
                %211 = vst [vmem:[%s175 + $0x88] sm:$0xff] %v210
                %v212 = vld [vmem:[%s174 + $0x110] sm:$0xff]
                %213 = vst [vmem:[%s175 + $0x90] sm:$0xff] %v212
                %v214 = vld [vmem:[%s174 + $0x118] sm:$0xff]
                %215 = vst [vmem:[%s175 + $0x98] sm:$0xff] %v214
                %v216 = vld [vmem:[%s174 + $0x140] sm:$0xff]
                %217 = vst [vmem:[%s175 + $0xa0] sm:$0xff] %v216
                %v218 = vld [vmem:[%s174 + $0x148] sm:$0xff]
                %219 = vst [vmem:[%s175 + $0xa8] sm:$0xff] %v218
                %v220 = vld [vmem:[%s174 + $0x150] sm:$0xff]
                %221 = vst [vmem:[%s175 + $0xb0] sm:$0xff] %v220
                %v222 = vld [vmem:[%s174 + $0x158] sm:$0xff]
                %223 = vst [vmem:[%s175 + $0xb8] sm:$0xff] %v222
                %v224 = vld [vmem:[%s174 + $0x180] sm:$0xff]
                %225 = vst [vmem:[%s175 + $0xc0] sm:$0xff] %v224
                %v226 = vld [vmem:[%s174 + $0x188] sm:$0xff]
                %227 = vst [vmem:[%s175 + $0xc8] sm:$0xff] %v226
                %v228 = vld [vmem:[%s174 + $0x190] sm:$0xff]
                %229 = vst [vmem:[%s175 + $0xd0] sm:$0xff] %v228
                %v230 = vld [vmem:[%s174 + $0x198] sm:$0xff]
                %231 = vst [vmem:[%s175 + $0xd8] sm:$0xff] %v230
                %v232 = vld [vmem:[%s174 + $0x1c0] sm:$0xff]
                %233 = vst [vmem:[%s175 + $0xe0] sm:$0xff] %v232
                %v234 = vld [vmem:[%s174 + $0x1c8] sm:$0xff]
                %235 = vst [vmem:[%s175 + $0xe8] sm:$0xff] %v234
                %v236 = vld [vmem:[%s174 + $0x1d0] sm:$0xff]
                %237 = vst [vmem:[%s175 + $0xf0] sm:$0xff] %v236
                %v238 = vld [vmem:[%s174 + $0x1d8] sm:$0xff]
                %239 = vst [vmem:[%s175 + $0xf8] sm:$0xff] %v238
                %v240 = vld [vmem:[%s174 + $0x200] sm:$0xff]
                %241 = vst [vmem:[%s175 + $0x100] sm:$0xff] %v240
                %v242 = vld [vmem:[%s174 + $0x208] sm:$0xff]
                %243 = vst [vmem:[%s175 + $0x108] sm:$0xff] %v242
                %v244 = vld [vmem:[%s174 + $0x210] sm:$0xff]
                %245 = vst [vmem:[%s175 + $0x110] sm:$0xff] %v244
                %v246 = vld [vmem:[%s174 + $0x218] sm:$0xff]
                %247 = vst [vmem:[%s175 + $0x118] sm:$0xff] %v246
                %v248 = vld [vmem:[%s174 + $0x240] sm:$0xff]
                %249 = vst [vmem:[%s175 + $0x120] sm:$0xff] %v248
                %v250 = vld [vmem:[%s174 + $0x248] sm:$0xff]
                %251 = vst [vmem:[%s175 + $0x128] sm:$0xff] %v250
                %v252 = vld [vmem:[%s174 + $0x250] sm:$0xff]
                %253 = vst [vmem:[%s175 + $0x130] sm:$0xff] %v252
                %v254 = vld [vmem:[%s174 + $0x258] sm:$0xff]
                %255 = vst [vmem:[%s175 + $0x138] sm:$0xff] %v254
                %v256 = vld [vmem:[%s174 + $0x280] sm:$0xff]
                %257 = vst [vmem:[%s175 + $0x140] sm:$0xff] %v256
                %v258 = vld [vmem:[%s174 + $0x288] sm:$0xff]
                %259 = vst [vmem:[%s175 + $0x148] sm:$0xff] %v258
                %v260 = vld [vmem:[%s174 + $0x290] sm:$0xff]
                %261 = vst [vmem:[%s175 + $0x150] sm:$0xff] %v260
                %v262 = vld [vmem:[%s174 + $0x298] sm:$0xff]
                %263 = vst [vmem:[%s175 + $0x158] sm:$0xff] %v262
                %v264 = vld [vmem:[%s174 + $0x2c0] sm:$0xff]
                %265 = vst [vmem:[%s175 + $0x160] sm:$0xff] %v264
                %v266 = vld [vmem:[%s174 + $0x2c8] sm:$0xff]
                %267 = vst [vmem:[%s175 + $0x168] sm:$0xff] %v266
                %v268 = vld [vmem:[%s174 + $0x2d0] sm:$0xff]
                %269 = vst [vmem:[%s175 + $0x170] sm:$0xff] %v268
                %v270 = vld [vmem:[%s174 + $0x2d8] sm:$0xff]
                %271 = vst [vmem:[%s175 + $0x178] sm:$0xff] %v270
                %v272 = vld [vmem:[%s174 + $0x300] sm:$0xff]
                %273 = vst [vmem:[%s175 + $0x180] sm:$0xff] %v272
                %v274 = vld [vmem:[%s174 + $0x308] sm:$0xff]
                %275 = vst [vmem:[%s175 + $0x188] sm:$0xff] %v274
                %v276 = vld [vmem:[%s174 + $0x310] sm:$0xff]
                %277 = vst [vmem:[%s175 + $0x190] sm:$0xff] %v276
                %v278 = vld [vmem:[%s174 + $0x318] sm:$0xff]
                %279 = vst [vmem:[%s175 + $0x198] sm:$0xff] %v278
                %v280 = vld [vmem:[%s174 + $0x340] sm:$0xff]
                %281 = vst [vmem:[%s175 + $0x1a0] sm:$0xff] %v280
                %v282 = vld [vmem:[%s174 + $0x348] sm:$0xff]
                %283 = vst [vmem:[%s175 + $0x1a8] sm:$0xff] %v282
                %v284 = vld [vmem:[%s174 + $0x350] sm:$0xff]
                %285 = vst [vmem:[%s175 + $0x1b0] sm:$0xff] %v284
                %v286 = vld [vmem:[%s174 + $0x358] sm:$0xff]
                %287 = vst [vmem:[%s175 + $0x1b8] sm:$0xff] %v286
                %v288 = vld [vmem:[%s174 + $0x380] sm:$0xff]
                %289 = vst [vmem:[%s175 + $0x1c0] sm:$0xff] %v288
                %v290 = vld [vmem:[%s174 + $0x388] sm:$0xff]
                %291 = vst [vmem:[%s175 + $0x1c8] sm:$0xff] %v290
                %v292 = vld [vmem:[%s174 + $0x390] sm:$0xff]
                %293 = vst [vmem:[%s175 + $0x1d0] sm:$0xff] %v292
                %v294 = vld [vmem:[%s174 + $0x398] sm:$0xff]
                %295 = vst [vmem:[%s175 + $0x1d8] sm:$0xff] %v294
                %v296 = vld [vmem:[%s174 + $0x3c0] sm:$0xff]
                %297 = vst [vmem:[%s175 + $0x1e0] sm:$0xff] %v296
                %v298 = vld [vmem:[%s174 + $0x3c8] sm:$0xff]
                %299 = vst [vmem:[%s175 + $0x1e8] sm:$0xff] %v298
                %v300 = vld [vmem:[%s174 + $0x3d0] sm:$0xff]
                %301 = vst [vmem:[%s175 + $0x1f0] sm:$0xff] %v300
                %v302 = vld [vmem:[%s174 + $0x3d8] sm:$0xff]
                %303 = vst [vmem:[%s175 + $0x1f8] sm:$0xff] %v302
                %v304 = vld [vmem:[%s174 + $0x400] sm:$0xff]
                %305 = vst [vmem:[%s175 + $0x200] sm:$0xff] %v304
                %v306 = vld [vmem:[%s174 + $0x408] sm:$0xff]
                %307 = vst [vmem:[%s175 + $0x208] sm:$0xff] %v306
                %v308 = vld [vmem:[%s174 + $0x410] sm:$0xff]
                %309 = vst [vmem:[%s175 + $0x210] sm:$0xff] %v308
                %v310 = vld [vmem:[%s174 + $0x418] sm:$0xff]
                %311 = vst [vmem:[%s175 + $0x218] sm:$0xff] %v310
                %v312 = vld [vmem:[%s174 + $0x440] sm:$0xff]
                %313 = vst [vmem:[%s175 + $0x220] sm:$0xff] %v312
                %v314 = vld [vmem:[%s174 + $0x448] sm:$0xff]
                %315 = vst [vmem:[%s175 + $0x228] sm:$0xff] %v314
                %v316 = vld [vmem:[%s174 + $0x450] sm:$0xff]
                %317 = vst [vmem:[%s175 + $0x230] sm:$0xff] %v316
                %v318 = vld [vmem:[%s174 + $0x458] sm:$0xff]
                %319 = vst [vmem:[%s175 + $0x238] sm:$0xff] %v318
                %v320 = vld [vmem:[%s174 + $0x480] sm:$0xff]
                %321 = vst [vmem:[%s175 + $0x240] sm:$0xff] %v320
                %v322 = vld [vmem:[%s174 + $0x488] sm:$0xff]
                %323 = vst [vmem:[%s175 + $0x248] sm:$0xff] %v322
                %v324 = vld [vmem:[%s174 + $0x490] sm:$0xff]
                %325 = vst [vmem:[%s175 + $0x250] sm:$0xff] %v324
                %v326 = vld [vmem:[%s174 + $0x498] sm:$0xff]
                %327 = vst [vmem:[%s175 + $0x258] sm:$0xff] %v326
                %v328 = vld [vmem:[%s174 + $0x4c0] sm:$0xff]
                %329 = vst [vmem:[%s175 + $0x260] sm:$0xff] %v328
                %v330 = vld [vmem:[%s174 + $0x4c8] sm:$0xff]
                %331 = vst [vmem:[%s175 + $0x268] sm:$0xff] %v330
                %v332 = vld [vmem:[%s174 + $0x4d0] sm:$0xff]
                %333 = vst [vmem:[%s175 + $0x270] sm:$0xff] %v332
                %v334 = vld [vmem:[%s174 + $0x4d8] sm:$0xff]
                %335 = vst [vmem:[%s175 + $0x278] sm:$0xff] %v334
                %v336 = vld [vmem:[%s174 + $0x500] sm:$0xff]
                %337 = vst [vmem:[%s175 + $0x280] sm:$0xff] %v336
                %v338 = vld [vmem:[%s174 + $0x508] sm:$0xff]
                %339 = vst [vmem:[%s175 + $0x288] sm:$0xff] %v338
                %v340 = vld [vmem:[%s174 + $0x510] sm:$0xff]
                %341 = vst [vmem:[%s175 + $0x290] sm:$0xff] %v340
                %v342 = vld [vmem:[%s174 + $0x518] sm:$0xff]
                %343 = vst [vmem:[%s175 + $0x298] sm:$0xff] %v342
                %v344 = vld [vmem:[%s174 + $0x540] sm:$0xff]
                %345 = vst [vmem:[%s175 + $0x2a0] sm:$0xff] %v344
                %v346 = vld [vmem:[%s174 + $0x548] sm:$0xff]
                %347 = vst [vmem:[%s175 + $0x2a8] sm:$0xff] %v346
                %v348 = vld [vmem:[%s174 + $0x550] sm:$0xff]
                %349 = vst [vmem:[%s175 + $0x2b0] sm:$0xff] %v348
                %v350 = vld [vmem:[%s174 + $0x558] sm:$0xff]
                %351 = vst [vmem:[%s175 + $0x2b8] sm:$0xff] %v350
                %v352 = vld [vmem:[%s174 + $0x580] sm:$0xff]
                %353 = vst [vmem:[%s175 + $0x2c0] sm:$0xff] %v352
                %v354 = vld [vmem:[%s174 + $0x588] sm:$0xff]
                %355 = vst [vmem:[%s175 + $0x2c8] sm:$0xff] %v354
                %v356 = vld [vmem:[%s174 + $0x590] sm:$0xff]
                %357 = vst [vmem:[%s175 + $0x2d0] sm:$0xff] %v356
                %v358 = vld [vmem:[%s174 + $0x598] sm:$0xff]
                %359 = vst [vmem:[%s175 + $0x2d8] sm:$0xff] %v358
                %v360 = vld [vmem:[%s174 + $0x5c0] sm:$0xff]
                %361 = vst [vmem:[%s175 + $0x2e0] sm:$0xff] %v360
                %v362 = vld [vmem:[%s174 + $0x5c8] sm:$0xff]
                %363 = vst [vmem:[%s175 + $0x2e8] sm:$0xff] %v362
                %v364 = vld [vmem:[%s174 + $0x5d0] sm:$0xff]
                %365 = vst [vmem:[%s175 + $0x2f0] sm:$0xff] %v364
                %v366 = vld [vmem:[%s174 + $0x5d8] sm:$0xff]
                %367 = vst [vmem:[%s175 + $0x2f8] sm:$0xff] %v366
                %v368 = vld [vmem:[%s174 + $0x600] sm:$0xff]
                %369 = vst [vmem:[%s175 + $0x300] sm:$0xff] %v368
                %v370 = vld [vmem:[%s174 + $0x608] sm:$0xff]
                %371 = vst [vmem:[%s175 + $0x308] sm:$0xff] %v370
                %v372 = vld [vmem:[%s174 + $0x610] sm:$0xff]
                %373 = vst [vmem:[%s175 + $0x310] sm:$0xff] %v372
                %v374 = vld [vmem:[%s174 + $0x618] sm:$0xff]
                %375 = vst [vmem:[%s175 + $0x318] sm:$0xff] %v374
                %v376 = vld [vmem:[%s174 + $0x640] sm:$0xff]
                %377 = vst [vmem:[%s175 + $0x320] sm:$0xff] %v376
                %v378 = vld [vmem:[%s174 + $0x648] sm:$0xff]
                %379 = vst [vmem:[%s175 + $0x328] sm:$0xff] %v378
                %v380 = vld [vmem:[%s174 + $0x650] sm:$0xff]
                %381 = vst [vmem:[%s175 + $0x330] sm:$0xff] %v380
                %v382 = vld [vmem:[%s174 + $0x658] sm:$0xff]
                %383 = vst [vmem:[%s175 + $0x338] sm:$0xff] %v382
                %v384 = vld [vmem:[%s174 + $0x680] sm:$0xff]
                %385 = vst [vmem:[%s175 + $0x340] sm:$0xff] %v384
                %v386 = vld [vmem:[%s174 + $0x688] sm:$0xff]
                %387 = vst [vmem:[%s175 + $0x348] sm:$0xff] %v386
                %v388 = vld [vmem:[%s174 + $0x690] sm:$0xff]
                %389 = vst [vmem:[%s175 + $0x350] sm:$0xff] %v388
                %v390 = vld [vmem:[%s174 + $0x698] sm:$0xff]
                %391 = vst [vmem:[%s175 + $0x358] sm:$0xff] %v390
                %v392 = vld [vmem:[%s174 + $0x6c0] sm:$0xff]
                %393 = vst [vmem:[%s175 + $0x360] sm:$0xff] %v392
                %v394 = vld [vmem:[%s174 + $0x6c8] sm:$0xff]
                %395 = vst [vmem:[%s175 + $0x368] sm:$0xff] %v394
                %v396 = vld [vmem:[%s174 + $0x6d0] sm:$0xff]
                %397 = vst [vmem:[%s175 + $0x370] sm:$0xff] %v396
                %v398 = vld [vmem:[%s174 + $0x6d8] sm:$0xff]
                %399 = vst [vmem:[%s175 + $0x378] sm:$0xff] %v398
                %v400 = vld [vmem:[%s174 + $0x700] sm:$0xff]
                %401 = vst [vmem:[%s175 + $0x380] sm:$0xff] %v400
                %v402 = vld [vmem:[%s174 + $0x708] sm:$0xff]
                %403 = vst [vmem:[%s175 + $0x388] sm:$0xff] %v402
                %v404 = vld [vmem:[%s174 + $0x710] sm:$0xff]
                %405 = vst [vmem:[%s175 + $0x390] sm:$0xff] %v404
                %v406 = vld [vmem:[%s174 + $0x718] sm:$0xff]
                %407 = vst [vmem:[%s175 + $0x398] sm:$0xff] %v406
                %v408 = vld [vmem:[%s174 + $0x740] sm:$0xff]
                %409 = vst [vmem:[%s175 + $0x3a0] sm:$0xff] %v408
                %v410 = vld [vmem:[%s174 + $0x748] sm:$0xff]
                %411 = vst [vmem:[%s175 + $0x3a8] sm:$0xff] %v410
                %v412 = vld [vmem:[%s174 + $0x750] sm:$0xff]
                %413 = vst [vmem:[%s175 + $0x3b0] sm:$0xff] %v412
                %v414 = vld [vmem:[%s174 + $0x758] sm:$0xff]
                %415 = vst [vmem:[%s175 + $0x3b8] sm:$0xff] %v414
                %v416 = vld [vmem:[%s174 + $0x780] sm:$0xff]
                %417 = vst [vmem:[%s175 + $0x3c0] sm:$0xff] %v416
                %v418 = vld [vmem:[%s174 + $0x788] sm:$0xff]
                %419 = vst [vmem:[%s175 + $0x3c8] sm:$0xff] %v418
                %v420 = vld [vmem:[%s174 + $0x790] sm:$0xff]
                %421 = vst [vmem:[%s175 + $0x3d0] sm:$0xff] %v420
                %v422 = vld [vmem:[%s174 + $0x798] sm:$0xff]
                %423 = vst [vmem:[%s175 + $0x3d8] sm:$0xff] %v422
                %v424 = vld [vmem:[%s174 + $0x7c0] sm:$0xff]
                %425 = vst [vmem:[%s175 + $0x3e0] sm:$0xff] %v424
                %v426 = vld [vmem:[%s174 + $0x7c8] sm:$0xff]
                %427 = vst [vmem:[%s175 + $0x3e8] sm:$0xff] %v426
                %v428 = vld [vmem:[%s174 + $0x7d0] sm:$0xff]
                %429 = vst [vmem:[%s175 + $0x3f0] sm:$0xff] %v428
                %v430 = vld [vmem:[%s174 + $0x7d8] sm:$0xff]
                %431 = vst [vmem:[%s175 + $0x3f8] sm:$0xff] %v430
                %v432 = vld [vmem:[%s174 + $0x800] sm:$0xff]
                %433 = vst [vmem:[%s175 + $0x400] sm:$0xff] %v432
                %v434 = vld [vmem:[%s174 + $0x808] sm:$0xff]
                %435 = vst [vmem:[%s175 + $0x408] sm:$0xff] %v434
                %v436 = vld [vmem:[%s174 + $0x810] sm:$0xff]
                %437 = vst [vmem:[%s175 + $0x410] sm:$0xff] %v436
                %v438 = vld [vmem:[%s174 + $0x818] sm:$0xff]
                %439 = vst [vmem:[%s175 + $0x418] sm:$0xff] %v438
                %v440 = vld [vmem:[%s174 + $0x840] sm:$0xff]
                %441 = vst [vmem:[%s175 + $0x420] sm:$0xff] %v440
                %v442 = vld [vmem:[%s174 + $0x848] sm:$0xff]
                %443 = vst [vmem:[%s175 + $0x428] sm:$0xff] %v442
                %v444 = vld [vmem:[%s174 + $0x850] sm:$0xff]
                %445 = vst [vmem:[%s175 + $0x430] sm:$0xff] %v444
                %v446 = vld [vmem:[%s174 + $0x858] sm:$0xff]
                %447 = vst [vmem:[%s175 + $0x438] sm:$0xff] %v446
                %v448 = vld [vmem:[%s174 + $0x880] sm:$0xff]
                %449 = vst [vmem:[%s175 + $0x440] sm:$0xff] %v448
                %v450 = vld [vmem:[%s174 + $0x888] sm:$0xff]
                %451 = vst [vmem:[%s175 + $0x448] sm:$0xff] %v450
                %v452 = vld [vmem:[%s174 + $0x890] sm:$0xff]
                %453 = vst [vmem:[%s175 + $0x450] sm:$0xff] %v452
                %v454 = vld [vmem:[%s174 + $0x898] sm:$0xff]
                %455 = vst [vmem:[%s175 + $0x458] sm:$0xff] %v454
                %v456 = vld [vmem:[%s174 + $0x8c0] sm:$0xff]
                %457 = vst [vmem:[%s175 + $0x460] sm:$0xff] %v456
                %v458 = vld [vmem:[%s174 + $0x8c8] sm:$0xff]
                %459 = vst [vmem:[%s175 + $0x468] sm:$0xff] %v458
                %v460 = vld [vmem:[%s174 + $0x8d0] sm:$0xff]
                %461 = vst [vmem:[%s175 + $0x470] sm:$0xff] %v460
                %v462 = vld [vmem:[%s174 + $0x8d8] sm:$0xff]
                %463 = vst [vmem:[%s175 + $0x478] sm:$0xff] %v462
                %v464 = vld [vmem:[%s174 + $0x900] sm:$0xff]
                %465 = vst [vmem:[%s175 + $0x480] sm:$0xff] %v464
                %v466 = vld [vmem:[%s174 + $0x908] sm:$0xff]
                %467 = vst [vmem:[%s175 + $0x488] sm:$0xff] %v466
                %v468 = vld [vmem:[%s174 + $0x910] sm:$0xff]
                %469 = vst [vmem:[%s175 + $0x490] sm:$0xff] %v468
                %v470 = vld [vmem:[%s174 + $0x918] sm:$0xff]
                %471 = vst [vmem:[%s175 + $0x498] sm:$0xff] %v470
                %v472 = vld [vmem:[%s174 + $0x940] sm:$0xff]
                %473 = vst [vmem:[%s175 + $0x4a0] sm:$0xff] %v472
                %v474 = vld [vmem:[%s174 + $0x948] sm:$0xff]
                %475 = vst [vmem:[%s175 + $0x4a8] sm:$0xff] %v474
                %v476 = vld [vmem:[%s174 + $0x950] sm:$0xff]
                %477 = vst [vmem:[%s175 + $0x4b0] sm:$0xff] %v476
                %v478 = vld [vmem:[%s174 + $0x958] sm:$0xff]
                %479 = vst [vmem:[%s175 + $0x4b8] sm:$0xff] %v478
                %v480 = vld [vmem:[%s174 + $0x980] sm:$0xff]
                %481 = vst [vmem:[%s175 + $0x4c0] sm:$0xff] %v480
                %v482 = vld [vmem:[%s174 + $0x988] sm:$0xff]
                %483 = vst [vmem:[%s175 + $0x4c8] sm:$0xff] %v482
                %v484 = vld [vmem:[%s174 + $0x990] sm:$0xff]
                %485 = vst [vmem:[%s175 + $0x4d0] sm:$0xff] %v484
                %v486 = vld [vmem:[%s174 + $0x998] sm:$0xff]
                %487 = vst [vmem:[%s175 + $0x4d8] sm:$0xff] %v486
                %v488 = vld [vmem:[%s174 + $0x9c0] sm:$0xff]
                %489 = vst [vmem:[%s175 + $0x4e0] sm:$0xff] %v488
                %v490 = vld [vmem:[%s174 + $0x9c8] sm:$0xff]
                %491 = vst [vmem:[%s175 + $0x4e8] sm:$0xff] %v490
                %v492 = vld [vmem:[%s174 + $0x9d0] sm:$0xff]
                %493 = vst [vmem:[%s175 + $0x4f0] sm:$0xff] %v492
                %v494 = vld [vmem:[%s174 + $0x9d8] sm:$0xff]
                %495 = vst [vmem:[%s175 + $0x4f8] sm:$0xff] %v494
                %v496 = vld [vmem:[%s174 + $0xa00] sm:$0xff]
                %497 = vst [vmem:[%s175 + $0x500] sm:$0xff] %v496
                %v498 = vld [vmem:[%s174 + $0xa08] sm:$0xff]
                %499 = vst [vmem:[%s175 + $0x508] sm:$0xff] %v498
                %v500 = vld [vmem:[%s174 + $0xa10] sm:$0xff]
                %501 = vst [vmem:[%s175 + $0x510] sm:$0xff] %v500
                %v502 = vld [vmem:[%s174 + $0xa18] sm:$0xff]
                %503 = vst [vmem:[%s175 + $0x518] sm:$0xff] %v502
                %v504 = vld [vmem:[%s174 + $0xa40] sm:$0xff]
                %505 = vst [vmem:[%s175 + $0x520] sm:$0xff] %v504
                %v506 = vld [vmem:[%s174 + $0xa48] sm:$0xff]
                %507 = vst [vmem:[%s175 + $0x528] sm:$0xff] %v506
                %v508 = vld [vmem:[%s174 + $0xa50] sm:$0xff]
                %509 = vst [vmem:[%s175 + $0x530] sm:$0xff] %v508
                %v510 = vld [vmem:[%s174 + $0xa58] sm:$0xff]
                %511 = vst [vmem:[%s175 + $0x538] sm:$0xff] %v510
                %v512 = vld [vmem:[%s174 + $0xa80] sm:$0xff]
                %513 = vst [vmem:[%s175 + $0x540] sm:$0xff] %v512
                %v514 = vld [vmem:[%s174 + $0xa88] sm:$0xff]
                %515 = vst [vmem:[%s175 + $0x548] sm:$0xff] %v514
                %v516 = vld [vmem:[%s174 + $0xa90] sm:$0xff]
                %517 = vst [vmem:[%s175 + $0x550] sm:$0xff] %v516
                %v518 = vld [vmem:[%s174 + $0xa98] sm:$0xff]
                %519 = vst [vmem:[%s175 + $0x558] sm:$0xff] %v518
                %v520 = vld [vmem:[%s174 + $0xac0] sm:$0xff]
                %521 = vst [vmem:[%s175 + $0x560] sm:$0xff] %v520
                %v522 = vld [vmem:[%s174 + $0xac8] sm:$0xff]
                %523 = vst [vmem:[%s175 + $0x568] sm:$0xff] %v522
                %v524 = vld [vmem:[%s174 + $0xad0] sm:$0xff]
                %525 = vst [vmem:[%s175 + $0x570] sm:$0xff] %v524
                %v526 = vld [vmem:[%s174 + $0xad8] sm:$0xff]
                %527 = vst [vmem:[%s175 + $0x578] sm:$0xff] %v526
                %v528 = vld [vmem:[%s174 + $0xb00] sm:$0xff]
                %529 = vst [vmem:[%s175 + $0x580] sm:$0xff] %v528
                %v530 = vld [vmem:[%s174 + $0xb08] sm:$0xff]
                %531 = vst [vmem:[%s175 + $0x588] sm:$0xff] %v530
                %v532 = vld [vmem:[%s174 + $0xb10] sm:$0xff]
                %533 = vst [vmem:[%s175 + $0x590] sm:$0xff] %v532
                %v534 = vld [vmem:[%s174 + $0xb18] sm:$0xff]
                %535 = vst [vmem:[%s175 + $0x598] sm:$0xff] %v534
                %v536 = vld [vmem:[%s174 + $0xb40] sm:$0xff]
                %537 = vst [vmem:[%s175 + $0x5a0] sm:$0xff] %v536
                %v538 = vld [vmem:[%s174 + $0xb48] sm:$0xff]
                %539 = vst [vmem:[%s175 + $0x5a8] sm:$0xff] %v538
                %v540 = vld [vmem:[%s174 + $0xb50] sm:$0xff]
                %541 = vst [vmem:[%s175 + $0x5b0] sm:$0xff] %v540
                %v542 = vld [vmem:[%s174 + $0xb58] sm:$0xff]
                %543 = vst [vmem:[%s175 + $0x5b8] sm:$0xff] %v542
                %v544 = vld [vmem:[%s174 + $0xb80] sm:$0xff]
                %545 = vst [vmem:[%s175 + $0x5c0] sm:$0xff] %v544
                %v546 = vld [vmem:[%s174 + $0xb88] sm:$0xff]
                %547 = vst [vmem:[%s175 + $0x5c8] sm:$0xff] %v546
                %v548 = vld [vmem:[%s174 + $0xb90] sm:$0xff]
                %549 = vst [vmem:[%s175 + $0x5d0] sm:$0xff] %v548
                %v550 = vld [vmem:[%s174 + $0xb98] sm:$0xff]
                %551 = vst [vmem:[%s175 + $0x5d8] sm:$0xff] %v550
                %v552 = vld [vmem:[%s174 + $0xbc0] sm:$0xff]
                %553 = vst [vmem:[%s175 + $0x5e0] sm:$0xff] %v552
                %v554 = vld [vmem:[%s174 + $0xbc8] sm:$0xff]
                %555 = vst [vmem:[%s175 + $0x5e8] sm:$0xff] %v554
                %v556 = vld [vmem:[%s174 + $0xbd0] sm:$0xff]
                %557 = vst [vmem:[%s175 + $0x5f0] sm:$0xff] %v556
                %v558 = vld [vmem:[%s174 + $0xbd8] sm:$0xff]
                %559 = vst [vmem:[%s175 + $0x5f8] sm:$0xff] %v558
                %v560 = vld [vmem:[%s174 + $0xc00] sm:$0xff]
                %561 = vst [vmem:[%s175 + $0x600] sm:$0xff] %v560
                %v562 = vld [vmem:[%s174 + $0xc08] sm:$0xff]
                %563 = vst [vmem:[%s175 + $0x608] sm:$0xff] %v562
                %v564 = vld [vmem:[%s174 + $0xc10] sm:$0xff]
                %565 = vst [vmem:[%s175 + $0x610] sm:$0xff] %v564
                %v566 = vld [vmem:[%s174 + $0xc18] sm:$0xff]
                %567 = vst [vmem:[%s175 + $0x618] sm:$0xff] %v566
                %v568 = vld [vmem:[%s174 + $0xc40] sm:$0xff]
                %569 = vst [vmem:[%s175 + $0x620] sm:$0xff] %v568
                %v570 = vld [vmem:[%s174 + $0xc48] sm:$0xff]
                %571 = vst [vmem:[%s175 + $0x628] sm:$0xff] %v570
                %v572 = vld [vmem:[%s174 + $0xc50] sm:$0xff]
                %573 = vst [vmem:[%s175 + $0x630] sm:$0xff] %v572
                %v574 = vld [vmem:[%s174 + $0xc58] sm:$0xff]
                %575 = vst [vmem:[%s175 + $0x638] sm:$0xff] %v574
                %v576 = vld [vmem:[%s174 + $0xc80] sm:$0xff]
                %577 = vst [vmem:[%s175 + $0x640] sm:$0xff] %v576
                %v578 = vld [vmem:[%s174 + $0xc88] sm:$0xff]
                %579 = vst [vmem:[%s175 + $0x648] sm:$0xff] %v578
                %v580 = vld [vmem:[%s174 + $0xc90] sm:$0xff]
                %581 = vst [vmem:[%s175 + $0x650] sm:$0xff] %v580
                %v582 = vld [vmem:[%s174 + $0xc98] sm:$0xff]
                %583 = vst [vmem:[%s175 + $0x658] sm:$0xff] %v582
                %v584 = vld [vmem:[%s174 + $0xcc0] sm:$0xff]
                %585 = vst [vmem:[%s175 + $0x660] sm:$0xff] %v584
                %v586 = vld [vmem:[%s174 + $0xcc8] sm:$0xff]
                %587 = vst [vmem:[%s175 + $0x668] sm:$0xff] %v586
                %v588 = vld [vmem:[%s174 + $0xcd0] sm:$0xff]
                %589 = vst [vmem:[%s175 + $0x670] sm:$0xff] %v588
                %v590 = vld [vmem:[%s174 + $0xcd8] sm:$0xff]
                %591 = vst [vmem:[%s175 + $0x678] sm:$0xff] %v590
                %v592 = vld [vmem:[%s174 + $0xd00] sm:$0xff]
                %593 = vst [vmem:[%s175 + $0x680] sm:$0xff] %v592
                %v594 = vld [vmem:[%s174 + $0xd08] sm:$0xff]
                %595 = vst [vmem:[%s175 + $0x688] sm:$0xff] %v594
                %v596 = vld [vmem:[%s174 + $0xd10] sm:$0xff]
                %597 = vst [vmem:[%s175 + $0x690] sm:$0xff] %v596
                %v598 = vld [vmem:[%s174 + $0xd18] sm:$0xff]
                %599 = vst [vmem:[%s175 + $0x698] sm:$0xff] %v598
                %v600 = vld [vmem:[%s174 + $0xd40] sm:$0xff]
                %601 = vst [vmem:[%s175 + $0x6a0] sm:$0xff] %v600
                %v602 = vld [vmem:[%s174 + $0xd48] sm:$0xff]
                %603 = vst [vmem:[%s175 + $0x6a8] sm:$0xff] %v602
                %v604 = vld [vmem:[%s174 + $0xd50] sm:$0xff]
                %605 = vst [vmem:[%s175 + $0x6b0] sm:$0xff] %v604
                %v606 = vld [vmem:[%s174 + $0xd58] sm:$0xff]
                %607 = vst [vmem:[%s175 + $0x6b8] sm:$0xff] %v606
                %v608 = vld [vmem:[%s174 + $0xd80] sm:$0xff]
                %609 = vst [vmem:[%s175 + $0x6c0] sm:$0xff] %v608
                %v610 = vld [vmem:[%s174 + $0xd88] sm:$0xff]
                %611 = vst [vmem:[%s175 + $0x6c8] sm:$0xff] %v610
                %v612 = vld [vmem:[%s174 + $0xd90] sm:$0xff]
                %613 = vst [vmem:[%s175 + $0x6d0] sm:$0xff] %v612
                %v614 = vld [vmem:[%s174 + $0xd98] sm:$0xff]
                %615 = vst [vmem:[%s175 + $0x6d8] sm:$0xff] %v614
                %v616 = vld [vmem:[%s174 + $0xdc0] sm:$0xff]
                %617 = vst [vmem:[%s175 + $0x6e0] sm:$0xff] %v616
                %v618 = vld [vmem:[%s174 + $0xdc8] sm:$0xff]
                %619 = vst [vmem:[%s175 + $0x6e8] sm:$0xff] %v618
                %v620 = vld [vmem:[%s174 + $0xdd0] sm:$0xff]
                %621 = vst [vmem:[%s175 + $0x6f0] sm:$0xff] %v620
                %v622 = vld [vmem:[%s174 + $0xdd8] sm:$0xff]
                %623 = vst [vmem:[%s175 + $0x6f8] sm:$0xff] %v622
                %v624 = vld [vmem:[%s174 + $0xe00] sm:$0xff]
                %625 = vst [vmem:[%s175 + $0x700] sm:$0xff] %v624
                %v626 = vld [vmem:[%s174 + $0xe08] sm:$0xff]
                %627 = vst [vmem:[%s175 + $0x708] sm:$0xff] %v626
                %v628 = vld [vmem:[%s174 + $0xe10] sm:$0xff]
                %629 = vst [vmem:[%s175 + $0x710] sm:$0xff] %v628
                %v630 = vld [vmem:[%s174 + $0xe18] sm:$0xff]
                %631 = vst [vmem:[%s175 + $0x718] sm:$0xff] %v630
                %v632 = vld [vmem:[%s174 + $0xe40] sm:$0xff]
                %633 = vst [vmem:[%s175 + $0x720] sm:$0xff] %v632
                %v634 = vld [vmem:[%s174 + $0xe48] sm:$0xff]
                %635 = vst [vmem:[%s175 + $0x728] sm:$0xff] %v634
                %v636 = vld [vmem:[%s174 + $0xe50] sm:$0xff]
                %637 = vst [vmem:[%s175 + $0x730] sm:$0xff] %v636
                %v638 = vld [vmem:[%s174 + $0xe58] sm:$0xff]
                %639 = vst [vmem:[%s175 + $0x738] sm:$0xff] %v638
                %v640 = vld [vmem:[%s174 + $0xe80] sm:$0xff]
                %641 = vst [vmem:[%s175 + $0x740] sm:$0xff] %v640
                %v642 = vld [vmem:[%s174 + $0xe88] sm:$0xff]
                %643 = vst [vmem:[%s175 + $0x748] sm:$0xff] %v642
                %v644 = vld [vmem:[%s174 + $0xe90] sm:$0xff]
                %645 = vst [vmem:[%s175 + $0x750] sm:$0xff] %v644
                %v646 = vld [vmem:[%s174 + $0xe98] sm:$0xff]
                %647 = vst [vmem:[%s175 + $0x758] sm:$0xff] %v646
                %v648 = vld [vmem:[%s174 + $0xec0] sm:$0xff]
                %649 = vst [vmem:[%s175 + $0x760] sm:$0xff] %v648
                %v650 = vld [vmem:[%s174 + $0xec8] sm:$0xff]
                %651 = vst [vmem:[%s175 + $0x768] sm:$0xff] %v650
                %v652 = vld [vmem:[%s174 + $0xed0] sm:$0xff]
                %653 = vst [vmem:[%s175 + $0x770] sm:$0xff] %v652
                %v654 = vld [vmem:[%s174 + $0xed8] sm:$0xff]
                %655 = vst [vmem:[%s175 + $0x778] sm:$0xff] %v654
                %v656 = vld [vmem:[%s174 + $0xf00] sm:$0xff]
                %657 = vst [vmem:[%s175 + $0x780] sm:$0xff] %v656
                %v658 = vld [vmem:[%s174 + $0xf08] sm:$0xff]
                %659 = vst [vmem:[%s175 + $0x788] sm:$0xff] %v658
                %v660 = vld [vmem:[%s174 + $0xf10] sm:$0xff]
                %661 = vst [vmem:[%s175 + $0x790] sm:$0xff] %v660
                %v662 = vld [vmem:[%s174 + $0xf18] sm:$0xff]
                %663 = vst [vmem:[%s175 + $0x798] sm:$0xff] %v662
                %v664 = vld [vmem:[%s174 + $0xf40] sm:$0xff]
                %665 = vst [vmem:[%s175 + $0x7a0] sm:$0xff] %v664
                %v666 = vld [vmem:[%s174 + $0xf48] sm:$0xff]
                %667 = vst [vmem:[%s175 + $0x7a8] sm:$0xff] %v666
                %v668 = vld [vmem:[%s174 + $0xf50] sm:$0xff]
                %669 = vst [vmem:[%s175 + $0x7b0] sm:$0xff] %v668
                %v670 = vld [vmem:[%s174 + $0xf58] sm:$0xff]
                %671 = vst [vmem:[%s175 + $0x7b8] sm:$0xff] %v670
                %v672 = vld [vmem:[%s174 + $0xf80] sm:$0xff]
                %673 = vst [vmem:[%s175 + $0x7c0] sm:$0xff] %v672
                %v674 = vld [vmem:[%s174 + $0xf88] sm:$0xff]
                %675 = vst [vmem:[%s175 + $0x7c8] sm:$0xff] %v674
                %v676 = vld [vmem:[%s174 + $0xf90] sm:$0xff]
                %677 = vst [vmem:[%s175 + $0x7d0] sm:$0xff] %v676
                %v678 = vld [vmem:[%s174 + $0xf98] sm:$0xff]
                %679 = vst [vmem:[%s175 + $0x7d8] sm:$0xff] %v678
                %v680 = vld [vmem:[%s174 + $0xfc0] sm:$0xff]
                %681 = vst [vmem:[%s175 + $0x7e0] sm:$0xff] %v680
                %v682 = vld [vmem:[%s174 + $0xfc8] sm:$0xff]
                %683 = vst [vmem:[%s175 + $0x7e8] sm:$0xff] %v682
                %v684 = vld [vmem:[%s174 + $0xfd0] sm:$0xff]
                %685 = vst [vmem:[%s175 + $0x7f0] sm:$0xff] %v684
                %v686 = vld [vmem:[%s174 + $0xfd8] sm:$0xff]
                %687 = vst [vmem:[%s175 + $0x7f8] sm:$0xff] %v686
              $region37: #{capsule_network_forward.10} parent=31 // loop_footer
                %s173 = sadd.s32 1, %s169
              $region38: #{capsule_network_forward.10} parent=31 // loop_footer_branch
                %168 = sbr.rel target = $region34
              $region39: #{capsule_network_forward.10} parent=31 // loop_exit
                _
            $region32: #{capsule_network_forward.10} parent=27 // pred_fallthru
              _
            // Predicated region
            $region40: #{capsule_network_forward.10} parent=27 // pred_check
              _
            $region41: #{capsule_network_forward.10} parent=27 // pred_check_branch
              %689 = sbr.rel target = $region43
            $region42: #{capsule_network_forward.10} parent=27 // pred_region
              _
            $region43: #{capsule_network_forward.10} parent=27 // pred_fallthru
              _
          $region28: #{capsule_network_forward.10} parent=23 // pred_fallthru
            _
          %690 = vnop
        $region24: #{capsule_network_forward.10} parent=19 // pred_fallthru
          _
        // Predicated region
        $region44: #{capsule_network_forward.10} parent=19 // pred_check
          %p691 = pneg %p93
        $region45: #{capsule_network_forward.10} parent=19 // pred_check_branch
          %693 = sbr.rel (%p691) target = $region47
        $region46: #{capsule_network_forward.10} parent=19 // pred_region
          %s694 = smul.u32 4, %s17
          %p695 = scmp.lt.s32.totalorder %s694, 7
          %s696 = scalar_select %p695, %s694, 7
          %s697 = scalar_lea.vmem %s2, %s696
          %s698 = smul.u32 4, %s17
        $region47: #{capsule_network_forward.10} parent=19 // pred_fallthru
          _
      $region20: #{capsule_network_forward.10} parent=5 // pred_fallthru
        _
      %p699 = scmp.le.s32.totalorder 1, %s9
      %p700 = scmp.lt.s32.totalorder %s9, 3
      %p701 = pnand %p699, %p700
      %p702 = pneg %p701
      // Predicated region
      $region48: #{capsule_network_forward.10} parent=5 // pred_check
        _
      $region49: #{capsule_network_forward.10} parent=5 // pred_check_branch
        %704 = sbr.rel (%p701) target = $region51
      $region50: #{capsule_network_forward.10} parent=5 // pred_region
        %s705 = ssub.s32 %s9, 1
        %s706 = sand.u32 %s60, 1
        %s707 = sand.u32 %s60, 1
        %s708 = smul.addr %s707, 2048
        %s709 = scalar_lea.vmem [#allocation2], %s708
        // Predicated region
        $region52: #{capsule_network_forward.10} parent=50 // pred_check
          %p710 = pneg %p73
        $region53: #{capsule_network_forward.10} parent=50 // pred_check_branch
          %712 = sbr.rel (%p710) target = $region55
        $region54: #{capsule_network_forward.10} parent=50 // pred_region
          _
        $region55: #{capsule_network_forward.10} parent=50 // pred_fallthru
          _
        %p713 = scmp.lt.s32.totalorder %s18, 0
        %s714 = scalar_select %p713, %s18, 0
        %s715 = smul.addr %s714, 4
        %s716 = smul.addr %s715, 2
        %s717 = scalar_lea.vmem %s0, %s716
        %p718 = pneg %p47
        %p719 = pneg %p44
        %s720 = sand.u32 %s60, 1
        %s721 = sand.u32 %s60, 1
        %s722 = smul.addr %s721, 2048
        %s723 = scalar_lea.vmem [#allocation2], %s722
        %p724 = pneg %p73
        %p725 = pneg %p70
        %s726 = smul.u32 4, %s19
        %p727 = scmp.lt.s32.totalorder %s726, 7
        %s728 = scalar_select %p727, %s726, 7
        %s729 = scalar_lea.vmem %s2, %s728
        %p730 = pneg %p99
        %p731 = pneg %p96
        %p732 = pneg %p127
        %p733 = pneg %p124
        %s734 = smul.u32 4, %s19
        %p735 = scmp.lt.s32.totalorder %s18, 0
        %s736 = scalar_select %p735, %s18, 0
        %p737 = scmp.lt.s32.totalorder %s734, 7
        %s738 = scalar_select %p737, %s734, 7
        %s739 = smul.addr %s736, 8
        %s740 = sadd.s32 %s738, %s739
        %s741 = smul.addr %s740, 2
        %s742 = scalar_lea.vmem %s3, %s741
        %p743 = scmp.lt.s32.totalorder %s18, 0
        %s744 = scalar_select %p743, %s18, 0
        %s745 = smul.addr %s744, 4
        %s746 = smul.addr %s745, 2
        %s747 = scalar_lea.vmem %s0, %s746
        %s748 = smul.u32 4, %s19
        %s749 = smul.u32 4, %s19
        %p750 = scmp.lt.s32.totalorder %s749, 7
        %s751 = scalar_select %p750, %s749, 7
        %s752 = scalar_lea.vmem %s2, %s751
        %s753 = smul.u32 4, %s19
        %s754 = smul.u32 4, %s19
        %p755 = scmp.lt.s32.totalorder %s18, 0
        %s756 = scalar_select %p755, %s18, 0
        %p757 = scmp.lt.s32.totalorder %s754, 7
        %s758 = scalar_select %p757, %s754, 7
        %s759 = smul.addr %s756, 8
        %s760 = sadd.s32 %s758, %s759
        %s761 = smul.addr %s760, 2
        %s762 = scalar_lea.vmem %s3, %s761
        %s763 = smul.u32 4, %s19
        %v764 = vld [vmem:[%s747] sm:$0xff]
        %v765 = vld [vmem:[%s709] sm:$0xff]
        %v766 = vld [vmem:[%s709 + $0x8] sm:$0xff]
        %v767 = vld [vmem:[%s709 + $0x10] sm:$0xff]
        %v768 = vld [vmem:[%s709 + $0x18] sm:$0xff]
        %v769 = vld [vmem:[%s709 + $0x20] sm:$0xff]
        %v770 = vld [vmem:[%s709 + $0x28] sm:$0xff]
        %v771 = vld [vmem:[%s709 + $0x30] sm:$0xff]
        %v772 = vld [vmem:[%s709 + $0x38] sm:$0xff]
        %v773 = vld [vmem:[%s709 + $0x40] sm:$0xff]
        %v774 = vld [vmem:[%s709 + $0x48] sm:$0xff]
        %v775 = vld [vmem:[%s709 + $0x50] sm:$0xff]
        %v776 = vld [vmem:[%s709 + $0x58] sm:$0xff]
        %v777 = vld [vmem:[%s709 + $0x60] sm:$0xff]
        %v778 = vld [vmem:[%s709 + $0x68] sm:$0xff]
        %v779 = vld [vmem:[%s709 + $0x70] sm:$0xff]
        %v780 = vld [vmem:[%s709 + $0x78] sm:$0xff]
        %v781 = vld [vmem:[%s709 + $0x80] sm:$0xff]
        %v782 = vld [vmem:[%s709 + $0x88] sm:$0xff]
        %v783 = vld [vmem:[%s709 + $0x90] sm:$0xff]
        %v784 = vld [vmem:[%s709 + $0x98] sm:$0xff]
        %v785 = vld [vmem:[%s709 + $0xa0] sm:$0xff]
        %v786 = vld [vmem:[%s709 + $0xa8] sm:$0xff]
        %v787 = vld [vmem:[%s709 + $0xb0] sm:$0xff]
        %v788 = vld [vmem:[%s709 + $0xb8] sm:$0xff]
        %v789 = vld [vmem:[%s709 + $0xc0] sm:$0xff]
        %v790 = vld [vmem:[%s709 + $0xc8] sm:$0xff]
        %v791 = vld [vmem:[%s709 + $0xd0] sm:$0xff]
        %v792 = vld [vmem:[%s709 + $0xd8] sm:$0xff]
        %v793 = vld [vmem:[%s709 + $0xe0] sm:$0xff]
        %v794 = vld [vmem:[%s709 + $0xe8] sm:$0xff]
        %v795 = vld [vmem:[%s709 + $0xf0] sm:$0xff]
        %v796 = vld [vmem:[%s709 + $0xf8] sm:$0xff]
        %v797 = vld [vmem:[%s709 + $0x100] sm:$0xff]
        %v798 = vld [vmem:[%s709 + $0x108] sm:$0xff]
        %v799 = vld [vmem:[%s709 + $0x110] sm:$0xff]
        %v800 = vld [vmem:[%s709 + $0x118] sm:$0xff]
        %v801 = vld [vmem:[%s709 + $0x120] sm:$0xff]
        %v802 = vld [vmem:[%s709 + $0x128] sm:$0xff]
        %v803 = vld [vmem:[%s709 + $0x130] sm:$0xff]
        %v804 = vld [vmem:[%s709 + $0x138] sm:$0xff]
        %v805 = vld [vmem:[%s709 + $0x140] sm:$0xff]
        %v806 = vld [vmem:[%s709 + $0x148] sm:$0xff]
        %v807 = vld [vmem:[%s709 + $0x150] sm:$0xff]
        %v808 = vld [vmem:[%s709 + $0x158] sm:$0xff]
        %v809 = vld [vmem:[%s709 + $0x160] sm:$0xff]
        %v810 = vld [vmem:[%s709 + $0x168] sm:$0xff]
        %v811 = vld [vmem:[%s709 + $0x170] sm:$0xff]
        %v812 = vld [vmem:[%s709 + $0x178] sm:$0xff]
        %v813 = vld [vmem:[%s709 + $0x180] sm:$0xff]
        %v814 = vld [vmem:[%s709 + $0x188] sm:$0xff]
        %v815 = vld [vmem:[%s709 + $0x190] sm:$0xff]
        %v816 = vld [vmem:[%s709 + $0x198] sm:$0xff]
        %v817 = vld [vmem:[%s709 + $0x1a0] sm:$0xff]
        %v818 = vld [vmem:[%s709 + $0x1a8] sm:$0xff]
        %v819 = vld [vmem:[%s709 + $0x1b0] sm:$0xff]
        %v820 = vld [vmem:[%s709 + $0x1b8] sm:$0xff]
        %v821 = vld [vmem:[%s709 + $0x1c0] sm:$0xff]
        %v822 = vld [vmem:[%s709 + $0x1c8] sm:$0xff]
        %v823 = vld [vmem:[%s709 + $0x1d0] sm:$0xff]
        %v824 = vld [vmem:[%s709 + $0x1d8] sm:$0xff]
        %v825 = vld [vmem:[%s709 + $0x1e0] sm:$0xff]
        %v826 = vld [vmem:[%s709 + $0x1e8] sm:$0xff]
        %v827 = vld [vmem:[%s709 + $0x1f0] sm:$0xff]
        %v828 = vld [vmem:[%s709 + $0x1f8] sm:$0xff]
        %v829 = vld [vmem:[%s709 + $0x200] sm:$0xff]
        %v830 = vld [vmem:[%s709 + $0x208] sm:$0xff]
        %v831 = vld [vmem:[%s709 + $0x210] sm:$0xff]
        %v832 = vld [vmem:[%s709 + $0x218] sm:$0xff]
        %v833 = vld [vmem:[%s709 + $0x220] sm:$0xff]
        %v834 = vld [vmem:[%s709 + $0x228] sm:$0xff]
        %v835 = vld [vmem:[%s709 + $0x230] sm:$0xff]
        %v836 = vld [vmem:[%s709 + $0x238] sm:$0xff]
        %v837 = vld [vmem:[%s709 + $0x240] sm:$0xff]
        %v838 = vld [vmem:[%s709 + $0x248] sm:$0xff]
        %v839 = vld [vmem:[%s709 + $0x250] sm:$0xff]
        %v840 = vld [vmem:[%s709 + $0x258] sm:$0xff]
        %v841 = vld [vmem:[%s709 + $0x260] sm:$0xff]
        %v842 = vld [vmem:[%s709 + $0x268] sm:$0xff]
        %v843 = vld [vmem:[%s709 + $0x270] sm:$0xff]
        %v844 = vld [vmem:[%s709 + $0x278] sm:$0xff]
        %v845 = vld [vmem:[%s709 + $0x280] sm:$0xff]
        %v846 = vld [vmem:[%s709 + $0x288] sm:$0xff]
        %v847 = vld [vmem:[%s709 + $0x290] sm:$0xff]
        %v848 = vld [vmem:[%s709 + $0x298] sm:$0xff]
        %v849 = vld [vmem:[%s709 + $0x2a0] sm:$0xff]
        %v850 = vld [vmem:[%s709 + $0x2a8] sm:$0xff]
        %v851 = vld [vmem:[%s709 + $0x2b0] sm:$0xff]
        %v852 = vld [vmem:[%s709 + $0x2b8] sm:$0xff]
        %v853 = vld [vmem:[%s709 + $0x2c0] sm:$0xff]
        %v854 = vld [vmem:[%s709 + $0x2c8] sm:$0xff]
        %v855 = vld [vmem:[%s709 + $0x2d0] sm:$0xff]
        %v856 = vld [vmem:[%s709 + $0x2d8] sm:$0xff]
        %v857 = vld [vmem:[%s709 + $0x2e0] sm:$0xff]
        %v858 = vld [vmem:[%s709 + $0x2e8] sm:$0xff]
        %v859 = vld [vmem:[%s709 + $0x2f0] sm:$0xff]
        %v860 = vld [vmem:[%s709 + $0x2f8] sm:$0xff]
        %v861 = vld [vmem:[%s709 + $0x300] sm:$0xff]
        %v862 = vld [vmem:[%s709 + $0x308] sm:$0xff]
        %v863 = vld [vmem:[%s709 + $0x310] sm:$0xff]
        %v864 = vld [vmem:[%s709 + $0x318] sm:$0xff]
        %v865 = vld [vmem:[%s709 + $0x320] sm:$0xff]
        %v866 = vld [vmem:[%s709 + $0x328] sm:$0xff]
        %v867 = vld [vmem:[%s709 + $0x330] sm:$0xff]
        %v868 = vld [vmem:[%s709 + $0x338] sm:$0xff]
        %v869 = vld [vmem:[%s709 + $0x340] sm:$0xff]
        %v870 = vld [vmem:[%s709 + $0x348] sm:$0xff]
        %v871 = vld [vmem:[%s709 + $0x350] sm:$0xff]
        %v872 = vld [vmem:[%s709 + $0x358] sm:$0xff]
        %v873 = vld [vmem:[%s709 + $0x360] sm:$0xff]
        %v874 = vld [vmem:[%s709 + $0x368] sm:$0xff]
        %v875 = vld [vmem:[%s709 + $0x370] sm:$0xff]
        %v876 = vld [vmem:[%s709 + $0x378] sm:$0xff]
        %v877 = vld [vmem:[%s709 + $0x380] sm:$0xff]
        %v878 = vld [vmem:[%s709 + $0x388] sm:$0xff]
        %v879 = vld [vmem:[%s709 + $0x390] sm:$0xff]
        %v880 = vld [vmem:[%s709 + $0x398] sm:$0xff]
        %v881 = vld [vmem:[%s709 + $0x3a0] sm:$0xff]
        %v882 = vld [vmem:[%s709 + $0x3a8] sm:$0xff]
        %v883 = vld [vmem:[%s709 + $0x3b0] sm:$0xff]
        %v884 = vld [vmem:[%s709 + $0x3b8] sm:$0xff]
        %v885 = vld [vmem:[%s709 + $0x3c0] sm:$0xff]
        %v886 = vld [vmem:[%s709 + $0x3c8] sm:$0xff]
        %v887 = vld [vmem:[%s709 + $0x3d0] sm:$0xff]
        %v888 = vld [vmem:[%s709 + $0x3d8] sm:$0xff]
        %v889 = vld [vmem:[%s709 + $0x3e0] sm:$0xff]
        %v890 = vld [vmem:[%s709 + $0x3e8] sm:$0xff]
        %v891 = vld [vmem:[%s709 + $0x3f0] sm:$0xff]
        %v892 = vld [vmem:[%s709 + $0x3f8] sm:$0xff]
        %v893 = vld [vmem:[%s709 + $0x400] sm:$0xff]
        %v894 = vld [vmem:[%s709 + $0x408] sm:$0xff]
        %v895 = vld [vmem:[%s709 + $0x410] sm:$0xff]
        %v896 = vld [vmem:[%s709 + $0x418] sm:$0xff]
        %v897 = vld [vmem:[%s709 + $0x420] sm:$0xff]
        %v898 = vld [vmem:[%s709 + $0x428] sm:$0xff]
        %v899 = vld [vmem:[%s709 + $0x430] sm:$0xff]
        %v900 = vld [vmem:[%s709 + $0x438] sm:$0xff]
        %v901 = vld [vmem:[%s709 + $0x440] sm:$0xff]
        %v902 = vld [vmem:[%s709 + $0x448] sm:$0xff]
        %v903 = vld [vmem:[%s709 + $0x450] sm:$0xff]
        %v904 = vld [vmem:[%s709 + $0x458] sm:$0xff]
        %v905 = vld [vmem:[%s709 + $0x460] sm:$0xff]
        %v906 = vld [vmem:[%s709 + $0x468] sm:$0xff]
        %v907 = vld [vmem:[%s709 + $0x470] sm:$0xff]
        %v908 = vld [vmem:[%s709 + $0x478] sm:$0xff]
        %v909 = vld [vmem:[%s709 + $0x480] sm:$0xff]
        %v910 = vld [vmem:[%s709 + $0x488] sm:$0xff]
        %v911 = vld [vmem:[%s709 + $0x490] sm:$0xff]
        %v912 = vld [vmem:[%s709 + $0x498] sm:$0xff]
        %v913 = vld [vmem:[%s709 + $0x4a0] sm:$0xff]
        %v914 = vld [vmem:[%s709 + $0x4a8] sm:$0xff]
        %v915 = vld [vmem:[%s709 + $0x4b0] sm:$0xff]
        %v916 = vld [vmem:[%s709 + $0x4b8] sm:$0xff]
        %v917 = vld [vmem:[%s709 + $0x4c0] sm:$0xff]
        %v918 = vld [vmem:[%s709 + $0x4c8] sm:$0xff]
        %v919 = vld [vmem:[%s709 + $0x4d0] sm:$0xff]
        %v920 = vld [vmem:[%s709 + $0x4d8] sm:$0xff]
        %v921 = vld [vmem:[%s709 + $0x4e0] sm:$0xff]
        %v922 = vld [vmem:[%s709 + $0x4e8] sm:$0xff]
        %v923 = vld [vmem:[%s709 + $0x4f0] sm:$0xff]
        %v924 = vld [vmem:[%s709 + $0x4f8] sm:$0xff]
        %v925 = vld [vmem:[%s709 + $0x500] sm:$0xff]
        %v926 = vld [vmem:[%s709 + $0x508] sm:$0xff]
        %v927 = vld [vmem:[%s709 + $0x510] sm:$0xff]
        %v928 = vld [vmem:[%s709 + $0x518] sm:$0xff]
        %v929 = vld [vmem:[%s709 + $0x520] sm:$0xff]
        %v930 = vld [vmem:[%s709 + $0x528] sm:$0xff]
        %v931 = vld [vmem:[%s709 + $0x530] sm:$0xff]
        %v932 = vld [vmem:[%s709 + $0x538] sm:$0xff]
        %v933 = vld [vmem:[%s709 + $0x540] sm:$0xff]
        %v934 = vld [vmem:[%s709 + $0x548] sm:$0xff]
        %v935 = vld [vmem:[%s709 + $0x550] sm:$0xff]
        %v936 = vld [vmem:[%s709 + $0x558] sm:$0xff]
        %v937 = vld [vmem:[%s709 + $0x560] sm:$0xff]
        %v938 = vld [vmem:[%s709 + $0x568] sm:$0xff]
        %v939 = vld [vmem:[%s709 + $0x570] sm:$0xff]
        %v940 = vld [vmem:[%s709 + $0x578] sm:$0xff]
        %v941 = vld [vmem:[%s709 + $0x580] sm:$0xff]
        %v942 = vld [vmem:[%s709 + $0x588] sm:$0xff]
        %v943 = vld [vmem:[%s709 + $0x590] sm:$0xff]
        %v944 = vld [vmem:[%s709 + $0x598] sm:$0xff]
        %v945 = vld [vmem:[%s709 + $0x5a0] sm:$0xff]
        %v946 = vld [vmem:[%s709 + $0x5a8] sm:$0xff]
        %v947 = vld [vmem:[%s709 + $0x5b0] sm:$0xff]
        %v948 = vld [vmem:[%s709 + $0x5b8] sm:$0xff]
        %v949 = vld [vmem:[%s709 + $0x5c0] sm:$0xff]
        %v950 = vld [vmem:[%s709 + $0x5c8] sm:$0xff]
        %v951 = vld [vmem:[%s709 + $0x5d0] sm:$0xff]
        %v952 = vld [vmem:[%s709 + $0x5d8] sm:$0xff]
        %v953 = vld [vmem:[%s709 + $0x5e0] sm:$0xff]
        %v954 = vld [vmem:[%s709 + $0x5e8] sm:$0xff]
        %v955 = vld [vmem:[%s709 + $0x5f0] sm:$0xff]
        %v956 = vld [vmem:[%s709 + $0x5f8] sm:$0xff]
        %v957 = vld [vmem:[%s709 + $0x600] sm:$0xff]
        %v958 = vld [vmem:[%s709 + $0x608] sm:$0xff]
        %v959 = vld [vmem:[%s709 + $0x610] sm:$0xff]
        %v960 = vld [vmem:[%s709 + $0x618] sm:$0xff]
        %v961 = vld [vmem:[%s709 + $0x620] sm:$0xff]
        %v962 = vld [vmem:[%s709 + $0x628] sm:$0xff]
        %v963 = vld [vmem:[%s709 + $0x630] sm:$0xff]
        %v964 = vld [vmem:[%s709 + $0x638] sm:$0xff]
        %v965 = vld [vmem:[%s709 + $0x640] sm:$0xff]
        %v966 = vld [vmem:[%s709 + $0x648] sm:$0xff]
        %v967 = vld [vmem:[%s709 + $0x650] sm:$0xff]
        %v968 = vld [vmem:[%s709 + $0x658] sm:$0xff]
        %v969 = vld [vmem:[%s709 + $0x660] sm:$0xff]
        %v970 = vld [vmem:[%s709 + $0x668] sm:$0xff]
        %v971 = vld [vmem:[%s709 + $0x670] sm:$0xff]
        %v972 = vld [vmem:[%s709 + $0x678] sm:$0xff]
        %v973 = vld [vmem:[%s709 + $0x680] sm:$0xff]
        %v974 = vld [vmem:[%s709 + $0x688] sm:$0xff]
        %v975 = vld [vmem:[%s709 + $0x690] sm:$0xff]
        %v976 = vld [vmem:[%s709 + $0x698] sm:$0xff]
        %v977 = vld [vmem:[%s709 + $0x6a0] sm:$0xff]
        %v978 = vld [vmem:[%s709 + $0x6a8] sm:$0xff]
        %v979 = vld [vmem:[%s709 + $0x6b0] sm:$0xff]
        %v980 = vld [vmem:[%s709 + $0x6b8] sm:$0xff]
        %v981 = vld [vmem:[%s709 + $0x6c0] sm:$0xff]
        %v982 = vld [vmem:[%s709 + $0x6c8] sm:$0xff]
        %v983 = vld [vmem:[%s709 + $0x6d0] sm:$0xff]
        %v984 = vld [vmem:[%s709 + $0x6d8] sm:$0xff]
        %v985 = vld [vmem:[%s709 + $0x6e0] sm:$0xff]
        %v986 = vld [vmem:[%s709 + $0x6e8] sm:$0xff]
        %v987 = vld [vmem:[%s709 + $0x6f0] sm:$0xff]
        %v988 = vld [vmem:[%s709 + $0x6f8] sm:$0xff]
        %v989 = vld [vmem:[%s709 + $0x700] sm:$0xff]
        %v990 = vld [vmem:[%s709 + $0x708] sm:$0xff]
        %v991 = vld [vmem:[%s709 + $0x710] sm:$0xff]
        %v992 = vld [vmem:[%s709 + $0x718] sm:$0xff]
        %v993 = vld [vmem:[%s709 + $0x720] sm:$0xff]
        %v994 = vld [vmem:[%s709 + $0x728] sm:$0xff]
        %v995 = vld [vmem:[%s709 + $0x730] sm:$0xff]
        %v996 = vld [vmem:[%s709 + $0x738] sm:$0xff]
        %v997 = vld [vmem:[%s709 + $0x740] sm:$0xff]
        %v998 = vld [vmem:[%s709 + $0x748] sm:$0xff]
        %v999 = vld [vmem:[%s709 + $0x750] sm:$0xff]
        %v1000 = vld [vmem:[%s709 + $0x758] sm:$0xff]
        %v1001 = vld [vmem:[%s709 + $0x760] sm:$0xff]
        %v1002 = vld [vmem:[%s709 + $0x768] sm:$0xff]
        %v1003 = vld [vmem:[%s709 + $0x770] sm:$0xff]
        %v1004 = vld [vmem:[%s709 + $0x778] sm:$0xff]
        %v1005 = vld [vmem:[%s709 + $0x780] sm:$0xff]
        %v1006 = vld [vmem:[%s709 + $0x788] sm:$0xff]
        %v1007 = vld [vmem:[%s709 + $0x790] sm:$0xff]
        %v1008 = vld [vmem:[%s709 + $0x798] sm:$0xff]
        %v1009 = vld [vmem:[%s709 + $0x7a0] sm:$0xff]
        %v1010 = vld [vmem:[%s709 + $0x7a8] sm:$0xff]
        %v1011 = vld [vmem:[%s709 + $0x7b0] sm:$0xff]
        %v1012 = vld [vmem:[%s709 + $0x7b8] sm:$0xff]
        %v1013 = vld [vmem:[%s709 + $0x7c0] sm:$0xff]
        %v1014 = vld [vmem:[%s709 + $0x7c8] sm:$0xff]
        %v1015 = vld [vmem:[%s709 + $0x7d0] sm:$0xff]
        %v1016 = vld [vmem:[%s709 + $0x7d8] sm:$0xff]
        %v1017 = vld [vmem:[%s709 + $0x7e0] sm:$0xff]
        %v1018 = vld [vmem:[%s709 + $0x7e8] sm:$0xff]
        %v1019 = vld [vmem:[%s709 + $0x7f0] sm:$0xff]
        %v1020 = vld [vmem:[%s709 + $0x7f8] sm:$0xff]
        %v1021 = vld [vmem:[%s752] sm:$0xf]
        %v1023 = vperm.slane %v1021, 0
        %v1024 = vperm.slane %v1021, 1
        %v1025 = vperm.slane %v1021, 2
        %v1026 = vperm.slane %v1021, 3
        %1032 = vst [vmem:[#allocation1] ss:$4 sm:$0xff] %v764
        %v1033 = vld.sshfl [vmem:[#allocation1] sm:$0xff pattern:$0x73625140]
        %v1034 = vld.sshfl [vmem:[#allocation1 + $0x8] sm:$0xff pattern:$0x73625140]
        %v1035 = vld.sshfl [vmem:[#allocation1 + $0x10] sm:$0xff pattern:$0x73625140]
        %v1036 = vld.sshfl [vmem:[#allocation1 + $0x18] sm:$0xff pattern:$0x73625140]
        %1041 = vmatpush.msra.mxu0 %v825
        %1042 = vmatpush.msra.mxu0 %v821
        %1043 = vmatpush.msra.mxu0 %v817
        %1044 = vmatpush.msra.mxu0 %v813
        %1045 = vmatpush.msra.mxu0 %v809
        %1046 = vmatpush.msra.mxu0 %v805
        %1047 = vmatpush.msra.mxu0 %v801
        %1048 = vmatpush.msra.mxu0 %v797
        %1049 = vmatpush.msra.mxu0 %v793
        %1050 = vmatpush.msra.mxu0 %v789
        %1051 = vmatpush.msra.mxu0 %v785
        %1052 = vmatpush.msra.mxu0 %v781
        %1053 = vmatpush.msra.mxu0 %v777
        %1054 = vmatpush.msra.mxu0 %v773
        %1055 = vmatpush.msra.mxu0 %v769
        %1056 = vmatpush.msra.mxu0 %v765
        %1057 = vmatmul.f32.gmra.mxu0 %v1033
        %v1058 = vpop.f32.mrf.mxu0
        %v1059 = vadd.f32 %v1023, %v1058
        %1060 = vdwg.mxu0
        %1061 = vmatpush.msra.mxu0 %v889
        %1062 = vmatpush.msra.mxu0 %v885
        %1063 = vmatpush.msra.mxu0 %v881
        %1064 = vmatpush.msra.mxu0 %v877
        %1065 = vmatpush.msra.mxu0 %v873
        %1066 = vmatpush.msra.mxu0 %v869
        %1067 = vmatpush.msra.mxu0 %v865
        %1068 = vmatpush.msra.mxu0 %v861
        %1069 = vmatpush.msra.mxu0 %v857
        %1070 = vmatpush.msra.mxu0 %v853
        %1071 = vmatpush.msra.mxu0 %v849
        %1072 = vmatpush.msra.mxu0 %v845
        %1073 = vmatpush.msra.mxu0 %v841
        %1074 = vmatpush.msra.mxu0 %v837
        %1075 = vmatpush.msra.mxu0 %v833
        %1076 = vmatpush.msra.mxu0 %v829
        %1077 = vmatmul.f32.gmra.mxu0 %v1034
        %v1078 = vpop.f32.mrf.mxu0
        %v1079 = vadd.f32 %v1059, %v1078
        %1080 = vdwg.mxu0
        %1081 = vmatpush.msra.mxu0 %v953
        %1082 = vmatpush.msra.mxu0 %v949
        %1083 = vmatpush.msra.mxu0 %v945
        %1084 = vmatpush.msra.mxu0 %v941
        %1085 = vmatpush.msra.mxu0 %v937
        %1086 = vmatpush.msra.mxu0 %v933
        %1087 = vmatpush.msra.mxu0 %v929
        %1088 = vmatpush.msra.mxu0 %v925
        %1089 = vmatpush.msra.mxu0 %v921
        %1090 = vmatpush.msra.mxu0 %v917
        %1091 = vmatpush.msra.mxu0 %v913
        %1092 = vmatpush.msra.mxu0 %v909
        %1093 = vmatpush.msra.mxu0 %v905
        %1094 = vmatpush.msra.mxu0 %v901
        %1095 = vmatpush.msra.mxu0 %v897
        %1096 = vmatpush.msra.mxu0 %v893
        %1097 = vmatmul.f32.gmra.mxu0 %v1035
        %v1098 = vpop.f32.mrf.mxu0
        %v1099 = vadd.f32 %v1079, %v1098
        %1100 = vdwg.mxu0
        %1101 = vmatpush.msra.mxu0 %v1017
        %1102 = vmatpush.msra.mxu0 %v1013
        %1103 = vmatpush.msra.mxu0 %v1009
        %1104 = vmatpush.msra.mxu0 %v1005
        %1105 = vmatpush.msra.mxu0 %v1001
        %1106 = vmatpush.msra.mxu0 %v997
        %1107 = vmatpush.msra.mxu0 %v993
        %1108 = vmatpush.msra.mxu0 %v989
        %1109 = vmatpush.msra.mxu0 %v985
        %1110 = vmatpush.msra.mxu0 %v981
        %1111 = vmatpush.msra.mxu0 %v977
        %1112 = vmatpush.msra.mxu0 %v973
        %1113 = vmatpush.msra.mxu0 %v969
        %1114 = vmatpush.msra.mxu0 %v965
        %1115 = vmatpush.msra.mxu0 %v961
        %1116 = vmatpush.msra.mxu0 %v957
        %1117 = vmatmul.f32.gmra.mxu0 %v1036
        %v1118 = vpop.f32.mrf.mxu0
        %v1119 = vadd.f32 %v1099, %v1118
        %1120 = vdwg.mxu0
        %1121 = vmatpush.msra.mxu0 %v826
        %1122 = vmatpush.msra.mxu0 %v822
        %1123 = vmatpush.msra.mxu0 %v818
        %1124 = vmatpush.msra.mxu0 %v814
        %1125 = vmatpush.msra.mxu0 %v810
        %1126 = vmatpush.msra.mxu0 %v806
        %1127 = vmatpush.msra.mxu0 %v802
        %1128 = vmatpush.msra.mxu0 %v798
        %1129 = vmatpush.msra.mxu0 %v794
        %1130 = vmatpush.msra.mxu0 %v790
        %1131 = vmatpush.msra.mxu0 %v786
        %1132 = vmatpush.msra.mxu0 %v782
        %1133 = vmatpush.msra.mxu0 %v778
        %1134 = vmatpush.msra.mxu0 %v774
        %1135 = vmatpush.msra.mxu0 %v770
        %1136 = vmatpush.msra.mxu0 %v766
        %1137 = vmatmul.f32.gmra.mxu0 %v1033
        %v1138 = vpop.f32.mrf.mxu0
        %v1139 = vadd.f32 %v1024, %v1138
        %1140 = vdwg.mxu0
        %1141 = vmatpush.msra.mxu0 %v890
        %1142 = vmatpush.msra.mxu0 %v886
        %1143 = vmatpush.msra.mxu0 %v882
        %1144 = vmatpush.msra.mxu0 %v878
        %1145 = vmatpush.msra.mxu0 %v874
        %1146 = vmatpush.msra.mxu0 %v870
        %1147 = vmatpush.msra.mxu0 %v866
        %1148 = vmatpush.msra.mxu0 %v862
        %1149 = vmatpush.msra.mxu0 %v858
        %1150 = vmatpush.msra.mxu0 %v854
        %1151 = vmatpush.msra.mxu0 %v850
        %1152 = vmatpush.msra.mxu0 %v846
        %1153 = vmatpush.msra.mxu0 %v842
        %1154 = vmatpush.msra.mxu0 %v838
        %1155 = vmatpush.msra.mxu0 %v834
        %1156 = vmatpush.msra.mxu0 %v830
        %1157 = vmatmul.f32.gmra.mxu0 %v1034
        %v1158 = vpop.f32.mrf.mxu0
        %v1159 = vadd.f32 %v1139, %v1158
        %1160 = vdwg.mxu0
        %1161 = vmatpush.msra.mxu0 %v954
        %1162 = vmatpush.msra.mxu0 %v950
        %1163 = vmatpush.msra.mxu0 %v946
        %1164 = vmatpush.msra.mxu0 %v942
        %1165 = vmatpush.msra.mxu0 %v938
        %1166 = vmatpush.msra.mxu0 %v934
        %1167 = vmatpush.msra.mxu0 %v930
        %1168 = vmatpush.msra.mxu0 %v926
        %1169 = vmatpush.msra.mxu0 %v922
        %1170 = vmatpush.msra.mxu0 %v918
        %1171 = vmatpush.msra.mxu0 %v914
        %1172 = vmatpush.msra.mxu0 %v910
        %1173 = vmatpush.msra.mxu0 %v906
        %1174 = vmatpush.msra.mxu0 %v902
        %1175 = vmatpush.msra.mxu0 %v898
        %1176 = vmatpush.msra.mxu0 %v894
        %1177 = vmatmul.f32.gmra.mxu0 %v1035
        %v1178 = vpop.f32.mrf.mxu0
        %v1179 = vadd.f32 %v1159, %v1178
        %1180 = vdwg.mxu0
        %1181 = vmatpush.msra.mxu0 %v1018
        %1182 = vmatpush.msra.mxu0 %v1014
        %1183 = vmatpush.msra.mxu0 %v1010
        %1184 = vmatpush.msra.mxu0 %v1006
        %1185 = vmatpush.msra.mxu0 %v1002
        %1186 = vmatpush.msra.mxu0 %v998
        %1187 = vmatpush.msra.mxu0 %v994
        %1188 = vmatpush.msra.mxu0 %v990
        %1189 = vmatpush.msra.mxu0 %v986
        %1190 = vmatpush.msra.mxu0 %v982
        %1191 = vmatpush.msra.mxu0 %v978
        %1192 = vmatpush.msra.mxu0 %v974
        %1193 = vmatpush.msra.mxu0 %v970
        %1194 = vmatpush.msra.mxu0 %v966
        %1195 = vmatpush.msra.mxu0 %v962
        %1196 = vmatpush.msra.mxu0 %v958
        %1197 = vmatmul.f32.gmra.mxu0 %v1036
        %v1198 = vpop.f32.mrf.mxu0
        %v1199 = vadd.f32 %v1179, %v1198
        %1200 = vdwg.mxu0
        %1201 = vmatpush.msra.mxu0 %v827
        %1202 = vmatpush.msra.mxu0 %v823
        %1203 = vmatpush.msra.mxu0 %v819
        %1204 = vmatpush.msra.mxu0 %v815
        %1205 = vmatpush.msra.mxu0 %v811
        %1206 = vmatpush.msra.mxu0 %v807
        %1207 = vmatpush.msra.mxu0 %v803
        %1208 = vmatpush.msra.mxu0 %v799
        %1209 = vmatpush.msra.mxu0 %v795
        %1210 = vmatpush.msra.mxu0 %v791
        %1211 = vmatpush.msra.mxu0 %v787
        %1212 = vmatpush.msra.mxu0 %v783
        %1213 = vmatpush.msra.mxu0 %v779
        %1214 = vmatpush.msra.mxu0 %v775
        %1215 = vmatpush.msra.mxu0 %v771
        %1216 = vmatpush.msra.mxu0 %v767
        %1217 = vmatmul.f32.gmra.mxu0 %v1033
        %v1218 = vpop.f32.mrf.mxu0
        %v1219 = vadd.f32 %v1025, %v1218
        %1220 = vdwg.mxu0
        %1221 = vmatpush.msra.mxu0 %v891
        %1222 = vmatpush.msra.mxu0 %v887
        %1223 = vmatpush.msra.mxu0 %v883
        %1224 = vmatpush.msra.mxu0 %v879
        %1225 = vmatpush.msra.mxu0 %v875
        %1226 = vmatpush.msra.mxu0 %v871
        %1227 = vmatpush.msra.mxu0 %v867
        %1228 = vmatpush.msra.mxu0 %v863
        %1229 = vmatpush.msra.mxu0 %v859
        %1230 = vmatpush.msra.mxu0 %v855
        %1231 = vmatpush.msra.mxu0 %v851
        %1232 = vmatpush.msra.mxu0 %v847
        %1233 = vmatpush.msra.mxu0 %v843
        %1234 = vmatpush.msra.mxu0 %v839
        %1235 = vmatpush.msra.mxu0 %v835
        %1236 = vmatpush.msra.mxu0 %v831
        %1237 = vmatmul.f32.gmra.mxu0 %v1034
        %v1238 = vpop.f32.mrf.mxu0
        %v1239 = vadd.f32 %v1219, %v1238
        %1240 = vdwg.mxu0
        %1241 = vmatpush.msra.mxu0 %v955
        %1242 = vmatpush.msra.mxu0 %v951
        %1243 = vmatpush.msra.mxu0 %v947
        %1244 = vmatpush.msra.mxu0 %v943
        %1245 = vmatpush.msra.mxu0 %v939
        %1246 = vmatpush.msra.mxu0 %v935
        %1247 = vmatpush.msra.mxu0 %v931
        %1248 = vmatpush.msra.mxu0 %v927
        %1249 = vmatpush.msra.mxu0 %v923
        %1250 = vmatpush.msra.mxu0 %v919
        %1251 = vmatpush.msra.mxu0 %v915
        %1252 = vmatpush.msra.mxu0 %v911
        %1253 = vmatpush.msra.mxu0 %v907
        %1254 = vmatpush.msra.mxu0 %v903
        %1255 = vmatpush.msra.mxu0 %v899
        %1256 = vmatpush.msra.mxu0 %v895
        %1257 = vmatmul.f32.gmra.mxu0 %v1035
        %v1258 = vpop.f32.mrf.mxu0
        %v1259 = vadd.f32 %v1239, %v1258
        %1260 = vdwg.mxu0
        %1261 = vmatpush.msra.mxu0 %v1019
        %1262 = vmatpush.msra.mxu0 %v1015
        %1263 = vmatpush.msra.mxu0 %v1011
        %1264 = vmatpush.msra.mxu0 %v1007
        %1265 = vmatpush.msra.mxu0 %v1003
        %1266 = vmatpush.msra.mxu0 %v999
        %1267 = vmatpush.msra.mxu0 %v995
        %1268 = vmatpush.msra.mxu0 %v991
        %1269 = vmatpush.msra.mxu0 %v987
        %1270 = vmatpush.msra.mxu0 %v983
        %1271 = vmatpush.msra.mxu0 %v979
        %1272 = vmatpush.msra.mxu0 %v975
        %1273 = vmatpush.msra.mxu0 %v971
        %1274 = vmatpush.msra.mxu0 %v967
        %1275 = vmatpush.msra.mxu0 %v963
        %1276 = vmatpush.msra.mxu0 %v959
        %1277 = vmatmul.f32.gmra.mxu0 %v1036
        %v1278 = vpop.f32.mrf.mxu0
        %v1279 = vadd.f32 %v1259, %v1278
        %1280 = vdwg.mxu0
        %1281 = vmatpush.msra.mxu0 %v828
        %1282 = vmatpush.msra.mxu0 %v824
        %1283 = vmatpush.msra.mxu0 %v820
        %1284 = vmatpush.msra.mxu0 %v816
        %1285 = vmatpush.msra.mxu0 %v812
        %1286 = vmatpush.msra.mxu0 %v808
        %1287 = vmatpush.msra.mxu0 %v804
        %1288 = vmatpush.msra.mxu0 %v800
        %1289 = vmatpush.msra.mxu0 %v796
        %1290 = vmatpush.msra.mxu0 %v792
        %1291 = vmatpush.msra.mxu0 %v788
        %1292 = vmatpush.msra.mxu0 %v784
        %1293 = vmatpush.msra.mxu0 %v780
        %1294 = vmatpush.msra.mxu0 %v776
        %1295 = vmatpush.msra.mxu0 %v772
        %1296 = vmatpush.msra.mxu0 %v768
        %1297 = vmatmul.f32.gmra.mxu0 %v1033
        %v1298 = vpop.f32.mrf.mxu0
        %v1299 = vadd.f32 %v1026, %v1298
        %1300 = vdwg.mxu0
        %1301 = vmatpush.msra.mxu0 %v892
        %1302 = vmatpush.msra.mxu0 %v888
        %1303 = vmatpush.msra.mxu0 %v884
        %1304 = vmatpush.msra.mxu0 %v880
        %1305 = vmatpush.msra.mxu0 %v876
        %1306 = vmatpush.msra.mxu0 %v872
        %1307 = vmatpush.msra.mxu0 %v868
        %1308 = vmatpush.msra.mxu0 %v864
        %1309 = vmatpush.msra.mxu0 %v860
        %1310 = vmatpush.msra.mxu0 %v856
        %1311 = vmatpush.msra.mxu0 %v852
        %1312 = vmatpush.msra.mxu0 %v848
        %1313 = vmatpush.msra.mxu0 %v844
        %1314 = vmatpush.msra.mxu0 %v840
        %1315 = vmatpush.msra.mxu0 %v836
        %1316 = vmatpush.msra.mxu0 %v832
        %1317 = vmatmul.f32.gmra.mxu0 %v1034
        %v1318 = vpop.f32.mrf.mxu0
        %v1319 = vadd.f32 %v1299, %v1318
        %1320 = vdwg.mxu0
        %1321 = vmatpush.msra.mxu0 %v956
        %1322 = vmatpush.msra.mxu0 %v952
        %1323 = vmatpush.msra.mxu0 %v948
        %1324 = vmatpush.msra.mxu0 %v944
        %1325 = vmatpush.msra.mxu0 %v940
        %1326 = vmatpush.msra.mxu0 %v936
        %1327 = vmatpush.msra.mxu0 %v932
        %1328 = vmatpush.msra.mxu0 %v928
        %1329 = vmatpush.msra.mxu0 %v924
        %1330 = vmatpush.msra.mxu0 %v920
        %1331 = vmatpush.msra.mxu0 %v916
        %1332 = vmatpush.msra.mxu0 %v912
        %1333 = vmatpush.msra.mxu0 %v908
        %1334 = vmatpush.msra.mxu0 %v904
        %1335 = vmatpush.msra.mxu0 %v900
        %1336 = vmatpush.msra.mxu0 %v896
        %1337 = vmatmul.f32.gmra.mxu0 %v1035
        %v1338 = vpop.f32.mrf.mxu0
        %v1339 = vadd.f32 %v1319, %v1338
        %1340 = vdwg.mxu0
        %1341 = vmatpush.msra.mxu0 %v1020
        %1342 = vmatpush.msra.mxu0 %v1016
        %1343 = vmatpush.msra.mxu0 %v1012
        %1344 = vmatpush.msra.mxu0 %v1008
        %1345 = vmatpush.msra.mxu0 %v1004
        %1346 = vmatpush.msra.mxu0 %v1000
        %1347 = vmatpush.msra.mxu0 %v996
        %1348 = vmatpush.msra.mxu0 %v992
        %1349 = vmatpush.msra.mxu0 %v988
        %1350 = vmatpush.msra.mxu0 %v984
        %1351 = vmatpush.msra.mxu0 %v980
        %1352 = vmatpush.msra.mxu0 %v976
        %1353 = vmatpush.msra.mxu0 %v972
        %1354 = vmatpush.msra.mxu0 %v968
        %1355 = vmatpush.msra.mxu0 %v964
        %1356 = vmatpush.msra.mxu0 %v960
        %1357 = vmatmul.f32.gmra.mxu0 %v1036
        %v1358 = vpop.f32.mrf.mxu0
        %v1359 = vadd.f32 %v1339, %v1358
        %1360 = vdwg.mxu0
        %v1361 = vmax.f32 %v1119, 0.0
        %v1362 = vmax.f32 %v1199, 0.0
        %v1363 = vmax.f32 %v1279, 0.0
        %v1364 = vmax.f32 %v1359, 0.0
        %v1369 = vrot.slane %v1362, 6
        %v1370 = vrot.slane %v1363, 4
        %v1371 = vrot.slane %v1364, 2
        %vm1372 = vcmask 1041408
        %v1373 = vsel %vm1372, %v1361, %v1369
        %vm1374 = vcmask 1045508
        %v1375 = vsel %vm1374, %v1370, %v1371
        %vm1376 = vcmask 1043456
        %v1377 = vsel %vm1376, %v1373, %v1375
        %1379 = vst [vmem:[%s762] sm:$0xff] %v1377
        %s1380 = smul.u32 4, %s19
        %p1381 = scmp.lt.s32.totalorder %s18, 0
        %s1382 = scalar_select %p1381, %s18, 0
        %p1383 = scmp.lt.s32.totalorder %s1380, 7
        %s1384 = scalar_select %p1383, %s1380, 7
        %s1385 = smul.addr %s1382, 8
        %s1386 = sadd.s32 %s1384, %s1385
        %s1387 = smul.addr %s1386, 2
        %s1388 = scalar_lea.vmem %s3, %s1387
        // Predicated region
        $region56: #{capsule_network_forward.10} parent=50 // pred_check
          %p1389 = pneg %p124
        $region57: #{capsule_network_forward.10} parent=50 // pred_check_branch
          %1391 = sbr.rel (%p1389) target = $region59
        $region58: #{capsule_network_forward.10} parent=50 // pred_region
          %s1392 = smul.u32 4, %s19
        $region59: #{capsule_network_forward.10} parent=50 // pred_fallthru
          _
      $region51: #{capsule_network_forward.10} parent=5 // pred_fallthru
        _
      %p1393 = scmp.le.s32.totalorder 2, %s9
      // Predicated region
      $region60: #{capsule_network_forward.10} parent=5 // pred_check
        %p1394 = pneg %p1393
      $region61: #{capsule_network_forward.10} parent=5 // pred_check_branch
        %1396 = sbr.rel (%p1394) target = $region63
      $region62: #{capsule_network_forward.10} parent=5 // pred_region
        %s1397 = ssub.s32 %s9, 2
        // Predicated region
        $region64: #{capsule_network_forward.10} parent=62 // pred_check
          %p1398 = pneg %p130
        $region65: #{capsule_network_forward.10} parent=62 // pred_check_branch
          %1400 = sbr.rel (%p1398) target = $region67
        $region66: #{capsule_network_forward.10} parent=62 // pred_region
          %s1401 = smul.u32 4, %s21
          %p1402 = scmp.lt.s32.totalorder %s20, 0
          %s1403 = scalar_select %p1402, %s20, 0
          %p1404 = scmp.lt.s32.totalorder %s1401, 7
          %s1405 = scalar_select %p1404, %s1401, 7
          %s1406 = smul.addr %s1403, 8
          %s1407 = sadd.s32 %s1405, %s1406
          %s1408 = smul.addr %s1407, 2
          %s1409 = scalar_lea.vmem %s3, %s1408
        $region67: #{capsule_network_forward.10} parent=62 // pred_fallthru
          _
      $region63: #{capsule_network_forward.10} parent=5 // pred_fallthru
        _
    $region6: #{capsule_network_forward.10} parent=1 // loop_footer
      %s13 = sadd.s32 1, %s9
    $region7: #{capsule_network_forward.10} parent=1 // loop_footer_branch
      %8 = sbr.rel target = $region3
    $region8: #{capsule_network_forward.10} parent=1 // loop_exit
      _

// kernel: capsule_network_forward.11
$region0: #{capsule_network_forward.11}
  #allocation0 [shape = 'u32[]', space=smem, size = 0x4, offset = 0x4, fixed_abs, tag = 'smem constant byte address 0x4 - core index']
  #allocation1 [shape = 'u32[72,128]{1,0:T(1,128)}', space=vmem, size = 0x9000, scoped, tag = 'internal scratch']
  %s0 = inlined_call_operand.vmem [shape: f32[2,1024], index: 0, kind: input, shape index: {}]
  %s1 = inlined_call_operand.vmem [shape: f32[1024,400], index: 1, kind: input, shape index: {}]
  %s2 = inlined_call_operand.vmem [shape: f32[1,400], index: 2, kind: input, shape index: {}]
  %s3 = inlined_call_operand.vmem [shape: f32[2,400], index: 3, kind: output, shape index: {}]
  %s4 = sld [smem:[#allocation0]]
  $region22: #{capsule_network_forward.11} parent=0
    _
  %s6 = ssub.s32 1, %s4
  %s7 = scalar_select 0, %s6, %s4
  // Predicated region
  $region2: #{capsule_network_forward.11} parent=0 // pred_check
    _
  $region3: #{capsule_network_forward.11} parent=0 // pred_check_branch
    %9 = sbr.rel (0) target = $region5
  $region4: #{capsule_network_forward.11} parent=0 // pred_region
    _
  $region5: #{capsule_network_forward.11} parent=0 // pred_fallthru
    _
  // Predicated region
  $region6: #{capsule_network_forward.11} parent=0 // pred_check
    _
  $region7: #{capsule_network_forward.11} parent=0 // pred_check_branch
    %11 = sbr.rel (0) target = $region9
  $region8: #{capsule_network_forward.11} parent=0 // pred_region
    _
  $region9: #{capsule_network_forward.11} parent=0 // pred_fallthru
    _
  // Predicated region
  $region10: #{capsule_network_forward.11} parent=0 // pred_check
    _
  $region11: #{capsule_network_forward.11} parent=0 // pred_check_branch
    %13 = sbr.rel (0) target = $region13
  $region12: #{capsule_network_forward.11} parent=0 // pred_region
    _
  $region13: #{capsule_network_forward.11} parent=0 // pred_fallthru
    _
  %v14 = vld [vmem:[%s0] sm:$0xff]
  %v15 = vld [vmem:[%s0 + $0x8] sm:$0xff]
  %v16 = vld [vmem:[%s1] sm:$0xff]
  %v17 = vld [vmem:[%s1 + $0x8] sm:$0xff]
  %v18 = vld [vmem:[%s1 + $0x10] sm:$0xff]
  %v19 = vld [vmem:[%s1 + $0x18] sm:$0xff]
  %v20 = vld [vmem:[%s1 + $0x20] sm:$0xff]
  %v21 = vld [vmem:[%s1 + $0x28] sm:$0xff]
  %v22 = vld [vmem:[%s1 + $0x30] sm:$0xff]
  %v23 = vld [vmem:[%s1 + $0x38] sm:$0xff]
  %v24 = vld [vmem:[%s1 + $0x40] sm:$0xff]
  %v25 = vld [vmem:[%s1 + $0x48] sm:$0xff]
  %v26 = vld [vmem:[%s1 + $0x50] sm:$0xff]
  %v27 = vld [vmem:[%s1 + $0x58] sm:$0xff]
  %v28 = vld [vmem:[%s1 + $0x60] sm:$0xff]
  %v29 = vld [vmem:[%s1 + $0x68] sm:$0xff]
  %v30 = vld [vmem:[%s1 + $0x70] sm:$0xff]
  %v31 = vld [vmem:[%s1 + $0x78] sm:$0xff]
  %v32 = vld [vmem:[%s1 + $0x80] sm:$0xff]
  %v33 = vld [vmem:[%s1 + $0x88] sm:$0xff]
  %v34 = vld [vmem:[%s1 + $0x90] sm:$0xff]
  %v35 = vld [vmem:[%s1 + $0x98] sm:$0xff]
  %v36 = vld [vmem:[%s1 + $0xa0] sm:$0xff]
  %v37 = vld [vmem:[%s1 + $0xa8] sm:$0xff]
  %v38 = vld [vmem:[%s1 + $0xb0] sm:$0xff]
  %v39 = vld [vmem:[%s1 + $0xb8] sm:$0xff]
  %v40 = vld [vmem:[%s1 + $0xc0] sm:$0xff]
  %v41 = vld [vmem:[%s1 + $0xc8] sm:$0xff]
  %v42 = vld [vmem:[%s1 + $0xd0] sm:$0xff]
  %v43 = vld [vmem:[%s1 + $0xd8] sm:$0xff]
  %v44 = vld [vmem:[%s1 + $0xe0] sm:$0xff]
  %v45 = vld [vmem:[%s1 + $0xe8] sm:$0xff]
  %v46 = vld [vmem:[%s1 + $0xf0] sm:$0xff]
  %v47 = vld [vmem:[%s1 + $0xf8] sm:$0xff]
  %v48 = vld [vmem:[%s1 + $0x100] sm:$0xff]
  %v49 = vld [vmem:[%s1 + $0x108] sm:$0xff]
  %v50 = vld [vmem:[%s1 + $0x110] sm:$0xff]
  %v51 = vld [vmem:[%s1 + $0x118] sm:$0xff]
  %v52 = vld [vmem:[%s1 + $0x120] sm:$0xff]
  %v53 = vld [vmem:[%s1 + $0x128] sm:$0xff]
  %v54 = vld [vmem:[%s1 + $0x130] sm:$0xff]
  %v55 = vld [vmem:[%s1 + $0x138] sm:$0xff]
  %v56 = vld [vmem:[%s1 + $0x140] sm:$0xff]
  %v57 = vld [vmem:[%s1 + $0x148] sm:$0xff]
  %v58 = vld [vmem:[%s1 + $0x150] sm:$0xff]
  %v59 = vld [vmem:[%s1 + $0x158] sm:$0xff]
  %v60 = vld [vmem:[%s1 + $0x160] sm:$0xff]
  %v61 = vld [vmem:[%s1 + $0x168] sm:$0xff]
  %v62 = vld [vmem:[%s1 + $0x170] sm:$0xff]
  %v63 = vld [vmem:[%s1 + $0x178] sm:$0xff]
  %v64 = vld [vmem:[%s1 + $0x180] sm:$0xff]
  %v65 = vld [vmem:[%s1 + $0x188] sm:$0xff]
  %v66 = vld [vmem:[%s1 + $0x190] sm:$0xff]
  %v67 = vld [vmem:[%s1 + $0x198] sm:$0xff]
  %v68 = vld [vmem:[%s1 + $0x1a0] sm:$0xff]
  %v69 = vld [vmem:[%s1 + $0x1a8] sm:$0xff]
  %v70 = vld [vmem:[%s1 + $0x1b0] sm:$0xff]
  %v71 = vld [vmem:[%s1 + $0x1b8] sm:$0xff]
  %v72 = vld [vmem:[%s1 + $0x1c0] sm:$0xff]
  %v73 = vld [vmem:[%s1 + $0x1c8] sm:$0xff]
  %v74 = vld [vmem:[%s1 + $0x1d0] sm:$0xff]
  %v75 = vld [vmem:[%s1 + $0x1d8] sm:$0xff]
  %v76 = vld [vmem:[%s1 + $0x1e0] sm:$0xff]
  %v77 = vld [vmem:[%s1 + $0x1e8] sm:$0xff]
  %v78 = vld [vmem:[%s1 + $0x1f0] sm:$0xff]
  %v79 = vld [vmem:[%s1 + $0x1f8] sm:$0xff]
  %v80 = vld [vmem:[%s1 + $0x200] sm:$0xff]
  %v81 = vld [vmem:[%s1 + $0x208] sm:$0xff]
  %v82 = vld [vmem:[%s1 + $0x210] sm:$0xff]
  %v83 = vld [vmem:[%s1 + $0x218] sm:$0xff]
  %v84 = vld [vmem:[%s1 + $0x220] sm:$0xff]
  %v85 = vld [vmem:[%s1 + $0x228] sm:$0xff]
  %v86 = vld [vmem:[%s1 + $0x230] sm:$0xff]
  %v87 = vld [vmem:[%s1 + $0x238] sm:$0xff]
  %v88 = vld [vmem:[%s1 + $0x240] sm:$0xff]
  %v89 = vld [vmem:[%s1 + $0x248] sm:$0xff]
  %v90 = vld [vmem:[%s1 + $0x250] sm:$0xff]
  %v91 = vld [vmem:[%s1 + $0x258] sm:$0xff]
  %v92 = vld [vmem:[%s1 + $0x260] sm:$0xff]
  %v93 = vld [vmem:[%s1 + $0x268] sm:$0xff]
  %v94 = vld [vmem:[%s1 + $0x270] sm:$0xff]
  %v95 = vld [vmem:[%s1 + $0x278] sm:$0xff]
  %v96 = vld [vmem:[%s1 + $0x280] sm:$0xff]
  %v97 = vld [vmem:[%s1 + $0x288] sm:$0xff]
  %v98 = vld [vmem:[%s1 + $0x290] sm:$0xff]
  %v99 = vld [vmem:[%s1 + $0x298] sm:$0xff]
  %v100 = vld [vmem:[%s1 + $0x2a0] sm:$0xff]
  %v101 = vld [vmem:[%s1 + $0x2a8] sm:$0xff]
  %v102 = vld [vmem:[%s1 + $0x2b0] sm:$0xff]
  %v103 = vld [vmem:[%s1 + $0x2b8] sm:$0xff]
  %v104 = vld [vmem:[%s1 + $0x2c0] sm:$0xff]
  %v105 = vld [vmem:[%s1 + $0x2c8] sm:$0xff]
  %v106 = vld [vmem:[%s1 + $0x2d0] sm:$0xff]
  %v107 = vld [vmem:[%s1 + $0x2d8] sm:$0xff]
  %v108 = vld [vmem:[%s1 + $0x2e0] sm:$0xff]
  %v109 = vld [vmem:[%s1 + $0x2e8] sm:$0xff]
  %v110 = vld [vmem:[%s1 + $0x2f0] sm:$0xff]
  %v111 = vld [vmem:[%s1 + $0x2f8] sm:$0xff]
  %v112 = vld [vmem:[%s1 + $0x300] sm:$0xff]
  %v113 = vld [vmem:[%s1 + $0x308] sm:$0xff]
  %v114 = vld [vmem:[%s1 + $0x310] sm:$0xff]
  %v115 = vld [vmem:[%s1 + $0x318] sm:$0xff]
  %v116 = vld [vmem:[%s1 + $0x320] sm:$0xff]
  %v117 = vld [vmem:[%s1 + $0x328] sm:$0xff]
  %v118 = vld [vmem:[%s1 + $0x330] sm:$0xff]
  %v119 = vld [vmem:[%s1 + $0x338] sm:$0xff]
  %v120 = vld [vmem:[%s1 + $0x340] sm:$0xff]
  %v121 = vld [vmem:[%s1 + $0x348] sm:$0xff]
  %v122 = vld [vmem:[%s1 + $0x350] sm:$0xff]
  %v123 = vld [vmem:[%s1 + $0x358] sm:$0xff]
  %v124 = vld [vmem:[%s1 + $0x360] sm:$0xff]
  %v125 = vld [vmem:[%s1 + $0x368] sm:$0xff]
  %v126 = vld [vmem:[%s1 + $0x370] sm:$0xff]
  %v127 = vld [vmem:[%s1 + $0x378] sm:$0xff]
  %v128 = vld [vmem:[%s1 + $0x380] sm:$0xff]
  %v129 = vld [vmem:[%s1 + $0x388] sm:$0xff]
  %v130 = vld [vmem:[%s1 + $0x390] sm:$0xff]
  %v131 = vld [vmem:[%s1 + $0x398] sm:$0xff]
  %v132 = vld [vmem:[%s1 + $0x3a0] sm:$0xff]
  %v133 = vld [vmem:[%s1 + $0x3a8] sm:$0xff]
  %v134 = vld [vmem:[%s1 + $0x3b0] sm:$0xff]
  %v135 = vld [vmem:[%s1 + $0x3b8] sm:$0xff]
  %v136 = vld [vmem:[%s1 + $0x3c0] sm:$0xff]
  %v137 = vld [vmem:[%s1 + $0x3c8] sm:$0xff]
  %v138 = vld [vmem:[%s1 + $0x3d0] sm:$0xff]
  %v139 = vld [vmem:[%s1 + $0x3d8] sm:$0xff]
  %v140 = vld [vmem:[%s1 + $0x3e0] sm:$0xff]
  %v141 = vld [vmem:[%s1 + $0x3e8] sm:$0xff]
  %v142 = vld [vmem:[%s1 + $0x3f0] sm:$0xff]
  %v143 = vld [vmem:[%s1 + $0x3f8] sm:$0xff]
  %v144 = vld [vmem:[%s1 + $0x400] sm:$0xff]
  %v145 = vld [vmem:[%s1 + $0x408] sm:$0xff]
  %v146 = vld [vmem:[%s1 + $0x410] sm:$0xff]
  %v147 = vld [vmem:[%s1 + $0x418] sm:$0xff]
  %v148 = vld [vmem:[%s1 + $0x420] sm:$0xff]
  %v149 = vld [vmem:[%s1 + $0x428] sm:$0xff]
  %v150 = vld [vmem:[%s1 + $0x430] sm:$0xff]
  %v151 = vld [vmem:[%s1 + $0x438] sm:$0xff]
  %v152 = vld [vmem:[%s1 + $0x440] sm:$0xff]
  %v153 = vld [vmem:[%s1 + $0x448] sm:$0xff]
  %v154 = vld [vmem:[%s1 + $0x450] sm:$0xff]
  %v155 = vld [vmem:[%s1 + $0x458] sm:$0xff]
  %v156 = vld [vmem:[%s1 + $0x460] sm:$0xff]
  %v157 = vld [vmem:[%s1 + $0x468] sm:$0xff]
  %v158 = vld [vmem:[%s1 + $0x470] sm:$0xff]
  %v159 = vld [vmem:[%s1 + $0x478] sm:$0xff]
  %v160 = vld [vmem:[%s1 + $0x480] sm:$0xff]
  %v161 = vld [vmem:[%s1 + $0x488] sm:$0xff]
  %v162 = vld [vmem:[%s1 + $0x490] sm:$0xff]
  %v163 = vld [vmem:[%s1 + $0x498] sm:$0xff]
  %v164 = vld [vmem:[%s1 + $0x4a0] sm:$0xff]
  %v165 = vld [vmem:[%s1 + $0x4a8] sm:$0xff]
  %v166 = vld [vmem:[%s1 + $0x4b0] sm:$0xff]
  %v167 = vld [vmem:[%s1 + $0x4b8] sm:$0xff]
  %v168 = vld [vmem:[%s1 + $0x4c0] sm:$0xff]
  %v169 = vld [vmem:[%s1 + $0x4c8] sm:$0xff]
  %v170 = vld [vmem:[%s1 + $0x4d0] sm:$0xff]
  %v171 = vld [vmem:[%s1 + $0x4d8] sm:$0xff]
  %v172 = vld [vmem:[%s1 + $0x4e0] sm:$0xff]
  %v173 = vld [vmem:[%s1 + $0x4e8] sm:$0xff]
  %v174 = vld [vmem:[%s1 + $0x4f0] sm:$0xff]
  %v175 = vld [vmem:[%s1 + $0x4f8] sm:$0xff]
  %v176 = vld [vmem:[%s1 + $0x500] sm:$0xff]
  %v177 = vld [vmem:[%s1 + $0x508] sm:$0xff]
  %v178 = vld [vmem:[%s1 + $0x510] sm:$0xff]
  %v179 = vld [vmem:[%s1 + $0x518] sm:$0xff]
  %v180 = vld [vmem:[%s1 + $0x520] sm:$0xff]
  %v181 = vld [vmem:[%s1 + $0x528] sm:$0xff]
  %v182 = vld [vmem:[%s1 + $0x530] sm:$0xff]
  %v183 = vld [vmem:[%s1 + $0x538] sm:$0xff]
  %v184 = vld [vmem:[%s1 + $0x540] sm:$0xff]
  %v185 = vld [vmem:[%s1 + $0x548] sm:$0xff]
  %v186 = vld [vmem:[%s1 + $0x550] sm:$0xff]
  %v187 = vld [vmem:[%s1 + $0x558] sm:$0xff]
  %v188 = vld [vmem:[%s1 + $0x560] sm:$0xff]
  %v189 = vld [vmem:[%s1 + $0x568] sm:$0xff]
  %v190 = vld [vmem:[%s1 + $0x570] sm:$0xff]
  %v191 = vld [vmem:[%s1 + $0x578] sm:$0xff]
  %v192 = vld [vmem:[%s1 + $0x580] sm:$0xff]
  %v193 = vld [vmem:[%s1 + $0x588] sm:$0xff]
  %v194 = vld [vmem:[%s1 + $0x590] sm:$0xff]
  %v195 = vld [vmem:[%s1 + $0x598] sm:$0xff]
  %v196 = vld [vmem:[%s1 + $0x5a0] sm:$0xff]
  %v197 = vld [vmem:[%s1 + $0x5a8] sm:$0xff]
  %v198 = vld [vmem:[%s1 + $0x5b0] sm:$0xff]
  %v199 = vld [vmem:[%s1 + $0x5b8] sm:$0xff]
  %v200 = vld [vmem:[%s1 + $0x5c0] sm:$0xff]
  %v201 = vld [vmem:[%s1 + $0x5c8] sm:$0xff]
  %v202 = vld [vmem:[%s1 + $0x5d0] sm:$0xff]
  %v203 = vld [vmem:[%s1 + $0x5d8] sm:$0xff]
  %v204 = vld [vmem:[%s1 + $0x5e0] sm:$0xff]
  %v205 = vld [vmem:[%s1 + $0x5e8] sm:$0xff]
  %v206 = vld [vmem:[%s1 + $0x5f0] sm:$0xff]
  %v207 = vld [vmem:[%s1 + $0x5f8] sm:$0xff]
  %v208 = vld [vmem:[%s1 + $0x600] sm:$0xff]
  %v209 = vld [vmem:[%s1 + $0x608] sm:$0xff]
  %v210 = vld [vmem:[%s1 + $0x610] sm:$0xff]
  %v211 = vld [vmem:[%s1 + $0x618] sm:$0xff]
  %v212 = vld [vmem:[%s1 + $0x620] sm:$0xff]
  %v213 = vld [vmem:[%s1 + $0x628] sm:$0xff]
  %v214 = vld [vmem:[%s1 + $0x630] sm:$0xff]
  %v215 = vld [vmem:[%s1 + $0x638] sm:$0xff]
  %v216 = vld [vmem:[%s1 + $0x640] sm:$0xff]
  %v217 = vld [vmem:[%s1 + $0x648] sm:$0xff]
  %v218 = vld [vmem:[%s1 + $0x650] sm:$0xff]
  %v219 = vld [vmem:[%s1 + $0x658] sm:$0xff]
  %v220 = vld [vmem:[%s1 + $0x660] sm:$0xff]
  %v221 = vld [vmem:[%s1 + $0x668] sm:$0xff]
  %v222 = vld [vmem:[%s1 + $0x670] sm:$0xff]
  %v223 = vld [vmem:[%s1 + $0x678] sm:$0xff]
  %v224 = vld [vmem:[%s1 + $0x680] sm:$0xff]
  %v225 = vld [vmem:[%s1 + $0x688] sm:$0xff]
  %v226 = vld [vmem:[%s1 + $0x690] sm:$0xff]
  %v227 = vld [vmem:[%s1 + $0x698] sm:$0xff]
  %v228 = vld [vmem:[%s1 + $0x6a0] sm:$0xff]
  %v229 = vld [vmem:[%s1 + $0x6a8] sm:$0xff]
  %v230 = vld [vmem:[%s1 + $0x6b0] sm:$0xff]
  %v231 = vld [vmem:[%s1 + $0x6b8] sm:$0xff]
  %v232 = vld [vmem:[%s1 + $0x6c0] sm:$0xff]
  %v233 = vld [vmem:[%s1 + $0x6c8] sm:$0xff]
  %v234 = vld [vmem:[%s1 + $0x6d0] sm:$0xff]
  %v235 = vld [vmem:[%s1 + $0x6d8] sm:$0xff]
  %v236 = vld [vmem:[%s1 + $0x6e0] sm:$0xff]
  %v237 = vld [vmem:[%s1 + $0x6e8] sm:$0xff]
  %v238 = vld [vmem:[%s1 + $0x6f0] sm:$0xff]
  %v239 = vld [vmem:[%s1 + $0x6f8] sm:$0xff]
  %v240 = vld [vmem:[%s1 + $0x700] sm:$0xff]
  %v241 = vld [vmem:[%s1 + $0x708] sm:$0xff]
  %v242 = vld [vmem:[%s1 + $0x710] sm:$0xff]
  %v243 = vld [vmem:[%s1 + $0x718] sm:$0xff]
  %v244 = vld [vmem:[%s1 + $0x720] sm:$0xff]
  %v245 = vld [vmem:[%s1 + $0x728] sm:$0xff]
  %v246 = vld [vmem:[%s1 + $0x730] sm:$0xff]
  %v247 = vld [vmem:[%s1 + $0x738] sm:$0xff]
  %v248 = vld [vmem:[%s1 + $0x740] sm:$0xff]
  %v249 = vld [vmem:[%s1 + $0x748] sm:$0xff]
  %v250 = vld [vmem:[%s1 + $0x750] sm:$0xff]
  %v251 = vld [vmem:[%s1 + $0x758] sm:$0xff]
  %v252 = vld [vmem:[%s1 + $0x760] sm:$0xff]
  %v253 = vld [vmem:[%s1 + $0x768] sm:$0xff]
  %v254 = vld [vmem:[%s1 + $0x770] sm:$0xff]
  %v255 = vld [vmem:[%s1 + $0x778] sm:$0xff]
  %v256 = vld [vmem:[%s1 + $0x780] sm:$0xff]
  %v257 = vld [vmem:[%s1 + $0x788] sm:$0xff]
  %v258 = vld [vmem:[%s1 + $0x790] sm:$0xff]
  %v259 = vld [vmem:[%s1 + $0x798] sm:$0xff]
  %v260 = vld [vmem:[%s1 + $0x7a0] sm:$0xff]
  %v261 = vld [vmem:[%s1 + $0x7a8] sm:$0xff]
  %v262 = vld [vmem:[%s1 + $0x7b0] sm:$0xff]
  %v263 = vld [vmem:[%s1 + $0x7b8] sm:$0xff]
  %v264 = vld [vmem:[%s1 + $0x7c0] sm:$0xff]
  %v265 = vld [vmem:[%s1 + $0x7c8] sm:$0xff]
  %v266 = vld [vmem:[%s1 + $0x7d0] sm:$0xff]
  %v267 = vld [vmem:[%s1 + $0x7d8] sm:$0xff]
  %v268 = vld [vmem:[%s1 + $0x7e0] sm:$0xff]
  %v269 = vld [vmem:[%s1 + $0x7e8] sm:$0xff]
  %v270 = vld [vmem:[%s1 + $0x7f0] sm:$0xff]
  %v271 = vld [vmem:[%s1 + $0x7f8] sm:$0xff]
  %v272 = vld [vmem:[%s1 + $0x800] sm:$0xff]
  %v273 = vld [vmem:[%s1 + $0x808] sm:$0xff]
  %v274 = vld [vmem:[%s1 + $0x810] sm:$0xff]
  %v275 = vld [vmem:[%s1 + $0x818] sm:$0xff]
  %v276 = vld [vmem:[%s1 + $0x820] sm:$0xff]
  %v277 = vld [vmem:[%s1 + $0x828] sm:$0xff]
  %v278 = vld [vmem:[%s1 + $0x830] sm:$0xff]
  %v279 = vld [vmem:[%s1 + $0x838] sm:$0xff]
  %v280 = vld [vmem:[%s1 + $0x840] sm:$0xff]
  %v281 = vld [vmem:[%s1 + $0x848] sm:$0xff]
  %v282 = vld [vmem:[%s1 + $0x850] sm:$0xff]
  %v283 = vld [vmem:[%s1 + $0x858] sm:$0xff]
  %v284 = vld [vmem:[%s1 + $0x860] sm:$0xff]
  %v285 = vld [vmem:[%s1 + $0x868] sm:$0xff]
  %v286 = vld [vmem:[%s1 + $0x870] sm:$0xff]
  %v287 = vld [vmem:[%s1 + $0x878] sm:$0xff]
  %v288 = vld [vmem:[%s1 + $0x880] sm:$0xff]
  %v289 = vld [vmem:[%s1 + $0x888] sm:$0xff]
  %v290 = vld [vmem:[%s1 + $0x890] sm:$0xff]
  %v291 = vld [vmem:[%s1 + $0x898] sm:$0xff]
  %v292 = vld [vmem:[%s1 + $0x8a0] sm:$0xff]
  %v293 = vld [vmem:[%s1 + $0x8a8] sm:$0xff]
  %v294 = vld [vmem:[%s1 + $0x8b0] sm:$0xff]
  %v295 = vld [vmem:[%s1 + $0x8b8] sm:$0xff]
  %v296 = vld [vmem:[%s1 + $0x8c0] sm:$0xff]
  %v297 = vld [vmem:[%s1 + $0x8c8] sm:$0xff]
  %v298 = vld [vmem:[%s1 + $0x8d0] sm:$0xff]
  %v299 = vld [vmem:[%s1 + $0x8d8] sm:$0xff]
  %v300 = vld [vmem:[%s1 + $0x8e0] sm:$0xff]
  %v301 = vld [vmem:[%s1 + $0x8e8] sm:$0xff]
  %v302 = vld [vmem:[%s1 + $0x8f0] sm:$0xff]
  %v303 = vld [vmem:[%s1 + $0x8f8] sm:$0xff]
  %v304 = vld [vmem:[%s1 + $0x900] sm:$0xff]
  %v305 = vld [vmem:[%s1 + $0x908] sm:$0xff]
  %v306 = vld [vmem:[%s1 + $0x910] sm:$0xff]
  %v307 = vld [vmem:[%s1 + $0x918] sm:$0xff]
  %v308 = vld [vmem:[%s1 + $0x920] sm:$0xff]
  %v309 = vld [vmem:[%s1 + $0x928] sm:$0xff]
  %v310 = vld [vmem:[%s1 + $0x930] sm:$0xff]
  %v311 = vld [vmem:[%s1 + $0x938] sm:$0xff]
  %v312 = vld [vmem:[%s1 + $0x940] sm:$0xff]
  %v313 = vld [vmem:[%s1 + $0x948] sm:$0xff]
  %v314 = vld [vmem:[%s1 + $0x950] sm:$0xff]
  %v315 = vld [vmem:[%s1 + $0x958] sm:$0xff]
  %v316 = vld [vmem:[%s1 + $0x960] sm:$0xff]
  %v317 = vld [vmem:[%s1 + $0x968] sm:$0xff]
  %v318 = vld [vmem:[%s1 + $0x970] sm:$0xff]
  %v319 = vld [vmem:[%s1 + $0x978] sm:$0xff]
  %v320 = vld [vmem:[%s1 + $0x980] sm:$0xff]
  %v321 = vld [vmem:[%s1 + $0x988] sm:$0xff]
  %v322 = vld [vmem:[%s1 + $0x990] sm:$0xff]
  %v323 = vld [vmem:[%s1 + $0x998] sm:$0xff]
  %v324 = vld [vmem:[%s1 + $0x9a0] sm:$0xff]
  %v325 = vld [vmem:[%s1 + $0x9a8] sm:$0xff]
  %v326 = vld [vmem:[%s1 + $0x9b0] sm:$0xff]
  %v327 = vld [vmem:[%s1 + $0x9b8] sm:$0xff]
  %v328 = vld [vmem:[%s1 + $0x9c0] sm:$0xff]
  %v329 = vld [vmem:[%s1 + $0x9c8] sm:$0xff]
  %v330 = vld [vmem:[%s1 + $0x9d0] sm:$0xff]
  %v331 = vld [vmem:[%s1 + $0x9d8] sm:$0xff]
  %v332 = vld [vmem:[%s1 + $0x9e0] sm:$0xff]
  %v333 = vld [vmem:[%s1 + $0x9e8] sm:$0xff]
  %v334 = vld [vmem:[%s1 + $0x9f0] sm:$0xff]
  %v335 = vld [vmem:[%s1 + $0x9f8] sm:$0xff]
  %v336 = vld [vmem:[%s1 + $0xa00] sm:$0xff]
  %v337 = vld [vmem:[%s1 + $0xa08] sm:$0xff]
  %v338 = vld [vmem:[%s1 + $0xa10] sm:$0xff]
  %v339 = vld [vmem:[%s1 + $0xa18] sm:$0xff]
  %v340 = vld [vmem:[%s1 + $0xa20] sm:$0xff]
  %v341 = vld [vmem:[%s1 + $0xa28] sm:$0xff]
  %v342 = vld [vmem:[%s1 + $0xa30] sm:$0xff]
  %v343 = vld [vmem:[%s1 + $0xa38] sm:$0xff]
  %v344 = vld [vmem:[%s1 + $0xa40] sm:$0xff]
  %v345 = vld [vmem:[%s1 + $0xa48] sm:$0xff]
  %v346 = vld [vmem:[%s1 + $0xa50] sm:$0xff]
  %v347 = vld [vmem:[%s1 + $0xa58] sm:$0xff]
  %v348 = vld [vmem:[%s1 + $0xa60] sm:$0xff]
  %v349 = vld [vmem:[%s1 + $0xa68] sm:$0xff]
  %v350 = vld [vmem:[%s1 + $0xa70] sm:$0xff]
  %v351 = vld [vmem:[%s1 + $0xa78] sm:$0xff]
  %v352 = vld [vmem:[%s1 + $0xa80] sm:$0xff]
  %v353 = vld [vmem:[%s1 + $0xa88] sm:$0xff]
  %v354 = vld [vmem:[%s1 + $0xa90] sm:$0xff]
  %v355 = vld [vmem:[%s1 + $0xa98] sm:$0xff]
  %v356 = vld [vmem:[%s1 + $0xaa0] sm:$0xff]
  %v357 = vld [vmem:[%s1 + $0xaa8] sm:$0xff]
  %v358 = vld [vmem:[%s1 + $0xab0] sm:$0xff]
  %v359 = vld [vmem:[%s1 + $0xab8] sm:$0xff]
  %v360 = vld [vmem:[%s1 + $0xac0] sm:$0xff]
  %v361 = vld [vmem:[%s1 + $0xac8] sm:$0xff]
  %v362 = vld [vmem:[%s1 + $0xad0] sm:$0xff]
  %v363 = vld [vmem:[%s1 + $0xad8] sm:$0xff]
  %v364 = vld [vmem:[%s1 + $0xae0] sm:$0xff]
  %v365 = vld [vmem:[%s1 + $0xae8] sm:$0xff]
  %v366 = vld [vmem:[%s1 + $0xaf0] sm:$0xff]
  %v367 = vld [vmem:[%s1 + $0xaf8] sm:$0xff]
  %v368 = vld [vmem:[%s1 + $0xb00] sm:$0xff]
  %v369 = vld [vmem:[%s1 + $0xb08] sm:$0xff]
  %v370 = vld [vmem:[%s1 + $0xb10] sm:$0xff]
  %v371 = vld [vmem:[%s1 + $0xb18] sm:$0xff]
  %v372 = vld [vmem:[%s1 + $0xb20] sm:$0xff]
  %v373 = vld [vmem:[%s1 + $0xb28] sm:$0xff]
  %v374 = vld [vmem:[%s1 + $0xb30] sm:$0xff]
  %v375 = vld [vmem:[%s1 + $0xb38] sm:$0xff]
  %v376 = vld [vmem:[%s1 + $0xb40] sm:$0xff]
  %v377 = vld [vmem:[%s1 + $0xb48] sm:$0xff]
  %v378 = vld [vmem:[%s1 + $0xb50] sm:$0xff]
  %v379 = vld [vmem:[%s1 + $0xb58] sm:$0xff]
  %v380 = vld [vmem:[%s1 + $0xb60] sm:$0xff]
  %v381 = vld [vmem:[%s1 + $0xb68] sm:$0xff]
  %v382 = vld [vmem:[%s1 + $0xb70] sm:$0xff]
  %v383 = vld [vmem:[%s1 + $0xb78] sm:$0xff]
  %v384 = vld [vmem:[%s1 + $0xb80] sm:$0xff]
  %v385 = vld [vmem:[%s1 + $0xb88] sm:$0xff]
  %v386 = vld [vmem:[%s1 + $0xb90] sm:$0xff]
  %v387 = vld [vmem:[%s1 + $0xb98] sm:$0xff]
  %v388 = vld [vmem:[%s1 + $0xba0] sm:$0xff]
  %v389 = vld [vmem:[%s1 + $0xba8] sm:$0xff]
  %v390 = vld [vmem:[%s1 + $0xbb0] sm:$0xff]
  %v391 = vld [vmem:[%s1 + $0xbb8] sm:$0xff]
  %v392 = vld [vmem:[%s1 + $0xbc0] sm:$0xff]
  %v393 = vld [vmem:[%s1 + $0xbc8] sm:$0xff]
  %v394 = vld [vmem:[%s1 + $0xbd0] sm:$0xff]
  %v395 = vld [vmem:[%s1 + $0xbd8] sm:$0xff]
  %v396 = vld [vmem:[%s1 + $0xbe0] sm:$0xff]
  %v397 = vld [vmem:[%s1 + $0xbe8] sm:$0xff]
  %v398 = vld [vmem:[%s1 + $0xbf0] sm:$0xff]
  %v399 = vld [vmem:[%s1 + $0xbf8] sm:$0xff]
  %v400 = vld [vmem:[%s1 + $0xc00] sm:$0xff]
  %v401 = vld [vmem:[%s1 + $0xc08] sm:$0xff]
  %v402 = vld [vmem:[%s1 + $0xc10] sm:$0xff]
  %v403 = vld [vmem:[%s1 + $0xc18] sm:$0xff]
  %v404 = vld [vmem:[%s1 + $0xc20] sm:$0xff]
  %v405 = vld [vmem:[%s1 + $0xc28] sm:$0xff]
  %v406 = vld [vmem:[%s1 + $0xc30] sm:$0xff]
  %v407 = vld [vmem:[%s1 + $0xc38] sm:$0xff]
  %v408 = vld [vmem:[%s1 + $0xc40] sm:$0xff]
  %v409 = vld [vmem:[%s1 + $0xc48] sm:$0xff]
  %v410 = vld [vmem:[%s1 + $0xc50] sm:$0xff]
  %v411 = vld [vmem:[%s1 + $0xc58] sm:$0xff]
  %v412 = vld [vmem:[%s1 + $0xc60] sm:$0xff]
  %v413 = vld [vmem:[%s1 + $0xc68] sm:$0xff]
  %v414 = vld [vmem:[%s1 + $0xc70] sm:$0xff]
  %v415 = vld [vmem:[%s1 + $0xc78] sm:$0xff]
  %v416 = vld [vmem:[%s1 + $0xc80] sm:$0xff]
  %v417 = vld [vmem:[%s1 + $0xc88] sm:$0xff]
  %v418 = vld [vmem:[%s1 + $0xc90] sm:$0xff]
  %v419 = vld [vmem:[%s1 + $0xc98] sm:$0xff]
  %v420 = vld [vmem:[%s1 + $0xca0] sm:$0xff]
  %v421 = vld [vmem:[%s1 + $0xca8] sm:$0xff]
  %v422 = vld [vmem:[%s1 + $0xcb0] sm:$0xff]
  %v423 = vld [vmem:[%s1 + $0xcb8] sm:$0xff]
  %v424 = vld [vmem:[%s1 + $0xcc0] sm:$0xff]
  %v425 = vld [vmem:[%s1 + $0xcc8] sm:$0xff]
  %v426 = vld [vmem:[%s1 + $0xcd0] sm:$0xff]
  %v427 = vld [vmem:[%s1 + $0xcd8] sm:$0xff]
  %v428 = vld [vmem:[%s1 + $0xce0] sm:$0xff]
  %v429 = vld [vmem:[%s1 + $0xce8] sm:$0xff]
  %v430 = vld [vmem:[%s1 + $0xcf0] sm:$0xff]
  %v431 = vld [vmem:[%s1 + $0xcf8] sm:$0xff]
  %v432 = vld [vmem:[%s1 + $0xd00] sm:$0xff]
  %v433 = vld [vmem:[%s1 + $0xd08] sm:$0xff]
  %v434 = vld [vmem:[%s1 + $0xd10] sm:$0xff]
  %v435 = vld [vmem:[%s1 + $0xd18] sm:$0xff]
  %v436 = vld [vmem:[%s1 + $0xd20] sm:$0xff]
  %v437 = vld [vmem:[%s1 + $0xd28] sm:$0xff]
  %v438 = vld [vmem:[%s1 + $0xd30] sm:$0xff]
  %v439 = vld [vmem:[%s1 + $0xd38] sm:$0xff]
  %v440 = vld [vmem:[%s1 + $0xd40] sm:$0xff]
  %v441 = vld [vmem:[%s1 + $0xd48] sm:$0xff]
  %v442 = vld [vmem:[%s1 + $0xd50] sm:$0xff]
  %v443 = vld [vmem:[%s1 + $0xd58] sm:$0xff]
  %v444 = vld [vmem:[%s1 + $0xd60] sm:$0xff]
  %v445 = vld [vmem:[%s1 + $0xd68] sm:$0xff]
  %v446 = vld [vmem:[%s1 + $0xd70] sm:$0xff]
  %v447 = vld [vmem:[%s1 + $0xd78] sm:$0xff]
  %v448 = vld [vmem:[%s1 + $0xd80] sm:$0xff]
  %v449 = vld [vmem:[%s1 + $0xd88] sm:$0xff]
  %v450 = vld [vmem:[%s1 + $0xd90] sm:$0xff]
  %v451 = vld [vmem:[%s1 + $0xd98] sm:$0xff]
  %v452 = vld [vmem:[%s1 + $0xda0] sm:$0xff]
  %v453 = vld [vmem:[%s1 + $0xda8] sm:$0xff]
  %v454 = vld [vmem:[%s1 + $0xdb0] sm:$0xff]
  %v455 = vld [vmem:[%s1 + $0xdb8] sm:$0xff]
  %v456 = vld [vmem:[%s1 + $0xdc0] sm:$0xff]
  %v457 = vld [vmem:[%s1 + $0xdc8] sm:$0xff]
  %v458 = vld [vmem:[%s1 + $0xdd0] sm:$0xff]
  %v459 = vld [vmem:[%s1 + $0xdd8] sm:$0xff]
  %v460 = vld [vmem:[%s1 + $0xde0] sm:$0xff]
  %v461 = vld [vmem:[%s1 + $0xde8] sm:$0xff]
  %v462 = vld [vmem:[%s1 + $0xdf0] sm:$0xff]
  %v463 = vld [vmem:[%s1 + $0xdf8] sm:$0xff]
  %v464 = vld [vmem:[%s1 + $0xe00] sm:$0xff]
  %v465 = vld [vmem:[%s1 + $0xe08] sm:$0xff]
  %v466 = vld [vmem:[%s1 + $0xe10] sm:$0xff]
  %v467 = vld [vmem:[%s1 + $0xe18] sm:$0xff]
  %v468 = vld [vmem:[%s1 + $0xe20] sm:$0xff]
  %v469 = vld [vmem:[%s1 + $0xe28] sm:$0xff]
  %v470 = vld [vmem:[%s1 + $0xe30] sm:$0xff]
  %v471 = vld [vmem:[%s1 + $0xe38] sm:$0xff]
  %v472 = vld [vmem:[%s1 + $0xe40] sm:$0xff]
  %v473 = vld [vmem:[%s1 + $0xe48] sm:$0xff]
  %v474 = vld [vmem:[%s1 + $0xe50] sm:$0xff]
  %v475 = vld [vmem:[%s1 + $0xe58] sm:$0xff]
  %v476 = vld [vmem:[%s1 + $0xe60] sm:$0xff]
  %v477 = vld [vmem:[%s1 + $0xe68] sm:$0xff]
  %v478 = vld [vmem:[%s1 + $0xe70] sm:$0xff]
  %v479 = vld [vmem:[%s1 + $0xe78] sm:$0xff]
  %v480 = vld [vmem:[%s1 + $0xe80] sm:$0xff]
  %v481 = vld [vmem:[%s1 + $0xe88] sm:$0xff]
  %v482 = vld [vmem:[%s1 + $0xe90] sm:$0xff]
  %v483 = vld [vmem:[%s1 + $0xe98] sm:$0xff]
  %v484 = vld [vmem:[%s1 + $0xea0] sm:$0xff]
  %v485 = vld [vmem:[%s1 + $0xea8] sm:$0xff]
  %v486 = vld [vmem:[%s1 + $0xeb0] sm:$0xff]
  %v487 = vld [vmem:[%s1 + $0xeb8] sm:$0xff]
  %v488 = vld [vmem:[%s1 + $0xec0] sm:$0xff]
  %v489 = vld [vmem:[%s1 + $0xec8] sm:$0xff]
  %v490 = vld [vmem:[%s1 + $0xed0] sm:$0xff]
  %v491 = vld [vmem:[%s1 + $0xed8] sm:$0xff]
  %v492 = vld [vmem:[%s1 + $0xee0] sm:$0xff]
  %v493 = vld [vmem:[%s1 + $0xee8] sm:$0xff]
  %v494 = vld [vmem:[%s1 + $0xef0] sm:$0xff]
  %v495 = vld [vmem:[%s1 + $0xef8] sm:$0xff]
  %v496 = vld [vmem:[%s1 + $0xf00] sm:$0xff]
  %v497 = vld [vmem:[%s1 + $0xf08] sm:$0xff]
  %v498 = vld [vmem:[%s1 + $0xf10] sm:$0xff]
  %v499 = vld [vmem:[%s1 + $0xf18] sm:$0xff]
  %v500 = vld [vmem:[%s1 + $0xf20] sm:$0xff]
  %v501 = vld [vmem:[%s1 + $0xf28] sm:$0xff]
  %v502 = vld [vmem:[%s1 + $0xf30] sm:$0xff]
  %v503 = vld [vmem:[%s1 + $0xf38] sm:$0xff]
  %v504 = vld [vmem:[%s1 + $0xf40] sm:$0xff]
  %v505 = vld [vmem:[%s1 + $0xf48] sm:$0xff]
  %v506 = vld [vmem:[%s1 + $0xf50] sm:$0xff]
  %v507 = vld [vmem:[%s1 + $0xf58] sm:$0xff]
  %v508 = vld [vmem:[%s1 + $0xf60] sm:$0xff]
  %v509 = vld [vmem:[%s1 + $0xf68] sm:$0xff]
  %v510 = vld [vmem:[%s1 + $0xf70] sm:$0xff]
  %v511 = vld [vmem:[%s1 + $0xf78] sm:$0xff]
  %v512 = vld [vmem:[%s1 + $0xf80] sm:$0xff]
  %v513 = vld [vmem:[%s1 + $0xf88] sm:$0xff]
  %v514 = vld [vmem:[%s1 + $0xf90] sm:$0xff]
  %v515 = vld [vmem:[%s1 + $0xf98] sm:$0xff]
  %v516 = vld [vmem:[%s1 + $0xfa0] sm:$0xff]
  %v517 = vld [vmem:[%s1 + $0xfa8] sm:$0xff]
  %v518 = vld [vmem:[%s1 + $0xfb0] sm:$0xff]
  %v519 = vld [vmem:[%s1 + $0xfb8] sm:$0xff]
  %v520 = vld [vmem:[%s1 + $0xfc0] sm:$0xff]
  %v521 = vld [vmem:[%s1 + $0xfc8] sm:$0xff]
  %v522 = vld [vmem:[%s1 + $0xfd0] sm:$0xff]
  %v523 = vld [vmem:[%s1 + $0xfd8] sm:$0xff]
  %v524 = vld [vmem:[%s1 + $0xfe0] sm:$0xff]
  %v525 = vld [vmem:[%s1 + $0xfe8] sm:$0xff]
  %v526 = vld [vmem:[%s1 + $0xff0] sm:$0xff]
  %v527 = vld [vmem:[%s1 + $0xff8] sm:$0xff]
  %v528 = vld [vmem:[%s2] sm:$0xf]
  %v530 = vperm.slane %v528, 0
  %v531 = vperm.slane %v528, 1
  %v532 = vperm.slane %v528, 2
  %v533 = vperm.slane %v528, 3
  %540 = vst [vmem:[#allocation1] ss:$4 sm:$0xff] %v14
  %s541 = scalar_lea.vmem [#allocation1], 32
  %542 = vst [vmem:[%s541] ss:$4 sm:$0xff] %v15
  %v543 = vld.sshfl [vmem:[#allocation1] sm:$0xff pattern:$0x73625140]
  %v544 = vld.sshfl [vmem:[#allocation1 + $0x8] sm:$0xff pattern:$0x73625140]
  %v545 = vld.sshfl [vmem:[#allocation1 + $0x10] sm:$0xff pattern:$0x73625140]
  %v546 = vld.sshfl [vmem:[#allocation1 + $0x18] sm:$0xff pattern:$0x73625140]
  %v547 = vld.sshfl [vmem:[#allocation1 + $0x20] sm:$0xff pattern:$0x73625140]
  %v548 = vld.sshfl [vmem:[#allocation1 + $0x28] sm:$0xff pattern:$0x73625140]
  %v549 = vld.sshfl [vmem:[#allocation1 + $0x30] sm:$0xff pattern:$0x73625140]
  %v550 = vld.sshfl [vmem:[#allocation1 + $0x38] sm:$0xff pattern:$0x73625140]
  %559 = vmatpush.msra.mxu0 %v76
  %560 = vmatpush.msra.mxu0 %v72
  %561 = vmatpush.msra.mxu0 %v68
  %562 = vmatpush.msra.mxu0 %v64
  %563 = vmatpush.msra.mxu0 %v60
  %564 = vmatpush.msra.mxu0 %v56
  %565 = vmatpush.msra.mxu0 %v52
  %566 = vmatpush.msra.mxu0 %v48
  %567 = vmatpush.msra.mxu0 %v44
  %568 = vmatpush.msra.mxu0 %v40
  %569 = vmatpush.msra.mxu0 %v36
  %570 = vmatpush.msra.mxu0 %v32
  %571 = vmatpush.msra.mxu0 %v28
  %572 = vmatpush.msra.mxu0 %v24
  %573 = vmatpush.msra.mxu0 %v20
  %574 = vmatpush.msra.mxu0 %v16
  %575 = vmatmul.f32.gmra.mxu0 %v543
  %v576 = vpop.f32.mrf.mxu0
  %v577 = vadd.f32 %v530, %v576
  %578 = vdwg.mxu0
  %579 = vmatpush.msra.mxu0 %v140
  %580 = vmatpush.msra.mxu0 %v136
  %581 = vmatpush.msra.mxu0 %v132
  %582 = vmatpush.msra.mxu0 %v128
  %583 = vmatpush.msra.mxu0 %v124
  %584 = vmatpush.msra.mxu0 %v120
  %585 = vmatpush.msra.mxu0 %v116
  %586 = vmatpush.msra.mxu0 %v112
  %587 = vmatpush.msra.mxu0 %v108
  %588 = vmatpush.msra.mxu0 %v104
  %589 = vmatpush.msra.mxu0 %v100
  %590 = vmatpush.msra.mxu0 %v96
  %591 = vmatpush.msra.mxu0 %v92
  %592 = vmatpush.msra.mxu0 %v88
  %593 = vmatpush.msra.mxu0 %v84
  %594 = vmatpush.msra.mxu0 %v80
  %595 = vmatmul.f32.gmra.mxu0 %v544
  %v596 = vpop.f32.mrf.mxu0
  %v597 = vadd.f32 %v577, %v596
  %598 = vdwg.mxu0
  %599 = vmatpush.msra.mxu0 %v204
  %600 = vmatpush.msra.mxu0 %v200
  %601 = vmatpush.msra.mxu0 %v196
  %602 = vmatpush.msra.mxu0 %v192
  %603 = vmatpush.msra.mxu0 %v188
  %604 = vmatpush.msra.mxu0 %v184
  %605 = vmatpush.msra.mxu0 %v180
  %606 = vmatpush.msra.mxu0 %v176
  %607 = vmatpush.msra.mxu0 %v172
  %608 = vmatpush.msra.mxu0 %v168
  %609 = vmatpush.msra.mxu0 %v164
  %610 = vmatpush.msra.mxu0 %v160
  %611 = vmatpush.msra.mxu0 %v156
  %612 = vmatpush.msra.mxu0 %v152
  %613 = vmatpush.msra.mxu0 %v148
  %614 = vmatpush.msra.mxu0 %v144
  %615 = vmatmul.f32.gmra.mxu0 %v545
  %v616 = vpop.f32.mrf.mxu0
  %v617 = vadd.f32 %v597, %v616
  %618 = vdwg.mxu0
  %619 = vmatpush.msra.mxu0 %v268
  %620 = vmatpush.msra.mxu0 %v264
  %621 = vmatpush.msra.mxu0 %v260
  %622 = vmatpush.msra.mxu0 %v256
  %623 = vmatpush.msra.mxu0 %v252
  %624 = vmatpush.msra.mxu0 %v248
  %625 = vmatpush.msra.mxu0 %v244
  %626 = vmatpush.msra.mxu0 %v240
  %627 = vmatpush.msra.mxu0 %v236
  %628 = vmatpush.msra.mxu0 %v232
  %629 = vmatpush.msra.mxu0 %v228
  %630 = vmatpush.msra.mxu0 %v224
  %631 = vmatpush.msra.mxu0 %v220
  %632 = vmatpush.msra.mxu0 %v216
  %633 = vmatpush.msra.mxu0 %v212
  %634 = vmatpush.msra.mxu0 %v208
  %635 = vmatmul.f32.gmra.mxu0 %v546
  %v636 = vpop.f32.mrf.mxu0
  %v637 = vadd.f32 %v617, %v636
  %638 = vdwg.mxu0
  %639 = vmatpush.msra.mxu0 %v332
  %640 = vmatpush.msra.mxu0 %v328
  %641 = vmatpush.msra.mxu0 %v324
  %642 = vmatpush.msra.mxu0 %v320
  %643 = vmatpush.msra.mxu0 %v316
  %644 = vmatpush.msra.mxu0 %v312
  %645 = vmatpush.msra.mxu0 %v308
  %646 = vmatpush.msra.mxu0 %v304
  %647 = vmatpush.msra.mxu0 %v300
  %648 = vmatpush.msra.mxu0 %v296
  %649 = vmatpush.msra.mxu0 %v292
  %650 = vmatpush.msra.mxu0 %v288
  %651 = vmatpush.msra.mxu0 %v284
  %652 = vmatpush.msra.mxu0 %v280
  %653 = vmatpush.msra.mxu0 %v276
  %654 = vmatpush.msra.mxu0 %v272
  %655 = vmatmul.f32.gmra.mxu0 %v547
  %v656 = vpop.f32.mrf.mxu0
  %v657 = vadd.f32 %v637, %v656
  %658 = vdwg.mxu0
  %659 = vmatpush.msra.mxu0 %v396
  %660 = vmatpush.msra.mxu0 %v392
  %661 = vmatpush.msra.mxu0 %v388
  %662 = vmatpush.msra.mxu0 %v384
  %663 = vmatpush.msra.mxu0 %v380
  %664 = vmatpush.msra.mxu0 %v376
  %665 = vmatpush.msra.mxu0 %v372
  %666 = vmatpush.msra.mxu0 %v368
  %667 = vmatpush.msra.mxu0 %v364
  %668 = vmatpush.msra.mxu0 %v360
  %669 = vmatpush.msra.mxu0 %v356
  %670 = vmatpush.msra.mxu0 %v352
  %671 = vmatpush.msra.mxu0 %v348
  %672 = vmatpush.msra.mxu0 %v344
  %673 = vmatpush.msra.mxu0 %v340
  %674 = vmatpush.msra.mxu0 %v336
  %675 = vmatmul.f32.gmra.mxu0 %v548
  %v676 = vpop.f32.mrf.mxu0
  %v677 = vadd.f32 %v657, %v676
  %678 = vdwg.mxu0
  %679 = vmatpush.msra.mxu0 %v460
  %680 = vmatpush.msra.mxu0 %v456
  %681 = vmatpush.msra.mxu0 %v452
  %682 = vmatpush.msra.mxu0 %v448
  %683 = vmatpush.msra.mxu0 %v444
  %684 = vmatpush.msra.mxu0 %v440
  %685 = vmatpush.msra.mxu0 %v436
  %686 = vmatpush.msra.mxu0 %v432
  %687 = vmatpush.msra.mxu0 %v428
  %688 = vmatpush.msra.mxu0 %v424
  %689 = vmatpush.msra.mxu0 %v420
  %690 = vmatpush.msra.mxu0 %v416
  %691 = vmatpush.msra.mxu0 %v412
  %692 = vmatpush.msra.mxu0 %v408
  %693 = vmatpush.msra.mxu0 %v404
  %694 = vmatpush.msra.mxu0 %v400
  %695 = vmatmul.f32.gmra.mxu0 %v549
  %v696 = vpop.f32.mrf.mxu0
  %v697 = vadd.f32 %v677, %v696
  %698 = vdwg.mxu0
  %699 = vmatpush.msra.mxu0 %v524
  %700 = vmatpush.msra.mxu0 %v520
  %701 = vmatpush.msra.mxu0 %v516
  %702 = vmatpush.msra.mxu0 %v512
  %703 = vmatpush.msra.mxu0 %v508
  %704 = vmatpush.msra.mxu0 %v504
  %705 = vmatpush.msra.mxu0 %v500
  %706 = vmatpush.msra.mxu0 %v496
  %707 = vmatpush.msra.mxu0 %v492
  %708 = vmatpush.msra.mxu0 %v488
  %709 = vmatpush.msra.mxu0 %v484
  %710 = vmatpush.msra.mxu0 %v480
  %711 = vmatpush.msra.mxu0 %v476
  %712 = vmatpush.msra.mxu0 %v472
  %713 = vmatpush.msra.mxu0 %v468
  %714 = vmatpush.msra.mxu0 %v464
  %715 = vmatmul.f32.gmra.mxu0 %v550
  %v716 = vpop.f32.mrf.mxu0
  %v717 = vadd.f32 %v697, %v716
  %718 = vdwg.mxu0
  %719 = vmatpush.msra.mxu0 %v77
  %720 = vmatpush.msra.mxu0 %v73
  %721 = vmatpush.msra.mxu0 %v69
  %722 = vmatpush.msra.mxu0 %v65
  %723 = vmatpush.msra.mxu0 %v61
  %724 = vmatpush.msra.mxu0 %v57
  %725 = vmatpush.msra.mxu0 %v53
  %726 = vmatpush.msra.mxu0 %v49
  %727 = vmatpush.msra.mxu0 %v45
  %728 = vmatpush.msra.mxu0 %v41
  %729 = vmatpush.msra.mxu0 %v37
  %730 = vmatpush.msra.mxu0 %v33
  %731 = vmatpush.msra.mxu0 %v29
  %732 = vmatpush.msra.mxu0 %v25
  %733 = vmatpush.msra.mxu0 %v21
  %734 = vmatpush.msra.mxu0 %v17
  %735 = vmatmul.f32.gmra.mxu0 %v543
  %v736 = vpop.f32.mrf.mxu0
  %v737 = vadd.f32 %v531, %v736
  %738 = vdwg.mxu0
  %739 = vmatpush.msra.mxu0 %v141
  %740 = vmatpush.msra.mxu0 %v137
  %741 = vmatpush.msra.mxu0 %v133
  %742 = vmatpush.msra.mxu0 %v129
  %743 = vmatpush.msra.mxu0 %v125
  %744 = vmatpush.msra.mxu0 %v121
  %745 = vmatpush.msra.mxu0 %v117
  %746 = vmatpush.msra.mxu0 %v113
  %747 = vmatpush.msra.mxu0 %v109
  %748 = vmatpush.msra.mxu0 %v105
  %749 = vmatpush.msra.mxu0 %v101
  %750 = vmatpush.msra.mxu0 %v97
  %751 = vmatpush.msra.mxu0 %v93
  %752 = vmatpush.msra.mxu0 %v89
  %753 = vmatpush.msra.mxu0 %v85
  %754 = vmatpush.msra.mxu0 %v81
  %755 = vmatmul.f32.gmra.mxu0 %v544
  %v756 = vpop.f32.mrf.mxu0
  %v757 = vadd.f32 %v737, %v756
  %758 = vdwg.mxu0
  %759 = vmatpush.msra.mxu0 %v205
  %760 = vmatpush.msra.mxu0 %v201
  %761 = vmatpush.msra.mxu0 %v197
  %762 = vmatpush.msra.mxu0 %v193
  %763 = vmatpush.msra.mxu0 %v189
  %764 = vmatpush.msra.mxu0 %v185
  %765 = vmatpush.msra.mxu0 %v181
  %766 = vmatpush.msra.mxu0 %v177
  %767 = vmatpush.msra.mxu0 %v173
  %768 = vmatpush.msra.mxu0 %v169
  %769 = vmatpush.msra.mxu0 %v165
  %770 = vmatpush.msra.mxu0 %v161
  %771 = vmatpush.msra.mxu0 %v157
  %772 = vmatpush.msra.mxu0 %v153
  %773 = vmatpush.msra.mxu0 %v149
  %774 = vmatpush.msra.mxu0 %v145
  %775 = vmatmul.f32.gmra.mxu0 %v545
  %v776 = vpop.f32.mrf.mxu0
  %v777 = vadd.f32 %v757, %v776
  %778 = vdwg.mxu0
  %779 = vmatpush.msra.mxu0 %v269
  %780 = vmatpush.msra.mxu0 %v265
  %781 = vmatpush.msra.mxu0 %v261
  %782 = vmatpush.msra.mxu0 %v257
  %783 = vmatpush.msra.mxu0 %v253
  %784 = vmatpush.msra.mxu0 %v249
  %785 = vmatpush.msra.mxu0 %v245
  %786 = vmatpush.msra.mxu0 %v241
  %787 = vmatpush.msra.mxu0 %v237
  %788 = vmatpush.msra.mxu0 %v233
  %789 = vmatpush.msra.mxu0 %v229
  %790 = vmatpush.msra.mxu0 %v225
  %791 = vmatpush.msra.mxu0 %v221
  %792 = vmatpush.msra.mxu0 %v217
  %793 = vmatpush.msra.mxu0 %v213
  %794 = vmatpush.msra.mxu0 %v209
  %795 = vmatmul.f32.gmra.mxu0 %v546
  %v796 = vpop.f32.mrf.mxu0
  %v797 = vadd.f32 %v777, %v796
  %798 = vdwg.mxu0
  %799 = vmatpush.msra.mxu0 %v333
  %800 = vmatpush.msra.mxu0 %v329
  %801 = vmatpush.msra.mxu0 %v325
  %802 = vmatpush.msra.mxu0 %v321
  %803 = vmatpush.msra.mxu0 %v317
  %804 = vmatpush.msra.mxu0 %v313
  %805 = vmatpush.msra.mxu0 %v309
  %806 = vmatpush.msra.mxu0 %v305
  %807 = vmatpush.msra.mxu0 %v301
  %808 = vmatpush.msra.mxu0 %v297
  %809 = vmatpush.msra.mxu0 %v293
  %810 = vmatpush.msra.mxu0 %v289
  %811 = vmatpush.msra.mxu0 %v285
  %812 = vmatpush.msra.mxu0 %v281
  %813 = vmatpush.msra.mxu0 %v277
  %814 = vmatpush.msra.mxu0 %v273
  %815 = vmatmul.f32.gmra.mxu0 %v547
  %v816 = vpop.f32.mrf.mxu0
  %v817 = vadd.f32 %v797, %v816
  %818 = vdwg.mxu0
  %819 = vmatpush.msra.mxu0 %v397
  %820 = vmatpush.msra.mxu0 %v393
  %821 = vmatpush.msra.mxu0 %v389
  %822 = vmatpush.msra.mxu0 %v385
  %823 = vmatpush.msra.mxu0 %v381
  %824 = vmatpush.msra.mxu0 %v377
  %825 = vmatpush.msra.mxu0 %v373
  %826 = vmatpush.msra.mxu0 %v369
  %827 = vmatpush.msra.mxu0 %v365
  %828 = vmatpush.msra.mxu0 %v361
  %829 = vmatpush.msra.mxu0 %v357
  %830 = vmatpush.msra.mxu0 %v353
  %831 = vmatpush.msra.mxu0 %v349
  %832 = vmatpush.msra.mxu0 %v345
  %833 = vmatpush.msra.mxu0 %v341
  %834 = vmatpush.msra.mxu0 %v337
  %835 = vmatmul.f32.gmra.mxu0 %v548
  %v836 = vpop.f32.mrf.mxu0
  %v837 = vadd.f32 %v817, %v836
  %838 = vdwg.mxu0
  %839 = vmatpush.msra.mxu0 %v461
  %840 = vmatpush.msra.mxu0 %v457
  %841 = vmatpush.msra.mxu0 %v453
  %842 = vmatpush.msra.mxu0 %v449
  %843 = vmatpush.msra.mxu0 %v445
  %844 = vmatpush.msra.mxu0 %v441
  %845 = vmatpush.msra.mxu0 %v437
  %846 = vmatpush.msra.mxu0 %v433
  %847 = vmatpush.msra.mxu0 %v429
  %848 = vmatpush.msra.mxu0 %v425
  %849 = vmatpush.msra.mxu0 %v421
  %850 = vmatpush.msra.mxu0 %v417
  %851 = vmatpush.msra.mxu0 %v413
  %852 = vmatpush.msra.mxu0 %v409
  %853 = vmatpush.msra.mxu0 %v405
  %854 = vmatpush.msra.mxu0 %v401
  %855 = vmatmul.f32.gmra.mxu0 %v549
  %v856 = vpop.f32.mrf.mxu0
  %v857 = vadd.f32 %v837, %v856
  %858 = vdwg.mxu0
  %859 = vmatpush.msra.mxu0 %v525
  %860 = vmatpush.msra.mxu0 %v521
  %861 = vmatpush.msra.mxu0 %v517
  %862 = vmatpush.msra.mxu0 %v513
  %863 = vmatpush.msra.mxu0 %v509
  %864 = vmatpush.msra.mxu0 %v505
  %865 = vmatpush.msra.mxu0 %v501
  %866 = vmatpush.msra.mxu0 %v497
  %867 = vmatpush.msra.mxu0 %v493
  %868 = vmatpush.msra.mxu0 %v489
  %869 = vmatpush.msra.mxu0 %v485
  %870 = vmatpush.msra.mxu0 %v481
  %871 = vmatpush.msra.mxu0 %v477
  %872 = vmatpush.msra.mxu0 %v473
  %873 = vmatpush.msra.mxu0 %v469
  %874 = vmatpush.msra.mxu0 %v465
  %875 = vmatmul.f32.gmra.mxu0 %v550
  %v876 = vpop.f32.mrf.mxu0
  %v877 = vadd.f32 %v857, %v876
  %878 = vdwg.mxu0
  %879 = vmatpush.msra.mxu0 %v78
  %880 = vmatpush.msra.mxu0 %v74
  %881 = vmatpush.msra.mxu0 %v70
  %882 = vmatpush.msra.mxu0 %v66
  %883 = vmatpush.msra.mxu0 %v62
  %884 = vmatpush.msra.mxu0 %v58
  %885 = vmatpush.msra.mxu0 %v54
  %886 = vmatpush.msra.mxu0 %v50
  %887 = vmatpush.msra.mxu0 %v46
  %888 = vmatpush.msra.mxu0 %v42
  %889 = vmatpush.msra.mxu0 %v38
  %890 = vmatpush.msra.mxu0 %v34
  %891 = vmatpush.msra.mxu0 %v30
  %892 = vmatpush.msra.mxu0 %v26
  %893 = vmatpush.msra.mxu0 %v22
  %894 = vmatpush.msra.mxu0 %v18
  %895 = vmatmul.f32.gmra.mxu0 %v543
  %v896 = vpop.f32.mrf.mxu0
  %v897 = vadd.f32 %v532, %v896
  %898 = vdwg.mxu0
  %899 = vmatpush.msra.mxu0 %v142
  %900 = vmatpush.msra.mxu0 %v138
  %901 = vmatpush.msra.mxu0 %v134
  %902 = vmatpush.msra.mxu0 %v130
  %903 = vmatpush.msra.mxu0 %v126
  %904 = vmatpush.msra.mxu0 %v122
  %905 = vmatpush.msra.mxu0 %v118
  %906 = vmatpush.msra.mxu0 %v114
  %907 = vmatpush.msra.mxu0 %v110
  %908 = vmatpush.msra.mxu0 %v106
  %909 = vmatpush.msra.mxu0 %v102
  %910 = vmatpush.msra.mxu0 %v98
  %911 = vmatpush.msra.mxu0 %v94
  %912 = vmatpush.msra.mxu0 %v90
  %913 = vmatpush.msra.mxu0 %v86
  %914 = vmatpush.msra.mxu0 %v82
  %915 = vmatmul.f32.gmra.mxu0 %v544
  %v916 = vpop.f32.mrf.mxu0
  %v917 = vadd.f32 %v897, %v916
  %918 = vdwg.mxu0
  %919 = vmatpush.msra.mxu0 %v206
  %920 = vmatpush.msra.mxu0 %v202
  %921 = vmatpush.msra.mxu0 %v198
  %922 = vmatpush.msra.mxu0 %v194
  %923 = vmatpush.msra.mxu0 %v190
  %924 = vmatpush.msra.mxu0 %v186
  %925 = vmatpush.msra.mxu0 %v182
  %926 = vmatpush.msra.mxu0 %v178
  %927 = vmatpush.msra.mxu0 %v174
  %928 = vmatpush.msra.mxu0 %v170
  %929 = vmatpush.msra.mxu0 %v166
  %930 = vmatpush.msra.mxu0 %v162
  %931 = vmatpush.msra.mxu0 %v158
  %932 = vmatpush.msra.mxu0 %v154
  %933 = vmatpush.msra.mxu0 %v150
  %934 = vmatpush.msra.mxu0 %v146
  %935 = vmatmul.f32.gmra.mxu0 %v545
  %v936 = vpop.f32.mrf.mxu0
  %v937 = vadd.f32 %v917, %v936
  %938 = vdwg.mxu0
  %939 = vmatpush.msra.mxu0 %v270
  %940 = vmatpush.msra.mxu0 %v266
  %941 = vmatpush.msra.mxu0 %v262
  %942 = vmatpush.msra.mxu0 %v258
  %943 = vmatpush.msra.mxu0 %v254
  %944 = vmatpush.msra.mxu0 %v250
  %945 = vmatpush.msra.mxu0 %v246
  %946 = vmatpush.msra.mxu0 %v242
  %947 = vmatpush.msra.mxu0 %v238
  %948 = vmatpush.msra.mxu0 %v234
  %949 = vmatpush.msra.mxu0 %v230
  %950 = vmatpush.msra.mxu0 %v226
  %951 = vmatpush.msra.mxu0 %v222
  %952 = vmatpush.msra.mxu0 %v218
  %953 = vmatpush.msra.mxu0 %v214
  %954 = vmatpush.msra.mxu0 %v210
  %955 = vmatmul.f32.gmra.mxu0 %v546
  %v956 = vpop.f32.mrf.mxu0
  %v957 = vadd.f32 %v937, %v956
  %958 = vdwg.mxu0
  %959 = vmatpush.msra.mxu0 %v334
  %960 = vmatpush.msra.mxu0 %v330
  %961 = vmatpush.msra.mxu0 %v326
  %962 = vmatpush.msra.mxu0 %v322
  %963 = vmatpush.msra.mxu0 %v318
  %964 = vmatpush.msra.mxu0 %v314
  %965 = vmatpush.msra.mxu0 %v310
  %966 = vmatpush.msra.mxu0 %v306
  %967 = vmatpush.msra.mxu0 %v302
  %968 = vmatpush.msra.mxu0 %v298
  %969 = vmatpush.msra.mxu0 %v294
  %970 = vmatpush.msra.mxu0 %v290
  %971 = vmatpush.msra.mxu0 %v286
  %972 = vmatpush.msra.mxu0 %v282
  %973 = vmatpush.msra.mxu0 %v278
  %974 = vmatpush.msra.mxu0 %v274
  %975 = vmatmul.f32.gmra.mxu0 %v547
  %v976 = vpop.f32.mrf.mxu0
  %v977 = vadd.f32 %v957, %v976
  %978 = vdwg.mxu0
  %979 = vmatpush.msra.mxu0 %v398
  %980 = vmatpush.msra.mxu0 %v394
  %981 = vmatpush.msra.mxu0 %v390
  %982 = vmatpush.msra.mxu0 %v386
  %983 = vmatpush.msra.mxu0 %v382
  %984 = vmatpush.msra.mxu0 %v378
  %985 = vmatpush.msra.mxu0 %v374
  %986 = vmatpush.msra.mxu0 %v370
  %987 = vmatpush.msra.mxu0 %v366
  %988 = vmatpush.msra.mxu0 %v362
  %989 = vmatpush.msra.mxu0 %v358
  %990 = vmatpush.msra.mxu0 %v354
  %991 = vmatpush.msra.mxu0 %v350
  %992 = vmatpush.msra.mxu0 %v346
  %993 = vmatpush.msra.mxu0 %v342
  %994 = vmatpush.msra.mxu0 %v338
  %995 = vmatmul.f32.gmra.mxu0 %v548
  %v996 = vpop.f32.mrf.mxu0
  %v997 = vadd.f32 %v977, %v996
  %998 = vdwg.mxu0
  %999 = vmatpush.msra.mxu0 %v462
  %1000 = vmatpush.msra.mxu0 %v458
  %1001 = vmatpush.msra.mxu0 %v454
  %1002 = vmatpush.msra.mxu0 %v450
  %1003 = vmatpush.msra.mxu0 %v446
  %1004 = vmatpush.msra.mxu0 %v442
  %1005 = vmatpush.msra.mxu0 %v438
  %1006 = vmatpush.msra.mxu0 %v434
  %1007 = vmatpush.msra.mxu0 %v430
  %1008 = vmatpush.msra.mxu0 %v426
  %1009 = vmatpush.msra.mxu0 %v422
  %1010 = vmatpush.msra.mxu0 %v418
  %1011 = vmatpush.msra.mxu0 %v414
  %1012 = vmatpush.msra.mxu0 %v410
  %1013 = vmatpush.msra.mxu0 %v406
  %1014 = vmatpush.msra.mxu0 %v402
  %1015 = vmatmul.f32.gmra.mxu0 %v549
  %v1016 = vpop.f32.mrf.mxu0
  %v1017 = vadd.f32 %v997, %v1016
  %1018 = vdwg.mxu0
  %1019 = vmatpush.msra.mxu0 %v526
  %1020 = vmatpush.msra.mxu0 %v522
  %1021 = vmatpush.msra.mxu0 %v518
  %1022 = vmatpush.msra.mxu0 %v514
  %1023 = vmatpush.msra.mxu0 %v510
  %1024 = vmatpush.msra.mxu0 %v506
  %1025 = vmatpush.msra.mxu0 %v502
  %1026 = vmatpush.msra.mxu0 %v498
  %1027 = vmatpush.msra.mxu0 %v494
  %1028 = vmatpush.msra.mxu0 %v490
  %1029 = vmatpush.msra.mxu0 %v486
  %1030 = vmatpush.msra.mxu0 %v482
  %1031 = vmatpush.msra.mxu0 %v478
  %1032 = vmatpush.msra.mxu0 %v474
  %1033 = vmatpush.msra.mxu0 %v470
  %1034 = vmatpush.msra.mxu0 %v466
  %1035 = vmatmul.f32.gmra.mxu0 %v550
  %v1036 = vpop.f32.mrf.mxu0
  %v1037 = vadd.f32 %v1017, %v1036
  %1038 = vdwg.mxu0
  %1039 = vmatpush.msra.mxu0 %v79
  %1040 = vmatpush.msra.mxu0 %v75
  %1041 = vmatpush.msra.mxu0 %v71
  %1042 = vmatpush.msra.mxu0 %v67
  %1043 = vmatpush.msra.mxu0 %v63
  %1044 = vmatpush.msra.mxu0 %v59
  %1045 = vmatpush.msra.mxu0 %v55
  %1046 = vmatpush.msra.mxu0 %v51
  %1047 = vmatpush.msra.mxu0 %v47
  %1048 = vmatpush.msra.mxu0 %v43
  %1049 = vmatpush.msra.mxu0 %v39
  %1050 = vmatpush.msra.mxu0 %v35
  %1051 = vmatpush.msra.mxu0 %v31
  %1052 = vmatpush.msra.mxu0 %v27
  %1053 = vmatpush.msra.mxu0 %v23
  %1054 = vmatpush.msra.mxu0 %v19
  %1055 = vmatmul.f32.gmra.mxu0 %v543
  %v1056 = vpop.f32.mrf.mxu0
  %v1057 = vadd.f32 %v533, %v1056
  %1058 = vdwg.mxu0
  %1059 = vmatpush.msra.mxu0 %v143
  %1060 = vmatpush.msra.mxu0 %v139
  %1061 = vmatpush.msra.mxu0 %v135
  %1062 = vmatpush.msra.mxu0 %v131
  %1063 = vmatpush.msra.mxu0 %v127
  %1064 = vmatpush.msra.mxu0 %v123
  %1065 = vmatpush.msra.mxu0 %v119
  %1066 = vmatpush.msra.mxu0 %v115
  %1067 = vmatpush.msra.mxu0 %v111
  %1068 = vmatpush.msra.mxu0 %v107
  %1069 = vmatpush.msra.mxu0 %v103
  %1070 = vmatpush.msra.mxu0 %v99
  %1071 = vmatpush.msra.mxu0 %v95
  %1072 = vmatpush.msra.mxu0 %v91
  %1073 = vmatpush.msra.mxu0 %v87
  %1074 = vmatpush.msra.mxu0 %v83
  %1075 = vmatmul.f32.gmra.mxu0 %v544
  %v1076 = vpop.f32.mrf.mxu0
  %v1077 = vadd.f32 %v1057, %v1076
  %1078 = vdwg.mxu0
  %1079 = vmatpush.msra.mxu0 %v207
  %1080 = vmatpush.msra.mxu0 %v203
  %1081 = vmatpush.msra.mxu0 %v199
  %1082 = vmatpush.msra.mxu0 %v195
  %1083 = vmatpush.msra.mxu0 %v191
  %1084 = vmatpush.msra.mxu0 %v187
  %1085 = vmatpush.msra.mxu0 %v183
  %1086 = vmatpush.msra.mxu0 %v179
  %1087 = vmatpush.msra.mxu0 %v175
  %1088 = vmatpush.msra.mxu0 %v171
  %1089 = vmatpush.msra.mxu0 %v167
  %1090 = vmatpush.msra.mxu0 %v163
  %1091 = vmatpush.msra.mxu0 %v159
  %1092 = vmatpush.msra.mxu0 %v155
  %1093 = vmatpush.msra.mxu0 %v151
  %1094 = vmatpush.msra.mxu0 %v147
  %1095 = vmatmul.f32.gmra.mxu0 %v545
  %v1096 = vpop.f32.mrf.mxu0
  %v1097 = vadd.f32 %v1077, %v1096
  %1098 = vdwg.mxu0
  %1099 = vmatpush.msra.mxu0 %v271
  %1100 = vmatpush.msra.mxu0 %v267
  %1101 = vmatpush.msra.mxu0 %v263
  %1102 = vmatpush.msra.mxu0 %v259
  %1103 = vmatpush.msra.mxu0 %v255
  %1104 = vmatpush.msra.mxu0 %v251
  %1105 = vmatpush.msra.mxu0 %v247
  %1106 = vmatpush.msra.mxu0 %v243
  %1107 = vmatpush.msra.mxu0 %v239
  %1108 = vmatpush.msra.mxu0 %v235
  %1109 = vmatpush.msra.mxu0 %v231
  %1110 = vmatpush.msra.mxu0 %v227
  %1111 = vmatpush.msra.mxu0 %v223
  %1112 = vmatpush.msra.mxu0 %v219
  %1113 = vmatpush.msra.mxu0 %v215
  %1114 = vmatpush.msra.mxu0 %v211
  %1115 = vmatmul.f32.gmra.mxu0 %v546
  %v1116 = vpop.f32.mrf.mxu0
  %v1117 = vadd.f32 %v1097, %v1116
  %1118 = vdwg.mxu0
  %1119 = vmatpush.msra.mxu0 %v335
  %1120 = vmatpush.msra.mxu0 %v331
  %1121 = vmatpush.msra.mxu0 %v327
  %1122 = vmatpush.msra.mxu0 %v323
  %1123 = vmatpush.msra.mxu0 %v319
  %1124 = vmatpush.msra.mxu0 %v315
  %1125 = vmatpush.msra.mxu0 %v311
  %1126 = vmatpush.msra.mxu0 %v307
  %1127 = vmatpush.msra.mxu0 %v303
  %1128 = vmatpush.msra.mxu0 %v299
  %1129 = vmatpush.msra.mxu0 %v295
  %1130 = vmatpush.msra.mxu0 %v291
  %1131 = vmatpush.msra.mxu0 %v287
  %1132 = vmatpush.msra.mxu0 %v283
  %1133 = vmatpush.msra.mxu0 %v279
  %1134 = vmatpush.msra.mxu0 %v275
  %1135 = vmatmul.f32.gmra.mxu0 %v547
  %v1136 = vpop.f32.mrf.mxu0
  %v1137 = vadd.f32 %v1117, %v1136
  %1138 = vdwg.mxu0
  %1139 = vmatpush.msra.mxu0 %v399
  %1140 = vmatpush.msra.mxu0 %v395
  %1141 = vmatpush.msra.mxu0 %v391
  %1142 = vmatpush.msra.mxu0 %v387
  %1143 = vmatpush.msra.mxu0 %v383
  %1144 = vmatpush.msra.mxu0 %v379
  %1145 = vmatpush.msra.mxu0 %v375
  %1146 = vmatpush.msra.mxu0 %v371
  %1147 = vmatpush.msra.mxu0 %v367
  %1148 = vmatpush.msra.mxu0 %v363
  %1149 = vmatpush.msra.mxu0 %v359
  %1150 = vmatpush.msra.mxu0 %v355
  %1151 = vmatpush.msra.mxu0 %v351
  %1152 = vmatpush.msra.mxu0 %v347
  %1153 = vmatpush.msra.mxu0 %v343
  %1154 = vmatpush.msra.mxu0 %v339
  %1155 = vmatmul.f32.gmra.mxu0 %v548
  %v1156 = vpop.f32.mrf.mxu0
  %v1157 = vadd.f32 %v1137, %v1156
  %1158 = vdwg.mxu0
  %1159 = vmatpush.msra.mxu0 %v463
  %1160 = vmatpush.msra.mxu0 %v459
  %1161 = vmatpush.msra.mxu0 %v455
  %1162 = vmatpush.msra.mxu0 %v451
  %1163 = vmatpush.msra.mxu0 %v447
  %1164 = vmatpush.msra.mxu0 %v443
  %1165 = vmatpush.msra.mxu0 %v439
  %1166 = vmatpush.msra.mxu0 %v435
  %1167 = vmatpush.msra.mxu0 %v431
  %1168 = vmatpush.msra.mxu0 %v427
  %1169 = vmatpush.msra.mxu0 %v423
  %1170 = vmatpush.msra.mxu0 %v419
  %1171 = vmatpush.msra.mxu0 %v415
  %1172 = vmatpush.msra.mxu0 %v411
  %1173 = vmatpush.msra.mxu0 %v407
  %1174 = vmatpush.msra.mxu0 %v403
  %1175 = vmatmul.f32.gmra.mxu0 %v549
  %v1176 = vpop.f32.mrf.mxu0
  %v1177 = vadd.f32 %v1157, %v1176
  %1178 = vdwg.mxu0
  %1179 = vmatpush.msra.mxu0 %v527
  %1180 = vmatpush.msra.mxu0 %v523
  %1181 = vmatpush.msra.mxu0 %v519
  %1182 = vmatpush.msra.mxu0 %v515
  %1183 = vmatpush.msra.mxu0 %v511
  %1184 = vmatpush.msra.mxu0 %v507
  %1185 = vmatpush.msra.mxu0 %v503
  %1186 = vmatpush.msra.mxu0 %v499
  %1187 = vmatpush.msra.mxu0 %v495
  %1188 = vmatpush.msra.mxu0 %v491
  %1189 = vmatpush.msra.mxu0 %v487
  %1190 = vmatpush.msra.mxu0 %v483
  %1191 = vmatpush.msra.mxu0 %v479
  %1192 = vmatpush.msra.mxu0 %v475
  %1193 = vmatpush.msra.mxu0 %v471
  %1194 = vmatpush.msra.mxu0 %v467
  %1195 = vmatmul.f32.gmra.mxu0 %v550
  %v1196 = vpop.f32.mrf.mxu0
  %v1197 = vadd.f32 %v1177, %v1196
  %1198 = vdwg.mxu0
  %v1199 = vxor.u32 %v717, 2147483648
  %v1200 = vxor.u32 %v877, 2147483648
  %v1201 = vxor.u32 %v1037, 2147483648
  %v1202 = vxor.u32 %v1197, 2147483648
  %v1203 = vmul.f32 %v1199, 1.442695
  %v1204 = vpow.pop %v1203
  %v1205 = vmul.f32 %v1200, 1.442695
  %v1206 = vpow.pop %v1205
  %v1207 = vmul.f32 %v1201, 1.442695
  %v1208 = vpow.pop %v1207
  %v1209 = vmul.f32 %v1202, 1.442695
  %v1210 = vpow.pop %v1209
  %v1211 = vadd.f32 %v1204, 1.0
  %v1212 = vadd.f32 %v1206, 1.0
  %v1213 = vadd.f32 %v1208, 1.0
  %v1214 = vadd.f32 %v1210, 1.0
  %v1215 = vrcp.pop %v1211
  %v1216 = vmul.f32 %v1211, %v1215
  %v1217 = vsub.f32 1.0, %v1216
  %v1218 = vmul.f32 %v1215, %v1217
  %v1219 = vadd.f32 %v1215, %v1218
  %vm1220 = vweird.f32 %v1211
  %vm1221 = vweird.f32 %v1215
  %vm1222 = vmor %vm1220, %vm1221
  %v1223 = vsel %vm1222, %v1215, %v1219
  %v1224 = vand.u32 2147483647, %v1211
  %vm1225 = vcmp.eq.f32.partialorder %v1224, 8.507059e+37
  %v1226 = vand.u32 %v1211, 2147483648
  %v1227 = vor.u32 1.1754944e-38, %v1226
  %v1228 = vsel %vm1225, %v1227, %v1223
  %v1229 = vmul.f32 1.0, %v1228
  %v1230 = vrcp.pop %v1212
  %v1231 = vmul.f32 %v1212, %v1230
  %v1232 = vsub.f32 1.0, %v1231
  %v1233 = vmul.f32 %v1230, %v1232
  %v1234 = vadd.f32 %v1230, %v1233
  %vm1235 = vweird.f32 %v1212
  %vm1236 = vweird.f32 %v1230
  %vm1237 = vmor %vm1235, %vm1236
  %v1238 = vsel %vm1237, %v1230, %v1234
  %v1239 = vand.u32 2147483647, %v1212
  %vm1240 = vcmp.eq.f32.partialorder %v1239, 8.507059e+37
  %v1241 = vand.u32 %v1212, 2147483648
  %v1242 = vor.u32 1.1754944e-38, %v1241
  %v1243 = vsel %vm1240, %v1242, %v1238
  %v1244 = vmul.f32 1.0, %v1243
  %v1245 = vrcp.pop %v1213
  %v1246 = vmul.f32 %v1213, %v1245
  %v1247 = vsub.f32 1.0, %v1246
  %v1248 = vmul.f32 %v1245, %v1247
  %v1249 = vadd.f32 %v1245, %v1248
  %vm1250 = vweird.f32 %v1213
  %vm1251 = vweird.f32 %v1245
  %vm1252 = vmor %vm1250, %vm1251
  %v1253 = vsel %vm1252, %v1245, %v1249
  %v1254 = vand.u32 2147483647, %v1213
  %vm1255 = vcmp.eq.f32.partialorder %v1254, 8.507059e+37
  %v1256 = vand.u32 %v1213, 2147483648
  %v1257 = vor.u32 1.1754944e-38, %v1256
  %v1258 = vsel %vm1255, %v1257, %v1253
  %v1259 = vmul.f32 1.0, %v1258
  %v1260 = vrcp.pop %v1214
  %v1261 = vmul.f32 %v1214, %v1260
  %v1262 = vsub.f32 1.0, %v1261
  %v1263 = vmul.f32 %v1260, %v1262
  %v1264 = vadd.f32 %v1260, %v1263
  %vm1265 = vweird.f32 %v1214
  %vm1266 = vweird.f32 %v1260
  %vm1267 = vmor %vm1265, %vm1266
  %v1268 = vsel %vm1267, %v1260, %v1264
  %v1269 = vand.u32 2147483647, %v1214
  %vm1270 = vcmp.eq.f32.partialorder %v1269, 8.507059e+37
  %v1271 = vand.u32 %v1214, 2147483648
  %v1272 = vor.u32 1.1754944e-38, %v1271
  %v1273 = vsel %vm1270, %v1272, %v1268
  %v1274 = vmul.f32 1.0, %v1273
  %v1279 = vrot.slane %v1244, 6
  %v1280 = vrot.slane %v1259, 4
  %v1281 = vrot.slane %v1274, 2
  %vm1282 = vcmask 1041408
  %v1283 = vsel %vm1282, %v1229, %v1279
  %vm1284 = vcmask 1045508
  %v1285 = vsel %vm1284, %v1280, %v1281
  %vm1286 = vcmask 1043456
  %v1287 = vsel %vm1286, %v1283, %v1285
  %vm1289 = vcmask 1043458
  %vm1290 = vmor %vm1289, %vm1282
  %vm1291 = vmor %vm1284, %vm1290
  %vm1292 = vcmask 130054
  %vm1293 = vmor %vm1292, %vm1291
  %1294 = vst.msk [vmem:[%s3] sm:$0xff] %vm1293, %v1287
  // Predicated region
  $region14: #{capsule_network_forward.11} parent=0 // pred_check
    _
  $region15: #{capsule_network_forward.11} parent=0 // pred_check_branch
    %1296 = sbr.rel (0) target = $region17
  $region16: #{capsule_network_forward.11} parent=0 // pred_region
    _
  $region17: #{capsule_network_forward.11} parent=0 // pred_fallthru
    _
  // Predicated region
  $region18: #{capsule_network_forward.11} parent=0 // pred_check
    _
  $region19: #{capsule_network_forward.11} parent=0 // pred_check_branch
    %1298 = sbr.rel (0) target = $region21
  $region20: #{capsule_network_forward.11} parent=0 // pred_region
    _
  $region21: #{capsule_network_forward.11} parent=0 // pred_fallthru
    _

</llo_original>
